<compile_context>
chip_gen: v7x
topology: tpu7x:2x2x1
jax: 0.10.0
libtpu: 0.0.40
codegen_flags: <defaults>
</compile_context>

<pallas_src>
import jax
import jax.numpy as jnp
import numpy as np
from jax import lax
from jax.experimental import pallas as pl
from jax.experimental.pallas import tpu as pltpu

POOL_K = 5   # AvgPool2d kernel_size
POOL_S = 3   # AvgPool2d stride


def _make_kernel(N, C, H, W, OC, HID, NCLS):
    OH = (H - POOL_K) // POOL_S + 1
    OW = (W - POOL_K) // POOL_S + 1
    S = OH * OW

    def kernel(x_ref, wc_ref, bc_ref, w1_hbm, b1_ref, w2_ref, b2_ref,
               o_ref, w1_vmem, w1_sem):
        # x_ref : (N, C, H*W)     f32 VMEM   lane-dense input feature map
        # wc_ref: (C, OC)         bf16 VMEM  1x1-conv weight (pre-transposed)
        # bc_ref: (1, OC)         f32 VMEM   conv bias
        # w1_hbm: (S*OC, HID)     bf16 HBM   fc1 weight (transposed, rows permuted)
        # b1_ref: (1, HID)        f32 VMEM   fc1 bias
        # w2_ref: (NCLS, HID)     bf16 VMEM  fc2 weight (un-transposed, lane-dense)
        # b2_ref: (1, NCLS)       f32 VMEM   fc2 bias
        # o_ref : (N, NCLS)       f32 VMEM   logits
        # w1_vmem: (S*OC, HID)    bf16 VMEM scratch (manual DMA target)
        # w1_sem : DMA semaphore

        # Kick off the dominant HBM read (fc1 weight) immediately; the
        # avg-pool / 1x1-conv / flatten below hides under this DMA.
        w1_copy = pltpu.make_async_copy(w1_hbm, w1_vmem, w1_sem)
        w1_copy.start()

        x3 = x_ref[...]                                          # (N, C, H*W)
        inv = 1.0 / float(POOL_K * POOL_K)

        # ---- AvgPool2d(kernel_size=5, stride=3), VALID -----------------------
        # 16 static windows; each is 5 shifted width-5 lane slices added on the
        # VPU plus one small lane reduce (XLU).  All hidden behind the w1 DMA.
        rows = []
        for oh in range(OH):
            for ow in range(OW):
                base = (POOL_S * oh) * W + POOL_S * ow
                acc = x3[:, :, base:base + POOL_K]
                for dh in range(1, POOL_K):
                    start = base + dh * W
                    acc = acc + x3[:, :, start:start + POOL_K]   # (N, C, 5)
                rows.append(jnp.sum(acc, axis=2)[:, None, :])    # (N, 1, C)
        pooled = (jnp.concatenate(rows, axis=1) * inv).reshape(N * S, C)

        # ---- 1x1 conv (C -> OC) + bias + ReLU: lane-dense MXU matmul ---------
        conv = jnp.dot(pooled.astype(jnp.bfloat16), wc_ref[...],
                       preferred_element_type=jnp.float32)       # (N*S, OC) f32
        conv = jnp.maximum(conv + bc_ref[...], 0.0)

        # ---- flatten(1): spatial-major here; fc1 weight rows were permuted
        #      on the host so this matches torch's channel-major flatten -------
        feat = conv.reshape(N, S * OC).astype(jnp.bfloat16)      # (N, S*OC)

        # TODO(synk): training-mode dropout (p=0.5) not implemented;
        #             eval-mode identity is used.

        # ---- fc1 + ReLU (bf16 operands, f32 accumulation) --------------------
        w1_copy.wait()
        h = jnp.dot(feat, w1_vmem[...],
                    preferred_element_type=jnp.float32)          # (N, HID)
        h = jnp.maximum(h + b1_ref[...], 0.0).astype(jnp.bfloat16)

        # ---- fc2: contract the shared HID axis of (N, HID) x (NCLS, HID) -----
        out = lax.dot_general(h, w2_ref[...],
                              dimension_numbers=(((1,), (1,)), ((), ())),
                              preferred_element_type=jnp.float32)
        o_ref[...] = (out + b2_ref[...]).astype(o_ref.dtype)

    return kernel, OH, OW, S


def prepare_inception_aux_params(conv_w, conv_b, fc1_w, fc1_b, fc2_w, fc2_b, S):
    """One-time host/device weight prep: transposes, flatten-order permutation,
    bf16 casts.  Keeps the per-call path free of weight relayout work."""
    OC, C = conv_w.shape[0], conv_w.shape[1]
    HID, FIN = fc1_w.shape
    NCLS = fc2_w.shape[0]
    assert FIN == OC * S, "fc1 in_features must equal 128*OH*OW"

    f32, bf16 = jnp.float32, jnp.bfloat16
    wc = conv_w.reshape(OC, C).T.astype(bf16)                    # (C, OC)
    bc = conv_b.reshape(1, OC).astype(f32)
    # torch.flatten order is channel-major (oc*S + s); the kernel produces
    # spatial-major features (s*OC + oc).  Permute fc1's input rows once here.
    w1 = (fc1_w.T.reshape(OC, S, HID).transpose(1, 0, 2)
          .reshape(OC * S, HID).astype(bf16))                    # (S*OC, HID)
    b1 = fc1_b.reshape(1, HID).astype(f32)
    w2 = fc2_w.astype(bf16)                                      # (NCLS, HID)
    b2 = fc2_b.reshape(1, NCLS).astype(f32)
    return wc, bc, w1, b1, w2, b2


@jax.jit
def inception_aux(x, wc, bc, w1, b1, w2, b2):
    """InceptionAux forward (eval mode) via one fused Pallas kernel.

    x : (N, C, H, W) f32; weights already prepped by prepare_inception_aux_params.
    Returns (N, num_classes) f32 logits.
    """
    N, C, H, W = x.shape
    OC = wc.shape[1]
    HID = b1.shape[1]
    NCLS = b2.shape[1]
    kernel, OH, OW, S = _make_kernel(N, C, H, W, OC, HID, NCLS)

    # Lane-dense, contiguous 2-D-per-image layout for the pooling input.
    x3 = x.astype(jnp.float32).reshape(N, C, H * W)

    flops = 2 * N * (C * S * POOL_K * POOL_K     # avg-pool adds
                     + S * C * OC                # 1x1 conv
                     + S * OC * HID              # fc1
                     + HID * NCLS)               # fc2
    bytes_accessed = (4 * (x3.size + bc.size + b1.size + b2.size + N * NCLS)
                      + 2 * (wc.size + w1.size + w2.size))       # bf16 weights

    vmem = pl.BlockSpec(memory_space=pltpu.MemorySpace.VMEM)
    hbm = pl.BlockSpec(memory_space=pl.ANY)                      # manual DMA

    return pl.pallas_call(
        kernel,
        out_shape=jax.ShapeDtypeStruct((N, NCLS), jnp.float32),
        in_specs=[vmem, vmem, vmem, hbm, vmem, vmem, vmem],
        out_specs=vmem,
        scratch_shapes=[pltpu.VMEM((S * OC, HID), jnp.bfloat16),
                        pltpu.SemaphoreType.DMA(())],
        compiler_params=pltpu.CompilerParams(
            vmem_limit_bytes=16 * 1024 * 1024),
        cost_estimate=pl.CostEstimate(flops=int(flops), transcendentals=0,
                                      bytes_accessed=int(bytes_accessed)),
    )(x3, wc, bc, w1, b1, w2, b2)


def ref_inception_aux(x, conv_w, conv_b, fc1_w, fc1_b, fc2_w, fc2_b):
    """Pure-JAX f32 reference matching PyTorch InceptionAux.forward (eval)."""
    p = lax.reduce_window(
        x, 0.0, lax.add,
        window_dimensions=(1, 1, POOL_K, POOL_K),
        window_strides=(1, 1, POOL_S, POOL_S),
        padding="VALID") / float(POOL_K * POOL_K)
    oc = conv_w.shape[0]
    conv = jnp.einsum("nchw,kc->nkhw", p, conv_w.reshape(oc, -1),
                      precision=lax.Precision.HIGHEST)
    conv = jnp.maximum(conv + conv_b[None, :, None, None], 0.0)
    feat = conv.reshape(x.shape[0], -1)                  # torch.flatten(x, 1)
    h = jnp.dot(feat, fc1_w.T, precision=lax.Precision.HIGHEST) + fc1_b
    h = jnp.maximum(h, 0.0)                              # dropout = identity (eval)
    return jnp.dot(h, fc2_w.T, precision=lax.Precision.HIGHEST) + fc2_b


if __name__ == "__main__":
    key = jax.random.PRNGKey(0)
    ks = jax.random.split(key, 7)

    # Shapes consistent with the module: AvgPool2d(5, 3) on 14x14 -> 4x4,
    # 1x1 conv to 128 channels, 128*4*4 = 2048 == fc1.in_features.
    N, C, H, W = 2, 8, 14, 14
    OC, HID, NUM_CLASSES = 128, 1024, 10
    OH = (H - POOL_K) // POOL_S + 1
    OW = (W - POOL_K) // POOL_S + 1
    S = OH * OW                                          # 16

    x = jax.random.normal(ks[0], (N, C, H, W), dtype=jnp.float32)
    conv_w = jax.random.normal(ks[1], (OC, C, 1, 1), jnp.float32) / np.sqrt(C)
    conv_b = 0.02 * jax.random.normal(ks[2], (OC,), jnp.float32)
    fc1_w = jax.random.normal(ks[3], (HID, OC * S), jnp.float32) / np.sqrt(OC * S)
    fc1_b = 0.02 * jax.random.normal(ks[4], (HID,), jnp.float32)
    fc2_w = jax.random.normal(ks[5], (NUM_CLASSES, HID), jnp.float32) / np.sqrt(HID)
    fc2_b = 0.02 * jax.random.normal(ks[6], (NUM_CLASSES,), jnp.float32)

    params = prepare_inception_aux_params(conv_w, conv_b, fc1_w, fc1_b,
                                          fc2_w, fc2_b, S)
    out = jax.block_until_ready(inception_aux(x, *params))
    ref = jax.block_until_ready(
        ref_inception_aux(x, conv_w, conv_b, fc1_w, fc1_b, fc2_w, fc2_b))

    # Tolerance reflects the intentional bf16 weight quantization (the f32
    # reference uses Precision.HIGHEST).
    np.testing.assert_allclose(np.asarray(out), np.asarray(ref),
                               rtol=1e-2, atol=1e-2)
    print("KERNEL_OK")
</pallas_src>

<mosaic_0001>
module attributes {stable_mosaic.version = 11 : i64} {
  func.func @kernel(%arg0: memref<2x8x196xf32, #tpu.memory_space<vmem>>, %arg1: memref<8x128xbf16, #tpu.memory_space<vmem>>, %arg2: memref<1x128xf32, #tpu.memory_space<vmem>>, %arg3: memref<2048x1024xbf16, #tpu.memory_space<any>>, %arg4: memref<1x1024xf32, #tpu.memory_space<vmem>>, %arg5: memref<10x1024xbf16, #tpu.memory_space<vmem>>, %arg6: memref<1x10xf32, #tpu.memory_space<vmem>>, %arg7: memref<2x10xf32, #tpu.memory_space<vmem>>, %arg8: memref<2048x1024xbf16, #tpu.memory_space<vmem>>, %arg9: memref<!tpu.dma_semaphore, #tpu.memory_space<semaphore_mem>>) attributes {dimension_semantics = [], scalar_prefetch = 0 : i64, scratch_operands = 2 : i64, tpu.core_type = #tpu.core_type<tc>} {
    tpu.enqueue_dma source(%arg3 : memref<2048x1024xbf16, #tpu.memory_space<any>>) target(%arg8 : memref<2048x1024xbf16, #tpu.memory_space<vmem>>) target_semaphore(%arg9 : memref<!tpu.dma_semaphore, #tpu.memory_space<semaphore_mem>>)
    %c0 = arith.constant 0 : index
    %c0_0 = arith.constant 0 : index
    %c0_1 = arith.constant 0 : index
    %0 = vector.load %arg0[%c0, %c0_0, %c0_1] : memref<2x8x196xf32, #tpu.memory_space<vmem>>, vector<2x8x196xf32>
    %1 = vector.extract_strided_slice %0 {offsets = [0, 0, 0], sizes = [2, 8, 5], strides = [1, 1, 1]} : vector<2x8x196xf32> to vector<2x8x5xf32>
    %2 = vector.extract_strided_slice %0 {offsets = [0, 0, 14], sizes = [2, 8, 5], strides = [1, 1, 1]} : vector<2x8x196xf32> to vector<2x8x5xf32>
    %3 = arith.addf %1, %2 : vector<2x8x5xf32>
    %4 = vector.extract_strided_slice %0 {offsets = [0, 0, 28], sizes = [2, 8, 5], strides = [1, 1, 1]} : vector<2x8x196xf32> to vector<2x8x5xf32>
    %5 = arith.addf %3, %4 : vector<2x8x5xf32>
    %6 = vector.extract_strided_slice %0 {offsets = [0, 0, 42], sizes = [2, 8, 5], strides = [1, 1, 1]} : vector<2x8x196xf32> to vector<2x8x5xf32>
    %7 = arith.addf %5, %6 : vector<2x8x5xf32>
    %8 = vector.extract_strided_slice %0 {offsets = [0, 0, 56], sizes = [2, 8, 5], strides = [1, 1, 1]} : vector<2x8x196xf32> to vector<2x8x5xf32>
    %9 = arith.addf %7, %8 : vector<2x8x5xf32>
    %cst = arith.constant dense<0.000000e+00> : vector<2x8xf32>
    %10 = vector.multi_reduction <add>, %9, %cst [2] : vector<2x8x5xf32> to vector<2x8xf32>
    %11 = vector.shape_cast %10 : vector<2x8xf32> to vector<2x1x8xf32>
    %12 = vector.extract_strided_slice %0 {offsets = [0, 0, 3], sizes = [2, 8, 5], strides = [1, 1, 1]} : vector<2x8x196xf32> to vector<2x8x5xf32>
    %13 = vector.extract_strided_slice %0 {offsets = [0, 0, 17], sizes = [2, 8, 5], strides = [1, 1, 1]} : vector<2x8x196xf32> to vector<2x8x5xf32>
    %14 = arith.addf %12, %13 : vector<2x8x5xf32>
    %15 = vector.extract_strided_slice %0 {offsets = [0, 0, 31], sizes = [2, 8, 5], strides = [1, 1, 1]} : vector<2x8x196xf32> to vector<2x8x5xf32>
    %16 = arith.addf %14, %15 : vector<2x8x5xf32>
    %17 = vector.extract_strided_slice %0 {offsets = [0, 0, 45], sizes = [2, 8, 5], strides = [1, 1, 1]} : vector<2x8x196xf32> to vector<2x8x5xf32>
    %18 = arith.addf %16, %17 : vector<2x8x5xf32>
    %19 = vector.extract_strided_slice %0 {offsets = [0, 0, 59], sizes = [2, 8, 5], strides = [1, 1, 1]} : vector<2x8x196xf32> to vector<2x8x5xf32>
    %20 = arith.addf %18, %19 : vector<2x8x5xf32>
    %cst_2 = arith.constant dense<0.000000e+00> : vector<2x8xf32>
    %21 = vector.multi_reduction <add>, %20, %cst_2 [2] : vector<2x8x5xf32> to vector<2x8xf32>
    %22 = vector.shape_cast %21 : vector<2x8xf32> to vector<2x1x8xf32>
    %23 = vector.extract_strided_slice %0 {offsets = [0, 0, 6], sizes = [2, 8, 5], strides = [1, 1, 1]} : vector<2x8x196xf32> to vector<2x8x5xf32>
    %24 = vector.extract_strided_slice %0 {offsets = [0, 0, 20], sizes = [2, 8, 5], strides = [1, 1, 1]} : vector<2x8x196xf32> to vector<2x8x5xf32>
    %25 = arith.addf %23, %24 : vector<2x8x5xf32>
    %26 = vector.extract_strided_slice %0 {offsets = [0, 0, 34], sizes = [2, 8, 5], strides = [1, 1, 1]} : vector<2x8x196xf32> to vector<2x8x5xf32>
    %27 = arith.addf %25, %26 : vector<2x8x5xf32>
    %28 = vector.extract_strided_slice %0 {offsets = [0, 0, 48], sizes = [2, 8, 5], strides = [1, 1, 1]} : vector<2x8x196xf32> to vector<2x8x5xf32>
    %29 = arith.addf %27, %28 : vector<2x8x5xf32>
    %30 = vector.extract_strided_slice %0 {offsets = [0, 0, 62], sizes = [2, 8, 5], strides = [1, 1, 1]} : vector<2x8x196xf32> to vector<2x8x5xf32>
    %31 = arith.addf %29, %30 : vector<2x8x5xf32>
    %cst_3 = arith.constant dense<0.000000e+00> : vector<2x8xf32>
    %32 = vector.multi_reduction <add>, %31, %cst_3 [2] : vector<2x8x5xf32> to vector<2x8xf32>
    %33 = vector.shape_cast %32 : vector<2x8xf32> to vector<2x1x8xf32>
    %34 = vector.extract_strided_slice %0 {offsets = [0, 0, 9], sizes = [2, 8, 5], strides = [1, 1, 1]} : vector<2x8x196xf32> to vector<2x8x5xf32>
    %35 = vector.extract_strided_slice %0 {offsets = [0, 0, 23], sizes = [2, 8, 5], strides = [1, 1, 1]} : vector<2x8x196xf32> to vector<2x8x5xf32>
    %36 = arith.addf %34, %35 : vector<2x8x5xf32>
    %37 = vector.extract_strided_slice %0 {offsets = [0, 0, 37], sizes = [2, 8, 5], strides = [1, 1, 1]} : vector<2x8x196xf32> to vector<2x8x5xf32>
    %38 = arith.addf %36, %37 : vector<2x8x5xf32>
    %39 = vector.extract_strided_slice %0 {offsets = [0, 0, 51], sizes = [2, 8, 5], strides = [1, 1, 1]} : vector<2x8x196xf32> to vector<2x8x5xf32>
    %40 = arith.addf %38, %39 : vector<2x8x5xf32>
    %41 = vector.extract_strided_slice %0 {offsets = [0, 0, 65], sizes = [2, 8, 5], strides = [1, 1, 1]} : vector<2x8x196xf32> to vector<2x8x5xf32>
    %42 = arith.addf %40, %41 : vector<2x8x5xf32>
    %cst_4 = arith.constant dense<0.000000e+00> : vector<2x8xf32>
    %43 = vector.multi_reduction <add>, %42, %cst_4 [2] : vector<2x8x5xf32> to vector<2x8xf32>
    %44 = vector.shape_cast %43 : vector<2x8xf32> to vector<2x1x8xf32>
    %45 = vector.extract_strided_slice %0 {offsets = [0, 0, 42], sizes = [2, 8, 5], strides = [1, 1, 1]} : vector<2x8x196xf32> to vector<2x8x5xf32>
    %46 = vector.extract_strided_slice %0 {offsets = [0, 0, 56], sizes = [2, 8, 5], strides = [1, 1, 1]} : vector<2x8x196xf32> to vector<2x8x5xf32>
    %47 = arith.addf %45, %46 : vector<2x8x5xf32>
    %48 = vector.extract_strided_slice %0 {offsets = [0, 0, 70], sizes = [2, 8, 5], strides = [1, 1, 1]} : vector<2x8x196xf32> to vector<2x8x5xf32>
    %49 = arith.addf %47, %48 : vector<2x8x5xf32>
    %50 = vector.extract_strided_slice %0 {offsets = [0, 0, 84], sizes = [2, 8, 5], strides = [1, 1, 1]} : vector<2x8x196xf32> to vector<2x8x5xf32>
    %51 = arith.addf %49, %50 : vector<2x8x5xf32>
    %52 = vector.extract_strided_slice %0 {offsets = [0, 0, 98], sizes = [2, 8, 5], strides = [1, 1, 1]} : vector<2x8x196xf32> to vector<2x8x5xf32>
    %53 = arith.addf %51, %52 : vector<2x8x5xf32>
    %cst_5 = arith.constant dense<0.000000e+00> : vector<2x8xf32>
    %54 = vector.multi_reduction <add>, %53, %cst_5 [2] : vector<2x8x5xf32> to vector<2x8xf32>
    %55 = vector.shape_cast %54 : vector<2x8xf32> to vector<2x1x8xf32>
    %56 = vector.extract_strided_slice %0 {offsets = [0, 0, 45], sizes = [2, 8, 5], strides = [1, 1, 1]} : vector<2x8x196xf32> to vector<2x8x5xf32>
    %57 = vector.extract_strided_slice %0 {offsets = [0, 0, 59], sizes = [2, 8, 5], strides = [1, 1, 1]} : vector<2x8x196xf32> to vector<2x8x5xf32>
    %58 = arith.addf %56, %57 : vector<2x8x5xf32>
    %59 = vector.extract_strided_slice %0 {offsets = [0, 0, 73], sizes = [2, 8, 5], strides = [1, 1, 1]} : vector<2x8x196xf32> to vector<2x8x5xf32>
    %60 = arith.addf %58, %59 : vector<2x8x5xf32>
    %61 = vector.extract_strided_slice %0 {offsets = [0, 0, 87], sizes = [2, 8, 5], strides = [1, 1, 1]} : vector<2x8x196xf32> to vector<2x8x5xf32>
    %62 = arith.addf %60, %61 : vector<2x8x5xf32>
    %63 = vector.extract_strided_slice %0 {offsets = [0, 0, 101], sizes = [2, 8, 5], strides = [1, 1, 1]} : vector<2x8x196xf32> to vector<2x8x5xf32>
    %64 = arith.addf %62, %63 : vector<2x8x5xf32>
    %cst_6 = arith.constant dense<0.000000e+00> : vector<2x8xf32>
    %65 = vector.multi_reduction <add>, %64, %cst_6 [2] : vector<2x8x5xf32> to vector<2x8xf32>
    %66 = vector.shape_cast %65 : vector<2x8xf32> to vector<2x1x8xf32>
    %67 = vector.extract_strided_slice %0 {offsets = [0, 0, 48], sizes = [2, 8, 5], strides = [1, 1, 1]} : vector<2x8x196xf32> to vector<2x8x5xf32>
    %68 = vector.extract_strided_slice %0 {offsets = [0, 0, 62], sizes = [2, 8, 5], strides = [1, 1, 1]} : vector<2x8x196xf32> to vector<2x8x5xf32>
    %69 = arith.addf %67, %68 : vector<2x8x5xf32>
    %70 = vector.extract_strided_slice %0 {offsets = [0, 0, 76], sizes = [2, 8, 5], strides = [1, 1, 1]} : vector<2x8x196xf32> to vector<2x8x5xf32>
    %71 = arith.addf %69, %70 : vector<2x8x5xf32>
    %72 = vector.extract_strided_slice %0 {offsets = [0, 0, 90], sizes = [2, 8, 5], strides = [1, 1, 1]} : vector<2x8x196xf32> to vector<2x8x5xf32>
    %73 = arith.addf %71, %72 : vector<2x8x5xf32>
    %74 = vector.extract_strided_slice %0 {offsets = [0, 0, 104], sizes = [2, 8, 5], strides = [1, 1, 1]} : vector<2x8x196xf32> to vector<2x8x5xf32>
    %75 = arith.addf %73, %74 : vector<2x8x5xf32>
    %cst_7 = arith.constant dense<0.000000e+00> : vector<2x8xf32>
    %76 = vector.multi_reduction <add>, %75, %cst_7 [2] : vector<2x8x5xf32> to vector<2x8xf32>
    %77 = vector.shape_cast %76 : vector<2x8xf32> to vector<2x1x8xf32>
    %78 = vector.extract_strided_slice %0 {offsets = [0, 0, 51], sizes = [2, 8, 5], strides = [1, 1, 1]} : vector<2x8x196xf32> to vector<2x8x5xf32>
    %79 = vector.extract_strided_slice %0 {offsets = [0, 0, 65], sizes = [2, 8, 5], strides = [1, 1, 1]} : vector<2x8x196xf32> to vector<2x8x5xf32>
    %80 = arith.addf %78, %79 : vector<2x8x5xf32>
    %81 = vector.extract_strided_slice %0 {offsets = [0, 0, 79], sizes = [2, 8, 5], strides = [1, 1, 1]} : vector<2x8x196xf32> to vector<2x8x5xf32>
    %82 = arith.addf %80, %81 : vector<2x8x5xf32>
    %83 = vector.extract_strided_slice %0 {offsets = [0, 0, 93], sizes = [2, 8, 5], strides = [1, 1, 1]} : vector<2x8x196xf32> to vector<2x8x5xf32>
    %84 = arith.addf %82, %83 : vector<2x8x5xf32>
    %85 = vector.extract_strided_slice %0 {offsets = [0, 0, 107], sizes = [2, 8, 5], strides = [1, 1, 1]} : vector<2x8x196xf32> to vector<2x8x5xf32>
    %86 = arith.addf %84, %85 : vector<2x8x5xf32>
    %cst_8 = arith.constant dense<0.000000e+00> : vector<2x8xf32>
    %87 = vector.multi_reduction <add>, %86, %cst_8 [2] : vector<2x8x5xf32> to vector<2x8xf32>
    %88 = vector.shape_cast %87 : vector<2x8xf32> to vector<2x1x8xf32>
    %89 = vector.extract_strided_slice %0 {offsets = [0, 0, 84], sizes = [2, 8, 5], strides = [1, 1, 1]} : vector<2x8x196xf32> to vector<2x8x5xf32>
    %90 = vector.extract_strided_slice %0 {offsets = [0, 0, 98], sizes = [2, 8, 5], strides = [1, 1, 1]} : vector<2x8x196xf32> to vector<2x8x5xf32>
    %91 = arith.addf %89, %90 : vector<2x8x5xf32>
    %92 = vector.extract_strided_slice %0 {offsets = [0, 0, 112], sizes = [2, 8, 5], strides = [1, 1, 1]} : vector<2x8x196xf32> to vector<2x8x5xf32>
    %93 = arith.addf %91, %92 : vector<2x8x5xf32>
    %94 = vector.extract_strided_slice %0 {offsets = [0, 0, 126], sizes = [2, 8, 5], strides = [1, 1, 1]} : vector<2x8x196xf32> to vector<2x8x5xf32>
    %95 = arith.addf %93, %94 : vector<2x8x5xf32>
    %96 = vector.extract_strided_slice %0 {offsets = [0, 0, 140], sizes = [2, 8, 5], strides = [1, 1, 1]} : vector<2x8x196xf32> to vector<2x8x5xf32>
    %97 = arith.addf %95, %96 : vector<2x8x5xf32>
    %cst_9 = arith.constant dense<0.000000e+00> : vector<2x8xf32>
    %98 = vector.multi_reduction <add>, %97, %cst_9 [2] : vector<2x8x5xf32> to vector<2x8xf32>
    %99 = vector.shape_cast %98 : vector<2x8xf32> to vector<2x1x8xf32>
    %100 = vector.extract_strided_slice %0 {offsets = [0, 0, 87], sizes = [2, 8, 5], strides = [1, 1, 1]} : vector<2x8x196xf32> to vector<2x8x5xf32>
    %101 = vector.extract_strided_slice %0 {offsets = [0, 0, 101], sizes = [2, 8, 5], strides = [1, 1, 1]} : vector<2x8x196xf32> to vector<2x8x5xf32>
    %102 = arith.addf %100, %101 : vector<2x8x5xf32>
    %103 = vector.extract_strided_slice %0 {offsets = [0, 0, 115], sizes = [2, 8, 5], strides = [1, 1, 1]} : vector<2x8x196xf32> to vector<2x8x5xf32>
    %104 = arith.addf %102, %103 : vector<2x8x5xf32>
    %105 = vector.extract_strided_slice %0 {offsets = [0, 0, 129], sizes = [2, 8, 5], strides = [1, 1, 1]} : vector<2x8x196xf32> to vector<2x8x5xf32>
    %106 = arith.addf %104, %105 : vector<2x8x5xf32>
    %107 = vector.extract_strided_slice %0 {offsets = [0, 0, 143], sizes = [2, 8, 5], strides = [1, 1, 1]} : vector<2x8x196xf32> to vector<2x8x5xf32>
    %108 = arith.addf %106, %107 : vector<2x8x5xf32>
    %cst_10 = arith.constant dense<0.000000e+00> : vector<2x8xf32>
    %109 = vector.multi_reduction <add>, %108, %cst_10 [2] : vector<2x8x5xf32> to vector<2x8xf32>
    %110 = vector.shape_cast %109 : vector<2x8xf32> to vector<2x1x8xf32>
    %111 = vector.extract_strided_slice %0 {offsets = [0, 0, 90], sizes = [2, 8, 5], strides = [1, 1, 1]} : vector<2x8x196xf32> to vector<2x8x5xf32>
    %112 = vector.extract_strided_slice %0 {offsets = [0, 0, 104], sizes = [2, 8, 5], strides = [1, 1, 1]} : vector<2x8x196xf32> to vector<2x8x5xf32>
    %113 = arith.addf %111, %112 : vector<2x8x5xf32>
    %114 = vector.extract_strided_slice %0 {offsets = [0, 0, 118], sizes = [2, 8, 5], strides = [1, 1, 1]} : vector<2x8x196xf32> to vector<2x8x5xf32>
    %115 = arith.addf %113, %114 : vector<2x8x5xf32>
    %116 = vector.extract_strided_slice %0 {offsets = [0, 0, 132], sizes = [2, 8, 5], strides = [1, 1, 1]} : vector<2x8x196xf32> to vector<2x8x5xf32>
    %117 = arith.addf %115, %116 : vector<2x8x5xf32>
    %118 = vector.extract_strided_slice %0 {offsets = [0, 0, 146], sizes = [2, 8, 5], strides = [1, 1, 1]} : vector<2x8x196xf32> to vector<2x8x5xf32>
    %119 = arith.addf %117, %118 : vector<2x8x5xf32>
    %cst_11 = arith.constant dense<0.000000e+00> : vector<2x8xf32>
    %120 = vector.multi_reduction <add>, %119, %cst_11 [2] : vector<2x8x5xf32> to vector<2x8xf32>
    %121 = vector.shape_cast %120 : vector<2x8xf32> to vector<2x1x8xf32>
    %122 = vector.extract_strided_slice %0 {offsets = [0, 0, 93], sizes = [2, 8, 5], strides = [1, 1, 1]} : vector<2x8x196xf32> to vector<2x8x5xf32>
    %123 = vector.extract_strided_slice %0 {offsets = [0, 0, 107], sizes = [2, 8, 5], strides = [1, 1, 1]} : vector<2x8x196xf32> to vector<2x8x5xf32>
    %124 = arith.addf %122, %123 : vector<2x8x5xf32>
    %125 = vector.extract_strided_slice %0 {offsets = [0, 0, 121], sizes = [2, 8, 5], strides = [1, 1, 1]} : vector<2x8x196xf32> to vector<2x8x5xf32>
    %126 = arith.addf %124, %125 : vector<2x8x5xf32>
    %127 = vector.extract_strided_slice %0 {offsets = [0, 0, 135], sizes = [2, 8, 5], strides = [1, 1, 1]} : vector<2x8x196xf32> to vector<2x8x5xf32>
    %128 = arith.addf %126, %127 : vector<2x8x5xf32>
    %129 = vector.extract_strided_slice %0 {offsets = [0, 0, 149], sizes = [2, 8, 5], strides = [1, 1, 1]} : vector<2x8x196xf32> to vector<2x8x5xf32>
    %130 = arith.addf %128, %129 : vector<2x8x5xf32>
    %cst_12 = arith.constant dense<0.000000e+00> : vector<2x8xf32>
    %131 = vector.multi_reduction <add>, %130, %cst_12 [2] : vector<2x8x5xf32> to vector<2x8xf32>
    %132 = vector.shape_cast %131 : vector<2x8xf32> to vector<2x1x8xf32>
    %133 = vector.extract_strided_slice %0 {offsets = [0, 0, 126], sizes = [2, 8, 5], strides = [1, 1, 1]} : vector<2x8x196xf32> to vector<2x8x5xf32>
    %134 = vector.extract_strided_slice %0 {offsets = [0, 0, 140], sizes = [2, 8, 5], strides = [1, 1, 1]} : vector<2x8x196xf32> to vector<2x8x5xf32>
    %135 = arith.addf %133, %134 : vector<2x8x5xf32>
    %136 = vector.extract_strided_slice %0 {offsets = [0, 0, 154], sizes = [2, 8, 5], strides = [1, 1, 1]} : vector<2x8x196xf32> to vector<2x8x5xf32>
    %137 = arith.addf %135, %136 : vector<2x8x5xf32>
    %138 = vector.extract_strided_slice %0 {offsets = [0, 0, 168], sizes = [2, 8, 5], strides = [1, 1, 1]} : vector<2x8x196xf32> to vector<2x8x5xf32>
    %139 = arith.addf %137, %138 : vector<2x8x5xf32>
    %140 = vector.extract_strided_slice %0 {offsets = [0, 0, 182], sizes = [2, 8, 5], strides = [1, 1, 1]} : vector<2x8x196xf32> to vector<2x8x5xf32>
    %141 = arith.addf %139, %140 : vector<2x8x5xf32>
    %cst_13 = arith.constant dense<0.000000e+00> : vector<2x8xf32>
    %142 = vector.multi_reduction <add>, %141, %cst_13 [2] : vector<2x8x5xf32> to vector<2x8xf32>
    %143 = vector.shape_cast %142 : vector<2x8xf32> to vector<2x1x8xf32>
    %144 = vector.extract_strided_slice %0 {offsets = [0, 0, 129], sizes = [2, 8, 5], strides = [1, 1, 1]} : vector<2x8x196xf32> to vector<2x8x5xf32>
    %145 = vector.extract_strided_slice %0 {offsets = [0, 0, 143], sizes = [2, 8, 5], strides = [1, 1, 1]} : vector<2x8x196xf32> to vector<2x8x5xf32>
    %146 = arith.addf %144, %145 : vector<2x8x5xf32>
    %147 = vector.extract_strided_slice %0 {offsets = [0, 0, 157], sizes = [2, 8, 5], strides = [1, 1, 1]} : vector<2x8x196xf32> to vector<2x8x5xf32>
    %148 = arith.addf %146, %147 : vector<2x8x5xf32>
    %149 = vector.extract_strided_slice %0 {offsets = [0, 0, 171], sizes = [2, 8, 5], strides = [1, 1, 1]} : vector<2x8x196xf32> to vector<2x8x5xf32>
    %150 = arith.addf %148, %149 : vector<2x8x5xf32>
    %151 = vector.extract_strided_slice %0 {offsets = [0, 0, 185], sizes = [2, 8, 5], strides = [1, 1, 1]} : vector<2x8x196xf32> to vector<2x8x5xf32>
    %152 = arith.addf %150, %151 : vector<2x8x5xf32>
    %cst_14 = arith.constant dense<0.000000e+00> : vector<2x8xf32>
    %153 = vector.multi_reduction <add>, %152, %cst_14 [2] : vector<2x8x5xf32> to vector<2x8xf32>
    %154 = vector.shape_cast %153 : vector<2x8xf32> to vector<2x1x8xf32>
    %155 = vector.extract_strided_slice %0 {offsets = [0, 0, 132], sizes = [2, 8, 5], strides = [1, 1, 1]} : vector<2x8x196xf32> to vector<2x8x5xf32>
    %156 = vector.extract_strided_slice %0 {offsets = [0, 0, 146], sizes = [2, 8, 5], strides = [1, 1, 1]} : vector<2x8x196xf32> to vector<2x8x5xf32>
    %157 = arith.addf %155, %156 : vector<2x8x5xf32>
    %158 = vector.extract_strided_slice %0 {offsets = [0, 0, 160], sizes = [2, 8, 5], strides = [1, 1, 1]} : vector<2x8x196xf32> to vector<2x8x5xf32>
    %159 = arith.addf %157, %158 : vector<2x8x5xf32>
    %160 = vector.extract_strided_slice %0 {offsets = [0, 0, 174], sizes = [2, 8, 5], strides = [1, 1, 1]} : vector<2x8x196xf32> to vector<2x8x5xf32>
    %161 = arith.addf %159, %160 : vector<2x8x5xf32>
    %162 = vector.extract_strided_slice %0 {offsets = [0, 0, 188], sizes = [2, 8, 5], strides = [1, 1, 1]} : vector<2x8x196xf32> to vector<2x8x5xf32>
    %163 = arith.addf %161, %162 : vector<2x8x5xf32>
    %cst_15 = arith.constant dense<0.000000e+00> : vector<2x8xf32>
    %164 = vector.multi_reduction <add>, %163, %cst_15 [2] : vector<2x8x5xf32> to vector<2x8xf32>
    %165 = vector.shape_cast %164 : vector<2x8xf32> to vector<2x1x8xf32>
    %166 = vector.extract_strided_slice %0 {offsets = [0, 0, 135], sizes = [2, 8, 5], strides = [1, 1, 1]} : vector<2x8x196xf32> to vector<2x8x5xf32>
    %167 = vector.extract_strided_slice %0 {offsets = [0, 0, 149], sizes = [2, 8, 5], strides = [1, 1, 1]} : vector<2x8x196xf32> to vector<2x8x5xf32>
    %168 = arith.addf %166, %167 : vector<2x8x5xf32>
    %169 = vector.extract_strided_slice %0 {offsets = [0, 0, 163], sizes = [2, 8, 5], strides = [1, 1, 1]} : vector<2x8x196xf32> to vector<2x8x5xf32>
    %170 = arith.addf %168, %169 : vector<2x8x5xf32>
    %171 = vector.extract_strided_slice %0 {offsets = [0, 0, 177], sizes = [2, 8, 5], strides = [1, 1, 1]} : vector<2x8x196xf32> to vector<2x8x5xf32>
    %172 = arith.addf %170, %171 : vector<2x8x5xf32>
    %173 = vector.extract_strided_slice %0 {offsets = [0, 0, 191], sizes = [2, 8, 5], strides = [1, 1, 1]} : vector<2x8x196xf32> to vector<2x8x5xf32>
    %174 = arith.addf %172, %173 : vector<2x8x5xf32>
    %cst_16 = arith.constant dense<0.000000e+00> : vector<2x8xf32>
    %175 = vector.multi_reduction <add>, %174, %cst_16 [2] : vector<2x8x5xf32> to vector<2x8xf32>
    %176 = vector.shape_cast %175 : vector<2x8xf32> to vector<2x1x8xf32>
    %177 = tpu.concatenate %11, %22, %33, %44, %55, %66, %77, %88, %99, %110, %121, %132, %143, %154, %165, %176 in 1 : vector<2x1x8xf32>, vector<2x1x8xf32>, vector<2x1x8xf32>, vector<2x1x8xf32>, vector<2x1x8xf32>, vector<2x1x8xf32>, vector<2x1x8xf32>, vector<2x1x8xf32>, vector<2x1x8xf32>, vector<2x1x8xf32>, vector<2x1x8xf32>, vector<2x1x8xf32>, vector<2x1x8xf32>, vector<2x1x8xf32>, vector<2x1x8xf32>, vector<2x1x8xf32> -> vector<2x16x8xf32>
    %cst_17 = arith.constant 4.000000e-02 : f32
    %178 = vector.broadcast %cst_17 : f32 to vector<2x16x8xf32>
    %179 = arith.mulf %177, %178 : vector<2x16x8xf32>
    %180 = vector.shape_cast %179 : vector<2x16x8xf32> to vector<32x8xf32>
    %181 = arith.truncf %180 : vector<32x8xf32> to vector<32x8xbf16>
    %c0_18 = arith.constant 0 : index
    %c0_19 = arith.constant 0 : index
    %182 = vector.load %arg1[%c0_18, %c0_19] : memref<8x128xbf16, #tpu.memory_space<vmem>>, vector<8x128xbf16>
    %cst_20 = arith.constant dense<0.000000e+00> : vector<32x128xf32>
    %183 = tpu.matmul %181, %182, %cst_20 {dimension_numbers = #tpu.dot_dimension_numbers<[1], [0], [0], [1], [0, 0, 1, 1], [], []>} : vector<32x8xbf16>, vector<8x128xbf16>, vector<32x128xf32> -> vector<32x128xf32>
    %c0_21 = arith.constant 0 : index
    %c0_22 = arith.constant 0 : index
    %184 = vector.load %arg2[%c0_21, %c0_22] : memref<1x128xf32, #tpu.memory_space<vmem>>, vector<1x128xf32>
    %185 = vector.broadcast %184 : vector<1x128xf32> to vector<32x128xf32>
    %186 = arith.addf %183, %185 : vector<32x128xf32>
    %cst_23 = arith.constant 0.000000e+00 : f32
    %187 = vector.broadcast %cst_23 : f32 to vector<32x128xf32>
    %188 = arith.maximumf %186, %187 : vector<32x128xf32>
    %189 = vector.shape_cast %188 : vector<32x128xf32> to vector<2x2048xf32>
    %190 = arith.truncf %189 : vector<2x2048xf32> to vector<2x2048xbf16>
    tpu.wait_dma2 semaphore(%arg9 : memref<!tpu.dma_semaphore, #tpu.memory_space<semaphore_mem>>) src(%arg3 : memref<2048x1024xbf16, #tpu.memory_space<any>>) dst(%arg8 : memref<2048x1024xbf16, #tpu.memory_space<vmem>>)
    %c0_24 = arith.constant 0 : index
    %c0_25 = arith.constant 0 : index
    %191 = vector.load %arg8[%c0_24, %c0_25] : memref<2048x1024xbf16, #tpu.memory_space<vmem>>, vector<2048x1024xbf16>
    %cst_26 = arith.constant dense<0.000000e+00> : vector<2x1024xf32>
    %192 = tpu.matmul %190, %191, %cst_26 {dimension_numbers = #tpu.dot_dimension_numbers<[1], [0], [0], [1], [0, 0, 1, 1], [], []>} : vector<2x2048xbf16>, vector<2048x1024xbf16>, vector<2x1024xf32> -> vector<2x1024xf32>
    %c0_27 = arith.constant 0 : index
    %c0_28 = arith.constant 0 : index
    %193 = vector.load %arg4[%c0_27, %c0_28] : memref<1x1024xf32, #tpu.memory_space<vmem>>, vector<1x1024xf32>
    %194 = vector.broadcast %193 : vector<1x1024xf32> to vector<2x1024xf32>
    %195 = arith.addf %192, %194 : vector<2x1024xf32>
    %cst_29 = arith.constant 0.000000e+00 : f32
    %196 = vector.broadcast %cst_29 : f32 to vector<2x1024xf32>
    %197 = arith.maximumf %195, %196 : vector<2x1024xf32>
    %198 = arith.truncf %197 : vector<2x1024xf32> to vector<2x1024xbf16>
    %c0_30 = arith.constant 0 : index
    %c0_31 = arith.constant 0 : index
    %199 = vector.load %arg5[%c0_30, %c0_31] : memref<10x1024xbf16, #tpu.memory_space<vmem>>, vector<10x1024xbf16>
    %cst_32 = arith.constant dense<0.000000e+00> : vector<2x10xf32>
    %200 = tpu.matmul %198, %199, %cst_32 {dimension_numbers = #tpu.dot_dimension_numbers<[1], [1], [0], [0], [0, 0, 1, 0], [], []>} : vector<2x1024xbf16>, vector<10x1024xbf16>, vector<2x10xf32> -> vector<2x10xf32>
    %c0_33 = arith.constant 0 : index
    %c0_34 = arith.constant 0 : index
    %201 = vector.load %arg6[%c0_33, %c0_34] : memref<1x10xf32, #tpu.memory_space<vmem>>, vector<1x10xf32>
    %202 = vector.broadcast %201 : vector<1x10xf32> to vector<2x10xf32>
    %203 = arith.addf %200, %202 : vector<2x10xf32>
    %c0_35 = arith.constant 0 : index
    %c0_36 = arith.constant 0 : index
    %204 = vector.load %arg7[%c0_35, %c0_36] : memref<2x10xf32, #tpu.memory_space<vmem>>, vector<2x10xf32>
    tpu.vector_store %arg7[%c0_35, %c0_36], %203 {strides = array<i32>} : memref<2x10xf32, #tpu.memory_space<vmem>>, vector<2x10xf32>,
    return
  }
}

</mosaic_0001>

<llo_original>
// kernel: inception_aux.1
$region0: #{inception_aux.1}
  #allocation0 [shape = 'u32[]', space=smem, size = 0x4, offset = 0x4, fixed_abs, tag = 'smem constant byte address 0x4 - core index']
  #allocation1 [shape = 'u32[144,128]{1,0:T(1,128)}', space=vmem, size = 0x12000, scoped, tag = 'internal scratch']
  #allocation2 [shape = 'bf16[2048,1024]{1,0:T(16,128)(2,1)}', space=vmem, size = 0x400000, scoped, tag = 'scratch operand']
  #allocation3 [shape = 's32[1]{0}', space=sflag, size = 0x4, scoped, tag = 'scratch operand']
  #allocation14 [shape = 's32[]', space=sflag, size = 0x4, offset = 0, fixed_abs, tag = 'sflag constant byte address 0x0 - dummy sync flag']
  %s0 = inlined_call_operand.vmem [shape: f32[2,8,196], index: 0, kind: input, shape index: {}]
  %s1 = inlined_call_operand.hbm [shape: bf16[8,128], index: 1, kind: input, shape index: {}]
  %s2 = inlined_call_operand.hbm [shape: f32[1,128], index: 2, kind: input, shape index: {}]
  %s3 = inlined_call_operand.hbm [shape: bf16[2048,1024], index: 3, kind: input, shape index: {}]
  %s4 = inlined_call_operand.hbm [shape: f32[1,1024], index: 4, kind: input, shape index: {}]
  %s5 = inlined_call_operand.hbm [shape: bf16[10,1024], index: 5, kind: input, shape index: {}]
  %s6 = inlined_call_operand.hbm [shape: f32[1,10], index: 6, kind: input, shape index: {}]
  %s7 = inlined_call_operand.hbm [shape: f32[2,10], index: 7, kind: output, shape index: {}]
  %s8 = sld [smem:[#allocation0]]
  $region54: #{inception_aux.1} parent=0
    _
  %s10 = ssub.s32 1, %s8
  %s11 = scalar_select 0, %s10, %s8
  $region1: #{inception_aux.1} parent=0
    #allocation4 [shape = 'u8[2048]{0}', space=vmem, size = 0x800, scoped, tag = 'input window, operand 1, single buffered']
    #allocation5 [shape = 's32[1]{0}', space=sflag, size = 0x4, scoped, tag = 'scoped memory for inception_aux.1']
    #allocation6 [shape = 's32[1]{0}', space=sflag, size = 0x4, scoped, tag = 'scoped memory for inception_aux.1']
    #allocation7 [shape = 'u8[512]{0}', space=vmem, size = 0x400, scoped, tag = 'input window, operand 2, single buffered']
    #allocation8 [shape = 's32[1]{0}', space=sflag, size = 0x4, scoped, tag = 'scoped memory for inception_aux.1']
    #allocation9 [shape = 'u8[4096]{0}', space=vmem, size = 0x1000, scoped, tag = 'input window, operand 4, single buffered']
    #allocation10 [shape = 'u8[32768]{0}', space=vmem, size = 0x8000, scoped, tag = 'input window, operand 5, single buffered']
    #allocation11 [shape = 's32[1]{0}', space=sflag, size = 0x4, scoped, tag = 'scoped memory for inception_aux.1']
    #allocation12 [shape = 'u8[512]{0}', space=vmem, size = 0x400, scoped, tag = 'input window, operand 6, single buffered']
    #allocation13 [shape = 'u8[1024]{0}', space=vmem, size = 0x400, scoped, tag = 'output window, operand 0, single buffered']
    #allocation15 [shape = 'u32[9]{0}', space=smem, size = 0x24, scoped, tag = 'DMA stride descriptor']
    %12 = vsyncpa [#allocation5], 0
    %13 = vsyncpa [#allocation8], 0
    %14 = vsyncpa [#allocation11], 0
    %15 = vsyncpa [#allocation6], 0
    // Predicated region
    $region2: #{inception_aux.1} parent=1 // pred_check
      _
    $region3: #{inception_aux.1} parent=1 // pred_check_branch
      %17 = sbr.rel (0) target = $region5
    $region4: #{inception_aux.1} parent=1 // pred_region
      _
    $region5: #{inception_aux.1} parent=1 // pred_fallthru
      _
    // Predicated region
    $region6: #{inception_aux.1} parent=1 // pred_check
      _
    $region7: #{inception_aux.1} parent=1 // pred_check_branch
      %19 = sbr.rel (0) target = $region9
    $region8: #{inception_aux.1} parent=1 // pred_region
      %s21 = ssub.s32 64, 64
      %22 = vsyncadd [#allocation5], %s21
      %s24 = sshll.u32 [#allocation4], 4
      %s25 = int_to_ptr.vmem [resolvable:$true] %s24
      %27 = dma.hbm_to_vmem [thread:$0]  %s1, 64, %s25, [#allocation5]
    $region9: #{inception_aux.1} parent=1 // pred_fallthru
      _
    // Predicated region
    $region10: #{inception_aux.1} parent=1 // pred_check
      _
    $region11: #{inception_aux.1} parent=1 // pred_check_branch
      %29 = sbr.rel (0) target = $region13
    $region12: #{inception_aux.1} parent=1 // pred_region
      %s31 = ssub.s32 16, 16
      %32 = vsyncadd [#allocation8], %s31
      %s34 = sshll.u32 [#allocation7], 4
      %s35 = int_to_ptr.vmem [resolvable:$true] %s34
      %37 = dma.hbm_to_vmem [thread:$0]  %s2, 16, %s35, [#allocation8]
    $region13: #{inception_aux.1} parent=1 // pred_fallthru
      _
    // Predicated region
    $region14: #{inception_aux.1} parent=1 // pred_check
      _
    $region15: #{inception_aux.1} parent=1 // pred_check_branch
      %39 = sbr.rel (0) target = $region17
    $region16: #{inception_aux.1} parent=1 // pred_region
      %s41 = ssub.s32 128, 128
      %42 = vsyncadd [#allocation8], %s41
      %s44 = sshll.u32 [#allocation9], 4
      %s45 = int_to_ptr.vmem [resolvable:$true] %s44
      %47 = dma.hbm_to_vmem [thread:$0]  %s4, 128, %s45, [#allocation8]
    $region17: #{inception_aux.1} parent=1 // pred_fallthru
      _
    // Predicated region
    $region18: #{inception_aux.1} parent=1 // pred_check
      _
    $region19: #{inception_aux.1} parent=1 // pred_check_branch
      %49 = sbr.rel (0) target = $region21
    $region20: #{inception_aux.1} parent=1 // pred_region
      %s51 = ssub.s32 1024, 1024
      %52 = vsyncadd [#allocation11], %s51
      %s53 = sshll.u32 [#allocation10], 4
      %s54 = int_to_ptr.vmem [resolvable:$true] %s53
      %59 = dma.hbm_to_vmem [thread:$0]  %s5, 1024, %s54, [#allocation11], 512, 512, 32
    $region21: #{inception_aux.1} parent=1 // pred_fallthru
      _
    // Predicated region
    $region22: #{inception_aux.1} parent=1 // pred_check
      _
    $region23: #{inception_aux.1} parent=1 // pred_check_branch
      %61 = sbr.rel (0) target = $region25
    $region24: #{inception_aux.1} parent=1 // pred_region
      %s63 = ssub.s32 16, 16
      %64 = vsyncadd [#allocation11], %s63
      %s66 = sshll.u32 [#allocation12], 4
      %s67 = int_to_ptr.vmem [resolvable:$true] %s66
      %69 = dma.hbm_to_vmem [thread:$0]  %s6, 16, %s67, [#allocation11]
    $region25: #{inception_aux.1} parent=1 // pred_fallthru
      _
    // Predicated region
    $region26: #{inception_aux.1} parent=1 // pred_check
      _
    $region27: #{inception_aux.1} parent=1 // pred_check_branch
      %71 = sbr.rel (0) target = $region29
    $region28: #{inception_aux.1} parent=1 // pred_region
      %72 = dma.done [#allocation5], 64
    $region29: #{inception_aux.1} parent=1 // pred_fallthru
      _
    // Predicated region
    $region30: #{inception_aux.1} parent=1 // pred_check
      _
    $region31: #{inception_aux.1} parent=1 // pred_check_branch
      %74 = sbr.rel (0) target = $region33
    $region32: #{inception_aux.1} parent=1 // pred_region
      %75 = dma.done [#allocation8], 16
    $region33: #{inception_aux.1} parent=1 // pred_fallthru
      _
    // Predicated region
    $region34: #{inception_aux.1} parent=1 // pred_check
      _
    $region35: #{inception_aux.1} parent=1 // pred_check_branch
      %77 = sbr.rel (0) target = $region37
    $region36: #{inception_aux.1} parent=1 // pred_region
      %78 = dma.done [#allocation8], 128
    $region37: #{inception_aux.1} parent=1 // pred_fallthru
      _
    // Predicated region
    $region38: #{inception_aux.1} parent=1 // pred_check
      _
    $region39: #{inception_aux.1} parent=1 // pred_check_branch
      %80 = sbr.rel (0) target = $region41
    $region40: #{inception_aux.1} parent=1 // pred_region
      %81 = dma.done [#allocation11], 1024
    $region41: #{inception_aux.1} parent=1 // pred_fallthru
      _
    // Predicated region
    $region42: #{inception_aux.1} parent=1 // pred_check
      _
    $region43: #{inception_aux.1} parent=1 // pred_check_branch
      %83 = sbr.rel (0) target = $region45
    $region44: #{inception_aux.1} parent=1 // pred_region
      %84 = dma.done [#allocation11], 16
    $region45: #{inception_aux.1} parent=1 // pred_fallthru
      _
    %s87 = sshll.u32 1, 14
    %s88 = sxor.u32 4294967295, %s87
    %s90 = sld [smem:[#allocation0]]
    %s91 = sadd.s32 2, %s90
    %s93 = sshll.u32 7, 26
    %s94 = sxor.u32 4294967295, %s93
    %s95 = sand.u32 0, %s94
    %s96 = sshll.u32 %s91, 26
    %s97 = sor.u32 %s95, %s96
    %s98 = sshll.u32 [#allocation2], 4
    %s99 = int_to_ptr.vmem [resolvable:$true] %s98
    %102 = sst [smem:[#allocation15]] 1024
    %s103 = scalar_lea.smem [#allocation15], 1
    %104 = sst [smem:[%s103]] 1024
    %s105 = scalar_lea.smem [#allocation15], 2
    %106 = sst [smem:[%s105]] 8
    %s107 = scalar_lea.smem [#allocation15], 3
    %108 = sst [smem:[%s107]] 64
    %s109 = scalar_lea.smem [#allocation15], 4
    %110 = sst [smem:[%s109]] 128
    %s111 = scalar_lea.smem [#allocation15], 5
    %112 = sst [smem:[%s111]] 2
    %s113 = scalar_lea.smem [#allocation15], 6
    %114 = sst [smem:[%s113]] 512
    %s115 = scalar_lea.smem [#allocation15], 7
    %116 = sst [smem:[%s115]] 64
    %s117 = scalar_lea.smem [#allocation15], 8
    %118 = sst [smem:[%s117]] 4
    %120 = dma.general %s3, 131072, %s99, [#allocation3], [#allocation14], [#allocation15], %s97, 0
    %v121 = vld [vmem:[%s0] sm:$0xff]
    %v122 = vld [vmem:[%s0 + $0x8] sm:$0xff]
    %v123 = vld [vmem:[%s0 + $0x10] sm:$0xff]
    %v124 = vld [vmem:[%s0 + $0x18] sm:$0xff]
    %127 = vrot.lane.b32.xlu0 %v121, 114
    %v128 = vpop.permute.xlu0 %127
    %129 = vrot.lane.b32.xlu0 %v123, 114
    %v130 = vpop.permute.xlu0 %129
    %v133 = vadd.f32 %v121, %v128
    %v134 = vadd.f32 %v123, %v130
    %135 = vrot.lane.b32.xlu0 %v121, 100
    %v136 = vpop.permute.xlu0 %135
    %137 = vrot.lane.b32.xlu0 %v123, 100
    %v138 = vpop.permute.xlu0 %137
    %v141 = vadd.f32 %v133, %v136
    %v142 = vadd.f32 %v134, %v138
    %143 = vrot.lane.b32.xlu0 %v121, 86
    %v144 = vpop.permute.xlu0 %143
    %145 = vrot.lane.b32.xlu0 %v123, 86
    %v146 = vpop.permute.xlu0 %145
    %v149 = vadd.f32 %v141, %v144
    %v150 = vadd.f32 %v142, %v146
    %151 = vrot.lane.b32.xlu0 %v121, 72
    %v152 = vpop.permute.xlu0 %151
    %153 = vrot.lane.b32.xlu0 %v123, 72
    %v154 = vpop.permute.xlu0 %153
    %v157 = vadd.f32 %v149, %v152
    %v158 = vadd.f32 %v150, %v154
    %vm159 = vcmask 39936
    %v160 = vsel %vm159, %v157, 0.0
    %161 = vadd.xlane.f32.xlu0 %v160
    %v162 = vpop.xlane.xlu0 %161
    %v163 = vsel %vm159, %v158, 0.0
    %164 = vadd.xlane.f32.xlu0 %v163
    %v165 = vpop.xlane.xlu0 %164
    %168 = vrot.lane.b32.xlu0 %v157, 125
    %v169 = vpop.permute.xlu0 %168
    %170 = vrot.lane.b32.xlu0 %v158, 125
    %v171 = vpop.permute.xlu0 %170
    %v174 = vsel %vm159, %v169, 0.0
    %175 = vadd.xlane.f32.xlu0 %v174
    %v176 = vpop.xlane.xlu0 %175
    %v177 = vsel %vm159, %v171, 0.0
    %178 = vadd.xlane.f32.xlu0 %v177
    %v179 = vpop.xlane.xlu0 %178
    %180 = vrot.lane.b32.xlu0 %v157, 122
    %v181 = vpop.permute.xlu0 %180
    %182 = vrot.lane.b32.xlu0 %v158, 122
    %v183 = vpop.permute.xlu0 %182
    %v186 = vsel %vm159, %v181, 0.0
    %187 = vadd.xlane.f32.xlu0 %v186
    %v188 = vpop.xlane.xlu0 %187
    %v189 = vsel %vm159, %v183, 0.0
    %190 = vadd.xlane.f32.xlu0 %v189
    %v191 = vpop.xlane.xlu0 %190
    %192 = vrot.lane.b32.xlu0 %v157, 119
    %v193 = vpop.permute.xlu0 %192
    %194 = vrot.lane.b32.xlu0 %v158, 119
    %v195 = vpop.permute.xlu0 %194
    %v198 = vsel %vm159, %v193, 0.0
    %199 = vadd.xlane.f32.xlu0 %v198
    %v200 = vpop.xlane.xlu0 %199
    %v201 = vsel %vm159, %v195, 0.0
    %202 = vadd.xlane.f32.xlu0 %v201
    %v203 = vpop.xlane.xlu0 %202
    %204 = vrot.lane.b32.xlu0 %v157, 86
    %v205 = vpop.permute.xlu0 %204
    %206 = vrot.lane.b32.xlu0 %v158, 86
    %v207 = vpop.permute.xlu0 %206
    %v210 = vsel %vm159, %v205, 0.0
    %211 = vadd.xlane.f32.xlu0 %v210
    %v212 = vpop.xlane.xlu0 %211
    %v213 = vsel %vm159, %v207, 0.0
    %214 = vadd.xlane.f32.xlu0 %v213
    %v215 = vpop.xlane.xlu0 %214
    %216 = vrot.lane.b32.xlu0 %v157, 83
    %v217 = vpop.permute.xlu0 %216
    %218 = vrot.lane.b32.xlu0 %v158, 83
    %v219 = vpop.permute.xlu0 %218
    %v222 = vsel %vm159, %v217, 0.0
    %223 = vadd.xlane.f32.xlu0 %v222
    %v224 = vpop.xlane.xlu0 %223
    %v225 = vsel %vm159, %v219, 0.0
    %226 = vadd.xlane.f32.xlu0 %v225
    %v227 = vpop.xlane.xlu0 %226
    %228 = vrot.lane.b32.xlu0 %v157, 80
    %v229 = vpop.permute.xlu0 %228
    %230 = vrot.lane.b32.xlu0 %v158, 80
    %v231 = vpop.permute.xlu0 %230
    %v234 = vsel %vm159, %v229, 0.0
    %235 = vadd.xlane.f32.xlu0 %v234
    %v236 = vpop.xlane.xlu0 %235
    %v237 = vsel %vm159, %v231, 0.0
    %238 = vadd.xlane.f32.xlu0 %v237
    %v239 = vpop.xlane.xlu0 %238
    %240 = vrot.lane.b32.xlu0 %v157, 77
    %v241 = vpop.permute.xlu0 %240
    %242 = vrot.lane.b32.xlu0 %v158, 77
    %v243 = vpop.permute.xlu0 %242
    %v246 = vsel %vm159, %v241, 0.0
    %247 = vadd.xlane.f32.xlu0 %v246
    %v248 = vpop.xlane.xlu0 %247
    %v249 = vsel %vm159, %v243, 0.0
    %250 = vadd.xlane.f32.xlu0 %v249
    %v251 = vpop.xlane.xlu0 %250
    %254 = vrot.lane.b32.xlu0 %v122, 86
    %v255 = vpop.permute.xlu0 %254
    %256 = vrot.lane.b32.xlu0 %v124, 86
    %v257 = vpop.permute.xlu0 %256
    %vm258 = vcmask 703488
    %v259 = vsel %vm258, %v144, %v255
    %v260 = vsel %vm258, %v146, %v257
    %v263 = vadd.f32 %v141, %v259
    %v264 = vadd.f32 %v142, %v260
    %265 = vrot.lane.b32.xlu0 %v122, 72
    %v266 = vpop.permute.xlu0 %265
    %267 = vrot.lane.b32.xlu0 %v124, 72
    %v268 = vpop.permute.xlu0 %267
    %v271 = vadd.f32 %v263, %v266
    %v272 = vadd.f32 %v264, %v268
    %275 = vrot.lane.b32.xlu0 %v271, 44
    %v276 = vpop.permute.xlu0 %275
    %277 = vrot.lane.b32.xlu0 %v272, 44
    %v278 = vpop.permute.xlu0 %277
    %v281 = vsel %vm159, %v276, 0.0
    %282 = vadd.xlane.f32.xlu0 %v281
    %v283 = vpop.xlane.xlu0 %282
    %v284 = vsel %vm159, %v278, 0.0
    %285 = vadd.xlane.f32.xlu0 %v284
    %v286 = vpop.xlane.xlu0 %285
    %v289 = vadd.f32 %v141, %v255
    %v290 = vadd.f32 %v142, %v257
    %v291 = vadd.f32 %v289, %v266
    %v292 = vadd.f32 %v290, %v268
    %295 = vrot.lane.b32.xlu0 %v291, 41
    %v296 = vpop.permute.xlu0 %295
    %297 = vrot.lane.b32.xlu0 %v292, 41
    %v298 = vpop.permute.xlu0 %297
    %v301 = vsel %vm159, %v296, 0.0
    %302 = vadd.xlane.f32.xlu0 %v301
    %v303 = vpop.xlane.xlu0 %302
    %v304 = vsel %vm159, %v298, 0.0
    %305 = vadd.xlane.f32.xlu0 %v304
    %v306 = vpop.xlane.xlu0 %305
    %307 = vrot.lane.b32.xlu0 %v291, 38
    %v308 = vpop.permute.xlu0 %307
    %309 = vrot.lane.b32.xlu0 %v292, 38
    %v310 = vpop.permute.xlu0 %309
    %v313 = vsel %vm159, %v308, 0.0
    %314 = vadd.xlane.f32.xlu0 %v313
    %v315 = vpop.xlane.xlu0 %314
    %v316 = vsel %vm159, %v310, 0.0
    %317 = vadd.xlane.f32.xlu0 %v316
    %v318 = vpop.xlane.xlu0 %317
    %319 = vrot.lane.b32.xlu0 %v291, 35
    %v320 = vpop.permute.xlu0 %319
    %321 = vrot.lane.b32.xlu0 %v292, 35
    %v322 = vpop.permute.xlu0 %321
    %v325 = vsel %vm159, %v320, 0.0
    %326 = vadd.xlane.f32.xlu0 %v325
    %v327 = vpop.xlane.xlu0 %326
    %v328 = vsel %vm159, %v322, 0.0
    %329 = vadd.xlane.f32.xlu0 %v328
    %v330 = vpop.xlane.xlu0 %329
    %331 = vrot.lane.b32.xlu0 %v122, 114
    %v332 = vpop.permute.xlu0 %331
    %333 = vrot.lane.b32.xlu0 %v124, 114
    %v334 = vpop.permute.xlu0 %333
    %v337 = vadd.f32 %v121, %v332
    %v338 = vadd.f32 %v122, %v332
    %v339 = vadd.f32 %v123, %v334
    %v340 = vadd.f32 %v124, %v334
    %341 = vrot.lane.b32.xlu0 %v122, 100
    %v342 = vpop.permute.xlu0 %341
    %343 = vrot.lane.b32.xlu0 %v124, 100
    %v344 = vpop.permute.xlu0 %343
    %v347 = vadd.f32 %v337, %v342
    %v348 = vadd.f32 %v338, %v342
    %v349 = vadd.f32 %v339, %v344
    %v350 = vadd.f32 %v340, %v344
    %v351 = vadd.f32 %v347, %v255
    %v352 = vadd.f32 %v348, %v255
    %v353 = vadd.f32 %v349, %v257
    %v354 = vadd.f32 %v350, %v257
    %v355 = vadd.f32 %v351, %v266
    %v356 = vadd.f32 %v352, %v266
    %v357 = vadd.f32 %v353, %v268
    %v358 = vadd.f32 %v354, %v268
    %363 = vrot.lane.b32.xlu0 %v355, 2
    %v364 = vpop.permute.xlu0 %363
    %365 = vrot.lane.b32.xlu0 %v356, 2
    %v366 = vpop.permute.xlu0 %365
    %367 = vrot.lane.b32.xlu0 %v357, 2
    %v368 = vpop.permute.xlu0 %367
    %369 = vrot.lane.b32.xlu0 %v358, 2
    %v370 = vpop.permute.xlu0 %369
    %vm371 = vcmask 15360
    %v372 = vsel %vm371, %v364, %v366
    %v373 = vsel %vm371, %v368, %v370
    %v376 = vsel %vm159, %v372, 0.0
    %377 = vadd.xlane.f32.xlu0 %v376
    %v378 = vpop.xlane.xlu0 %377
    %v379 = vsel %vm159, %v373, 0.0
    %380 = vadd.xlane.f32.xlu0 %v379
    %v381 = vpop.xlane.xlu0 %380
    %382 = vrot.lane.b32.xlu0 %v356, 127
    %v383 = vpop.permute.xlu0 %382
    %384 = vrot.lane.b32.xlu0 %v358, 127
    %v385 = vpop.permute.xlu0 %384
    %v388 = vsel %vm159, %v383, 0.0
    %389 = vadd.xlane.f32.xlu0 %v388
    %v390 = vpop.xlane.xlu0 %389
    %v391 = vsel %vm159, %v385, 0.0
    %392 = vadd.xlane.f32.xlu0 %v391
    %v393 = vpop.xlane.xlu0 %392
    %394 = vrot.lane.b32.xlu0 %v356, 124
    %v395 = vpop.permute.xlu0 %394
    %396 = vrot.lane.b32.xlu0 %v358, 124
    %v397 = vpop.permute.xlu0 %396
    %v400 = vsel %vm159, %v395, 0.0
    %401 = vadd.xlane.f32.xlu0 %v400
    %v402 = vpop.xlane.xlu0 %401
    %v403 = vsel %vm159, %v397, 0.0
    %404 = vadd.xlane.f32.xlu0 %v403
    %v405 = vpop.xlane.xlu0 %404
    %406 = vrot.lane.b32.xlu0 %v356, 121
    %v407 = vpop.permute.xlu0 %406
    %408 = vrot.lane.b32.xlu0 %v358, 121
    %v409 = vpop.permute.xlu0 %408
    %v412 = vsel %vm159, %v407, 0.0
    %413 = vadd.xlane.f32.xlu0 %v412
    %v414 = vpop.xlane.xlu0 %413
    %v415 = vsel %vm159, %v409, 0.0
    %416 = vadd.xlane.f32.xlu0 %v415
    %v417 = vpop.xlane.xlu0 %416
    %v420 = vlaneseq
    %v421 = vand.u32 %v420, 127
    %v422 = vlaneseq
    %v423 = vshrl.u32 %v422, 7
    %v424 = vsub.s32 %v421, %v423
    %v425 = vrot.slane %v162, %v424
    %v426 = vlaneseq
    %v427 = vshrl.u32 %v426, 7
    %v428 = vsub.s32 %v421, %v427
    %v429 = vrot.slane %v165, %v428
    %v434 = vlaneseq
    %v435 = vshrl.u32 %v434, 7
    %v436 = vsub.s32 %v421, %v435
    %v437 = vrot.slane %v176, %v436
    %v438 = vlaneseq
    %v439 = vshrl.u32 %v438, 7
    %v440 = vsub.s32 %v421, %v439
    %v441 = vrot.slane %v179, %v440
    %v446 = vlaneseq
    %v447 = vshrl.u32 %v446, 7
    %v448 = vsub.s32 %v421, %v447
    %v449 = vrot.slane %v188, %v448
    %v450 = vlaneseq
    %v451 = vshrl.u32 %v450, 7
    %v452 = vsub.s32 %v421, %v451
    %v453 = vrot.slane %v191, %v452
    %v458 = vlaneseq
    %v459 = vshrl.u32 %v458, 7
    %v460 = vsub.s32 %v421, %v459
    %v461 = vrot.slane %v200, %v460
    %v462 = vlaneseq
    %v463 = vshrl.u32 %v462, 7
    %v464 = vsub.s32 %v421, %v463
    %v465 = vrot.slane %v203, %v464
    %v470 = vlaneseq
    %v471 = vshrl.u32 %v470, 7
    %v472 = vsub.s32 %v421, %v471
    %v473 = vrot.slane %v212, %v472
    %v474 = vlaneseq
    %v475 = vshrl.u32 %v474, 7
    %v476 = vsub.s32 %v421, %v475
    %v477 = vrot.slane %v215, %v476
    %v482 = vlaneseq
    %v483 = vshrl.u32 %v482, 7
    %v484 = vsub.s32 %v421, %v483
    %v485 = vrot.slane %v224, %v484
    %v486 = vlaneseq
    %v487 = vshrl.u32 %v486, 7
    %v488 = vsub.s32 %v421, %v487
    %v489 = vrot.slane %v227, %v488
    %v494 = vlaneseq
    %v495 = vshrl.u32 %v494, 7
    %v496 = vsub.s32 %v421, %v495
    %v497 = vrot.slane %v236, %v496
    %v498 = vlaneseq
    %v499 = vshrl.u32 %v498, 7
    %v500 = vsub.s32 %v421, %v499
    %v501 = vrot.slane %v239, %v500
    %v506 = vlaneseq
    %v507 = vshrl.u32 %v506, 7
    %v508 = vsub.s32 %v421, %v507
    %v509 = vrot.slane %v248, %v508
    %v510 = vlaneseq
    %v511 = vshrl.u32 %v510, 7
    %v512 = vsub.s32 %v421, %v511
    %v513 = vrot.slane %v251, %v512
    %v518 = vlaneseq
    %v519 = vshrl.u32 %v518, 7
    %v520 = vsub.s32 %v421, %v519
    %v521 = vrot.slane %v283, %v520
    %v522 = vlaneseq
    %v523 = vshrl.u32 %v522, 7
    %v524 = vsub.s32 %v421, %v523
    %v525 = vrot.slane %v286, %v524
    %v530 = vlaneseq
    %v531 = vshrl.u32 %v530, 7
    %v532 = vsub.s32 %v421, %v531
    %v533 = vrot.slane %v303, %v532
    %v534 = vlaneseq
    %v535 = vshrl.u32 %v534, 7
    %v536 = vsub.s32 %v421, %v535
    %v537 = vrot.slane %v306, %v536
    %v542 = vlaneseq
    %v543 = vshrl.u32 %v542, 7
    %v544 = vsub.s32 %v421, %v543
    %v545 = vrot.slane %v315, %v544
    %v546 = vlaneseq
    %v547 = vshrl.u32 %v546, 7
    %v548 = vsub.s32 %v421, %v547
    %v549 = vrot.slane %v318, %v548
    %v554 = vlaneseq
    %v555 = vshrl.u32 %v554, 7
    %v556 = vsub.s32 %v421, %v555
    %v557 = vrot.slane %v327, %v556
    %v558 = vlaneseq
    %v559 = vshrl.u32 %v558, 7
    %v560 = vsub.s32 %v421, %v559
    %v561 = vrot.slane %v330, %v560
    %v566 = vlaneseq
    %v567 = vshrl.u32 %v566, 7
    %v568 = vsub.s32 %v421, %v567
    %v569 = vrot.slane %v378, %v568
    %v570 = vlaneseq
    %v571 = vshrl.u32 %v570, 7
    %v572 = vsub.s32 %v421, %v571
    %v573 = vrot.slane %v381, %v572
    %v578 = vlaneseq
    %v579 = vshrl.u32 %v578, 7
    %v580 = vsub.s32 %v421, %v579
    %v581 = vrot.slane %v390, %v580
    %v582 = vlaneseq
    %v583 = vshrl.u32 %v582, 7
    %v584 = vsub.s32 %v421, %v583
    %v585 = vrot.slane %v393, %v584
    %v590 = vlaneseq
    %v591 = vshrl.u32 %v590, 7
    %v592 = vsub.s32 %v421, %v591
    %v593 = vrot.slane %v402, %v592
    %v594 = vlaneseq
    %v595 = vshrl.u32 %v594, 7
    %v596 = vsub.s32 %v421, %v595
    %v597 = vrot.slane %v405, %v596
    %v602 = vlaneseq
    %v603 = vshrl.u32 %v602, 7
    %v604 = vsub.s32 %v421, %v603
    %v605 = vrot.slane %v414, %v604
    %v606 = vlaneseq
    %v607 = vshrl.u32 %v606, 7
    %v608 = vsub.s32 %v421, %v607
    %v609 = vrot.slane %v417, %v608
    %vm612 = vcmask 1040384
    %v613 = vsel %vm612, %v425, %v437
    %v614 = vsel %vm612, %v429, %v441
    %vm615 = vcmask 1041408
    %v616 = vsel %vm615, %v613, %v449
    %v617 = vsel %vm615, %v614, %v453
    %vm618 = vcmask 1042432
    %v619 = vsel %vm618, %v616, %v461
    %v620 = vsel %vm618, %v617, %v465
    %vm621 = vcmask 1043456
    %v622 = vsel %vm621, %v619, %v473
    %v623 = vsel %vm621, %v620, %v477
    %vm624 = vcmask 1044480
    %v625 = vsel %vm624, %v622, %v485
    %v626 = vsel %vm624, %v623, %v489
    %vm627 = vcmask 1045504
    %v628 = vsel %vm627, %v625, %v497
    %v629 = vsel %vm627, %v626, %v501
    %vm630 = vcmask 1046528
    %v631 = vsel %vm630, %v628, %v509
    %v632 = vsel %vm630, %v629, %v513
    %v633 = vsel %vm612, %v521, %v533
    %v634 = vsel %vm612, %v525, %v537
    %v635 = vsel %vm615, %v633, %v545
    %v636 = vsel %vm615, %v634, %v549
    %v637 = vsel %vm618, %v635, %v557
    %v638 = vsel %vm618, %v636, %v561
    %v639 = vsel %vm621, %v637, %v569
    %v640 = vsel %vm621, %v638, %v573
    %v641 = vsel %vm624, %v639, %v581
    %v642 = vsel %vm624, %v640, %v585
    %v643 = vsel %vm627, %v641, %v593
    %v644 = vsel %vm627, %v642, %v597
    %v645 = vsel %vm630, %v643, %v605
    %v646 = vsel %vm630, %v644, %v609
    %v647 = vmul.f32 %v631, 0.04
    %v648 = vmul.f32 %v645, 0.04
    %v649 = vmul.f32 %v632, 0.04
    %v650 = vmul.f32 %v646, 0.04
    %v651 = vpack.c.bf16 %v648, %v647
    %v652 = vpack.c.bf16 %v650, %v649
    %v653 = vld [vmem:[#allocation4] sm:$0xf]
    %v654 = vld [vmem:[#allocation7] sm:$0x1]
    %v656 = vlaneseq
    %v657 = vshrl.u32 %v656, 7
    %v658 = vsub.s32 0, %v657
    %v659 = vrot.slane %v654, %v658
    %vm661 = vcmask 64512
    %v663 = vsel %vm661, %v651, 0
    %v666 = vsel %vm661, %v652, 0
    %v669 = vsel %vm621, %v653, 0
    %671 = vmatprep.subr.bf16.mxu0 0
    %672 = vmatpush1.bf16.msra.mxu0 %v669
    %673 = vmatprep.subr.bf16.mxu0 0
    %674 = vmatpush1.bf16.msra.mxu0 0
    %675 = vmatprep.subr.bf16.mxu0 0
    %676 = vmatpush1.bf16.msra.mxu0 0
    %677 = vmatprep.subr.bf16.mxu0 0
    %678 = vmatpush1.bf16.msra.mxu0 0
    %679 = vmatprep.subr.bf16.mxu0 0
    %680 = vmatpush1.bf16.msra.mxu0 0
    %681 = vmatprep.subr.bf16.mxu0 0
    %682 = vmatpush1.bf16.msra.mxu0 0
    %683 = vmatprep.subr.bf16.mxu0 0
    %684 = vmatpush1.bf16.msra.mxu0 0
    %685 = vmatprep.subr.bf16.mxu0 0
    %686 = vmatpush1.bf16.msra.mxu0 0
    %687 = vmatprep.subr.bf16.mxu0 0
    %688 = vmatpush1.bf16.msra.mxu0 0
    %689 = vmatprep.subr.bf16.mxu0 0
    %690 = vmatpush1.bf16.msra.mxu0 0
    %691 = vmatprep.subr.bf16.mxu0 0
    %692 = vmatpush1.bf16.msra.mxu0 0
    %693 = vmatprep.subr.bf16.mxu0 0
    %694 = vmatpush1.bf16.msra.mxu0 0
    %695 = vmatprep.subr.bf16.mxu0 0
    %696 = vmatpush1.bf16.msra.mxu0 0
    %697 = vmatprep.subr.bf16.mxu0 0
    %698 = vmatpush1.bf16.msra.mxu0 0
    %699 = vmatprep.subr.bf16.mxu0 0
    %700 = vmatpush1.bf16.msra.mxu0 0
    %701 = vmatprep.subr.bf16.mxu0 0
    %702 = vmatpush1.bf16.msra.mxu0 0
    %703 = vmatprep.mubr.bf16.mxu0 0
    %704 = vmatmul.mubr.bf16.gmra.mrb[0].mxu0 %v663
    %v705 = vpop.f32.mrb[0].mxu0
    %v706 = vadd.f32 %v659, %v705
    %v707 = vpop.f32.mrb[0].mxu0
    %v708 = vpop.f32.mrb[0].mxu0
    %v709 = vadd.f32 %v659, %v708
    %v710 = vpop.f32.mrb[0].mxu0
    %711 = vmatprep.mubr.bf16.mxu0 0
    %712 = vmatmul.mubr.bf16.gmra.mrb[0].mxu0 %v666
    %v713 = vpop.f32.mrb[0].mxu0
    %v714 = vadd.f32 %v659, %v713
    %v715 = vpop.f32.mrb[0].mxu0
    %v716 = vpop.f32.mrb[0].mxu0
    %v717 = vadd.f32 %v659, %v716
    %v718 = vpop.f32.mrb[0].mxu0
    %719 = vdwg.mxu0
    %v720 = vmax.f32 %v706, 0.0
    %v721 = vmax.f32 %v709, 0.0
    %v722 = vmax.f32 %v714, 0.0
    %v723 = vmax.f32 %v717, 0.0
    %v728 = vcombine.low %v720, %v722
    %v729 = vcombine.high %v720, %v722
    %v731 = vunpack.c.l.s4 1966171168
    %v732 = vunpack.c.0.s8 %v731
    %v733 = vlaneseq
    %v734 = vshrl.u32 %v733, 7
    %v735 = vsub.s32 %v732, %v734
    %v736 = vrot.slane %v728, %v735
    %v738 = vunpack.c.l.s4 1966171168
    %v739 = vunpack.c.0.s8 %v738
    %v740 = vlaneseq
    %v741 = vshrl.u32 %v740, 7
    %v742 = vsub.s32 %v739, %v741
    %v743 = vrot.slane %v729, %v742
    %v744 = vcombine.high %v736, %v736
    %v745 = vcombine.high %v743, %v743
    %v747 = vunpack.c.l.s4 1966171168
    %v748 = vunpack.c.0.s8 %v747
    %v749 = vlaneseq
    %v750 = vshrl.u32 %v749, 7
    %v751 = vsub.s32 %v748, %v750
    %v752 = vrot.slane %v736, %v751
    %v754 = vunpack.c.l.s4 1966171168
    %v755 = vunpack.c.0.s8 %v754
    %v756 = vlaneseq
    %v757 = vshrl.u32 %v756, 7
    %v758 = vsub.s32 %v755, %v757
    %v759 = vrot.slane %v743, %v758
    %v761 = vunpack.c.l.s4 1966171168
    %v762 = vunpack.c.0.s8 %v761
    %v763 = vlaneseq
    %v764 = vshrl.u32 %v763, 7
    %v765 = vsub.s32 %v762, %v764
    %v766 = vrot.slane %v744, %v765
    %v768 = vunpack.c.l.s4 1966171168
    %v769 = vunpack.c.0.s8 %v768
    %v770 = vlaneseq
    %v771 = vshrl.u32 %v770, 7
    %v772 = vsub.s32 %v769, %v771
    %v773 = vrot.slane %v745, %v772
    %v774 = vcombine.high %v752, %v752
    %v775 = vcombine.high %v759, %v759
    %v776 = vcombine.high %v766, %v766
    %v777 = vcombine.high %v773, %v773
    %v778 = vcombine.low %v721, %v723
    %v779 = vcombine.high %v721, %v723
    %v781 = vunpack.c.l.s4 1966171168
    %v782 = vunpack.c.0.s8 %v781
    %v783 = vlaneseq
    %v784 = vshrl.u32 %v783, 7
    %v785 = vsub.s32 %v782, %v784
    %v786 = vrot.slane %v778, %v785
    %v788 = vunpack.c.l.s4 1966171168
    %v789 = vunpack.c.0.s8 %v788
    %v790 = vlaneseq
    %v791 = vshrl.u32 %v790, 7
    %v792 = vsub.s32 %v789, %v791
    %v793 = vrot.slane %v779, %v792
    %v794 = vcombine.high %v786, %v786
    %v795 = vcombine.high %v793, %v793
    %v797 = vunpack.c.l.s4 1966171168
    %v798 = vunpack.c.0.s8 %v797
    %v799 = vlaneseq
    %v800 = vshrl.u32 %v799, 7
    %v801 = vsub.s32 %v798, %v800
    %v802 = vrot.slane %v786, %v801
    %v804 = vunpack.c.l.s4 1966171168
    %v805 = vunpack.c.0.s8 %v804
    %v806 = vlaneseq
    %v807 = vshrl.u32 %v806, 7
    %v808 = vsub.s32 %v805, %v807
    %v809 = vrot.slane %v793, %v808
    %v811 = vunpack.c.l.s4 1966171168
    %v812 = vunpack.c.0.s8 %v811
    %v813 = vlaneseq
    %v814 = vshrl.u32 %v813, 7
    %v815 = vsub.s32 %v812, %v814
    %v816 = vrot.slane %v794, %v815
    %v818 = vunpack.c.l.s4 1966171168
    %v819 = vunpack.c.0.s8 %v818
    %v820 = vlaneseq
    %v821 = vshrl.u32 %v820, 7
    %v822 = vsub.s32 %v819, %v821
    %v823 = vrot.slane %v795, %v822
    %v824 = vcombine.high %v802, %v802
    %v825 = vcombine.high %v809, %v809
    %v826 = vcombine.high %v816, %v816
    %v827 = vcombine.high %v823, %v823
    %v844 = vpack.c.bf16 %v752, %v752
    %v845 = vpack.c.bf16 %v766, %v766
    %v846 = vpack.c.bf16 %v774, %v774
    %v847 = vpack.c.bf16 %v776, %v776
    %v848 = vpack.c.bf16 %v759, %v759
    %v849 = vpack.c.bf16 %v773, %v773
    %v850 = vpack.c.bf16 %v775, %v775
    %v851 = vpack.c.bf16 %v777, %v777
    %v852 = vpack.c.bf16 %v802, %v802
    %v853 = vpack.c.bf16 %v816, %v816
    %v854 = vpack.c.bf16 %v824, %v824
    %v855 = vpack.c.bf16 %v826, %v826
    %v856 = vpack.c.bf16 %v809, %v809
    %v857 = vpack.c.bf16 %v823, %v823
    %v858 = vpack.c.bf16 %v825, %v825
    %v859 = vpack.c.bf16 %v827, %v827
    %s860 = smul.u32 4, 256
    %s861 = smul.u32 %s860, 8
    %s862 = sshll.u32 %s861, 4
    %863 = dma.done [#allocation3], %s862
    %v864 = vld [vmem:[#allocation2] sm:$0xff]
    %v865 = vld [vmem:[#allocation2 + $0x8] sm:$0xff]
    %v866 = vld [vmem:[#allocation2 + $0x10] sm:$0xff]
    %v867 = vld [vmem:[#allocation2 + $0x18] sm:$0xff]
    %v868 = vld [vmem:[#allocation2 + $0x20] sm:$0xff]
    %v869 = vld [vmem:[#allocation2 + $0x28] sm:$0xff]
    %v870 = vld [vmem:[#allocation2 + $0x30] sm:$0xff]
    %v871 = vld [vmem:[#allocation2 + $0x38] sm:$0xff]
    %v872 = vld [vmem:[#allocation2 + $0x40] sm:$0xff]
    %v873 = vld [vmem:[#allocation2 + $0x48] sm:$0xff]
    %v874 = vld [vmem:[#allocation2 + $0x50] sm:$0xff]
    %v875 = vld [vmem:[#allocation2 + $0x58] sm:$0xff]
    %v876 = vld [vmem:[#allocation2 + $0x60] sm:$0xff]
    %v877 = vld [vmem:[#allocation2 + $0x68] sm:$0xff]
    %v878 = vld [vmem:[#allocation2 + $0x70] sm:$0xff]
    %v879 = vld [vmem:[#allocation2 + $0x78] sm:$0xff]
    %v880 = vld [vmem:[#allocation2 + $0x80] sm:$0xff]
    %v881 = vld [vmem:[#allocation2 + $0x88] sm:$0xff]
    %v882 = vld [vmem:[#allocation2 + $0x90] sm:$0xff]
    %v883 = vld [vmem:[#allocation2 + $0x98] sm:$0xff]
    %v884 = vld [vmem:[#allocation2 + $0xa0] sm:$0xff]
    %v885 = vld [vmem:[#allocation2 + $0xa8] sm:$0xff]
    %v886 = vld [vmem:[#allocation2 + $0xb0] sm:$0xff]
    %v887 = vld [vmem:[#allocation2 + $0xb8] sm:$0xff]
    %v888 = vld [vmem:[#allocation2 + $0xc0] sm:$0xff]
    %v889 = vld [vmem:[#allocation2 + $0xc8] sm:$0xff]
    %v890 = vld [vmem:[#allocation2 + $0xd0] sm:$0xff]
    %v891 = vld [vmem:[#allocation2 + $0xd8] sm:$0xff]
    %v892 = vld [vmem:[#allocation2 + $0xe0] sm:$0xff]
    %v893 = vld [vmem:[#allocation2 + $0xe8] sm:$0xff]
    %v894 = vld [vmem:[#allocation2 + $0xf0] sm:$0xff]
    %v895 = vld [vmem:[#allocation2 + $0xf8] sm:$0xff]
    %v896 = vld [vmem:[#allocation2 + $0x100] sm:$0xff]
    %v897 = vld [vmem:[#allocation2 + $0x108] sm:$0xff]
    %v898 = vld [vmem:[#allocation2 + $0x110] sm:$0xff]
    %v899 = vld [vmem:[#allocation2 + $0x118] sm:$0xff]
    %v900 = vld [vmem:[#allocation2 + $0x120] sm:$0xff]
    %v901 = vld [vmem:[#allocation2 + $0x128] sm:$0xff]
    %v902 = vld [vmem:[#allocation2 + $0x130] sm:$0xff]
    %v903 = vld [vmem:[#allocation2 + $0x138] sm:$0xff]
    %v904 = vld [vmem:[#allocation2 + $0x140] sm:$0xff]
    %v905 = vld [vmem:[#allocation2 + $0x148] sm:$0xff]
    %v906 = vld [vmem:[#allocation2 + $0x150] sm:$0xff]
    %v907 = vld [vmem:[#allocation2 + $0x158] sm:$0xff]
    %v908 = vld [vmem:[#allocation2 + $0x160] sm:$0xff]
    %v909 = vld [vmem:[#allocation2 + $0x168] sm:$0xff]
    %v910 = vld [vmem:[#allocation2 + $0x170] sm:$0xff]
    %v911 = vld [vmem:[#allocation2 + $0x178] sm:$0xff]
    %v912 = vld [vmem:[#allocation2 + $0x180] sm:$0xff]
    %v913 = vld [vmem:[#allocation2 + $0x188] sm:$0xff]
    %v914 = vld [vmem:[#allocation2 + $0x190] sm:$0xff]
    %v915 = vld [vmem:[#allocation2 + $0x198] sm:$0xff]
    %v916 = vld [vmem:[#allocation2 + $0x1a0] sm:$0xff]
    %v917 = vld [vmem:[#allocation2 + $0x1a8] sm:$0xff]
    %v918 = vld [vmem:[#allocation2 + $0x1b0] sm:$0xff]
    %v919 = vld [vmem:[#allocation2 + $0x1b8] sm:$0xff]
    %v920 = vld [vmem:[#allocation2 + $0x1c0] sm:$0xff]
    %v921 = vld [vmem:[#allocation2 + $0x1c8] sm:$0xff]
    %v922 = vld [vmem:[#allocation2 + $0x1d0] sm:$0xff]
    %v923 = vld [vmem:[#allocation2 + $0x1d8] sm:$0xff]
    %v924 = vld [vmem:[#allocation2 + $0x1e0] sm:$0xff]
    %v925 = vld [vmem:[#allocation2 + $0x1e8] sm:$0xff]
    %v926 = vld [vmem:[#allocation2 + $0x1f0] sm:$0xff]
    %v927 = vld [vmem:[#allocation2 + $0x1f8] sm:$0xff]
    %v928 = vld [vmem:[#allocation2 + $0x200] sm:$0xff]
    %v929 = vld [vmem:[#allocation2 + $0x208] sm:$0xff]
    %v930 = vld [vmem:[#allocation2 + $0x210] sm:$0xff]
    %v931 = vld [vmem:[#allocation2 + $0x218] sm:$0xff]
    %v932 = vld [vmem:[#allocation2 + $0x220] sm:$0xff]
    %v933 = vld [vmem:[#allocation2 + $0x228] sm:$0xff]
    %v934 = vld [vmem:[#allocation2 + $0x230] sm:$0xff]
    %v935 = vld [vmem:[#allocation2 + $0x238] sm:$0xff]
    %v936 = vld [vmem:[#allocation2 + $0x240] sm:$0xff]
    %v937 = vld [vmem:[#allocation2 + $0x248] sm:$0xff]
    %v938 = vld [vmem:[#allocation2 + $0x250] sm:$0xff]
    %v939 = vld [vmem:[#allocation2 + $0x258] sm:$0xff]
    %v940 = vld [vmem:[#allocation2 + $0x260] sm:$0xff]
    %v941 = vld [vmem:[#allocation2 + $0x268] sm:$0xff]
    %v942 = vld [vmem:[#allocation2 + $0x270] sm:$0xff]
    %v943 = vld [vmem:[#allocation2 + $0x278] sm:$0xff]
    %v944 = vld [vmem:[#allocation2 + $0x280] sm:$0xff]
    %v945 = vld [vmem:[#allocation2 + $0x288] sm:$0xff]
    %v946 = vld [vmem:[#allocation2 + $0x290] sm:$0xff]
    %v947 = vld [vmem:[#allocation2 + $0x298] sm:$0xff]
    %v948 = vld [vmem:[#allocation2 + $0x2a0] sm:$0xff]
    %v949 = vld [vmem:[#allocation2 + $0x2a8] sm:$0xff]
    %v950 = vld [vmem:[#allocation2 + $0x2b0] sm:$0xff]
    %v951 = vld [vmem:[#allocation2 + $0x2b8] sm:$0xff]
    %v952 = vld [vmem:[#allocation2 + $0x2c0] sm:$0xff]
    %v953 = vld [vmem:[#allocation2 + $0x2c8] sm:$0xff]
    %v954 = vld [vmem:[#allocation2 + $0x2d0] sm:$0xff]
    %v955 = vld [vmem:[#allocation2 + $0x2d8] sm:$0xff]
    %v956 = vld [vmem:[#allocation2 + $0x2e0] sm:$0xff]
    %v957 = vld [vmem:[#allocation2 + $0x2e8] sm:$0xff]
    %v958 = vld [vmem:[#allocation2 + $0x2f0] sm:$0xff]
    %v959 = vld [vmem:[#allocation2 + $0x2f8] sm:$0xff]
    %v960 = vld [vmem:[#allocation2 + $0x300] sm:$0xff]
    %v961 = vld [vmem:[#allocation2 + $0x308] sm:$0xff]
    %v962 = vld [vmem:[#allocation2 + $0x310] sm:$0xff]
    %v963 = vld [vmem:[#allocation2 + $0x318] sm:$0xff]
    %v964 = vld [vmem:[#allocation2 + $0x320] sm:$0xff]
    %v965 = vld [vmem:[#allocation2 + $0x328] sm:$0xff]
    %v966 = vld [vmem:[#allocation2 + $0x330] sm:$0xff]
    %v967 = vld [vmem:[#allocation2 + $0x338] sm:$0xff]
    %v968 = vld [vmem:[#allocation2 + $0x340] sm:$0xff]
    %v969 = vld [vmem:[#allocation2 + $0x348] sm:$0xff]
    %v970 = vld [vmem:[#allocation2 + $0x350] sm:$0xff]
    %v971 = vld [vmem:[#allocation2 + $0x358] sm:$0xff]
    %v972 = vld [vmem:[#allocation2 + $0x360] sm:$0xff]
    %v973 = vld [vmem:[#allocation2 + $0x368] sm:$0xff]
    %v974 = vld [vmem:[#allocation2 + $0x370] sm:$0xff]
    %v975 = vld [vmem:[#allocation2 + $0x378] sm:$0xff]
    %v976 = vld [vmem:[#allocation2 + $0x380] sm:$0xff]
    %v977 = vld [vmem:[#allocation2 + $0x388] sm:$0xff]
    %v978 = vld [vmem:[#allocation2 + $0x390] sm:$0xff]
    %v979 = vld [vmem:[#allocation2 + $0x398] sm:$0xff]
    %v980 = vld [vmem:[#allocation2 + $0x3a0] sm:$0xff]
    %v981 = vld [vmem:[#allocation2 + $0x3a8] sm:$0xff]
    %v982 = vld [vmem:[#allocation2 + $0x3b0] sm:$0xff]
    %v983 = vld [vmem:[#allocation2 + $0x3b8] sm:$0xff]
    %v984 = vld [vmem:[#allocation2 + $0x3c0] sm:$0xff]
    %v985 = vld [vmem:[#allocation2 + $0x3c8] sm:$0xff]
    %v986 = vld [vmem:[#allocation2 + $0x3d0] sm:$0xff]
    %v987 = vld [vmem:[#allocation2 + $0x3d8] sm:$0xff]
    %v988 = vld [vmem:[#allocation2 + $0x3e0] sm:$0xff]
    %v989 = vld [vmem:[#allocation2 + $0x3e8] sm:$0xff]
    %v990 = vld [vmem:[#allocation2 + $0x3f0] sm:$0xff]
    %v991 = vld [vmem:[#allocation2 + $0x3f8] sm:$0xff]
    %v992 = vld [vmem:[#allocation2 + $0x400] sm:$0xff]
    %v993 = vld [vmem:[#allocation2 + $0x408] sm:$0xff]
    %v994 = vld [vmem:[#allocation2 + $0x410] sm:$0xff]
    %v995 = vld [vmem:[#allocation2 + $0x418] sm:$0xff]
    %v996 = vld [vmem:[#allocation2 + $0x420] sm:$0xff]
    %v997 = vld [vmem:[#allocation2 + $0x428] sm:$0xff]
    %v998 = vld [vmem:[#allocation2 + $0x430] sm:$0xff]
    %v999 = vld [vmem:[#allocation2 + $0x438] sm:$0xff]
    %v1000 = vld [vmem:[#allocation2 + $0x440] sm:$0xff]
    %v1001 = vld [vmem:[#allocation2 + $0x448] sm:$0xff]
    %v1002 = vld [vmem:[#allocation2 + $0x450] sm:$0xff]
    %v1003 = vld [vmem:[#allocation2 + $0x458] sm:$0xff]
    %v1004 = vld [vmem:[#allocation2 + $0x460] sm:$0xff]
    %v1005 = vld [vmem:[#allocation2 + $0x468] sm:$0xff]
    %v1006 = vld [vmem:[#allocation2 + $0x470] sm:$0xff]
    %v1007 = vld [vmem:[#allocation2 + $0x478] sm:$0xff]
    %v1008 = vld [vmem:[#allocation2 + $0x480] sm:$0xff]
    %v1009 = vld [vmem:[#allocation2 + $0x488] sm:$0xff]
    %v1010 = vld [vmem:[#allocation2 + $0x490] sm:$0xff]
    %v1011 = vld [vmem:[#allocation2 + $0x498] sm:$0xff]
    %v1012 = vld [vmem:[#allocation2 + $0x4a0] sm:$0xff]
    %v1013 = vld [vmem:[#allocation2 + $0x4a8] sm:$0xff]
    %v1014 = vld [vmem:[#allocation2 + $0x4b0] sm:$0xff]
    %v1015 = vld [vmem:[#allocation2 + $0x4b8] sm:$0xff]
    %v1016 = vld [vmem:[#allocation2 + $0x4c0] sm:$0xff]
    %v1017 = vld [vmem:[#allocation2 + $0x4c8] sm:$0xff]
    %v1018 = vld [vmem:[#allocation2 + $0x4d0] sm:$0xff]
    %v1019 = vld [vmem:[#allocation2 + $0x4d8] sm:$0xff]
    %v1020 = vld [vmem:[#allocation2 + $0x4e0] sm:$0xff]
    %v1021 = vld [vmem:[#allocation2 + $0x4e8] sm:$0xff]
    %v1022 = vld [vmem:[#allocation2 + $0x4f0] sm:$0xff]
    %v1023 = vld [vmem:[#allocation2 + $0x4f8] sm:$0xff]
    %v1024 = vld [vmem:[#allocation2 + $0x500] sm:$0xff]
    %v1025 = vld [vmem:[#allocation2 + $0x508] sm:$0xff]
    %v1026 = vld [vmem:[#allocation2 + $0x510] sm:$0xff]
    %v1027 = vld [vmem:[#allocation2 + $0x518] sm:$0xff]
    %v1028 = vld [vmem:[#allocation2 + $0x520] sm:$0xff]
    %v1029 = vld [vmem:[#allocation2 + $0x528] sm:$0xff]
    %v1030 = vld [vmem:[#allocation2 + $0x530] sm:$0xff]
    %v1031 = vld [vmem:[#allocation2 + $0x538] sm:$0xff]
    %v1032 = vld [vmem:[#allocation2 + $0x540] sm:$0xff]
    %v1033 = vld [vmem:[#allocation2 + $0x548] sm:$0xff]
    %v1034 = vld [vmem:[#allocation2 + $0x550] sm:$0xff]
    %v1035 = vld [vmem:[#allocation2 + $0x558] sm:$0xff]
    %v1036 = vld [vmem:[#allocation2 + $0x560] sm:$0xff]
    %v1037 = vld [vmem:[#allocation2 + $0x568] sm:$0xff]
    %v1038 = vld [vmem:[#allocation2 + $0x570] sm:$0xff]
    %v1039 = vld [vmem:[#allocation2 + $0x578] sm:$0xff]
    %v1040 = vld [vmem:[#allocation2 + $0x580] sm:$0xff]
    %v1041 = vld [vmem:[#allocation2 + $0x588] sm:$0xff]
    %v1042 = vld [vmem:[#allocation2 + $0x590] sm:$0xff]
    %v1043 = vld [vmem:[#allocation2 + $0x598] sm:$0xff]
    %v1044 = vld [vmem:[#allocation2 + $0x5a0] sm:$0xff]
    %v1045 = vld [vmem:[#allocation2 + $0x5a8] sm:$0xff]
    %v1046 = vld [vmem:[#allocation2 + $0x5b0] sm:$0xff]
    %v1047 = vld [vmem:[#allocation2 + $0x5b8] sm:$0xff]
    %v1048 = vld [vmem:[#allocation2 + $0x5c0] sm:$0xff]
    %v1049 = vld [vmem:[#allocation2 + $0x5c8] sm:$0xff]
    %v1050 = vld [vmem:[#allocation2 + $0x5d0] sm:$0xff]
    %v1051 = vld [vmem:[#allocation2 + $0x5d8] sm:$0xff]
    %v1052 = vld [vmem:[#allocation2 + $0x5e0] sm:$0xff]
    %v1053 = vld [vmem:[#allocation2 + $0x5e8] sm:$0xff]
    %v1054 = vld [vmem:[#allocation2 + $0x5f0] sm:$0xff]
    %v1055 = vld [vmem:[#allocation2 + $0x5f8] sm:$0xff]
    %v1056 = vld [vmem:[#allocation2 + $0x600] sm:$0xff]
    %v1057 = vld [vmem:[#allocation2 + $0x608] sm:$0xff]
    %v1058 = vld [vmem:[#allocation2 + $0x610] sm:$0xff]
    %v1059 = vld [vmem:[#allocation2 + $0x618] sm:$0xff]
    %v1060 = vld [vmem:[#allocation2 + $0x620] sm:$0xff]
    %v1061 = vld [vmem:[#allocation2 + $0x628] sm:$0xff]
    %v1062 = vld [vmem:[#allocation2 + $0x630] sm:$0xff]
    %v1063 = vld [vmem:[#allocation2 + $0x638] sm:$0xff]
    %v1064 = vld [vmem:[#allocation2 + $0x640] sm:$0xff]
    %v1065 = vld [vmem:[#allocation2 + $0x648] sm:$0xff]
    %v1066 = vld [vmem:[#allocation2 + $0x650] sm:$0xff]
    %v1067 = vld [vmem:[#allocation2 + $0x658] sm:$0xff]
    %v1068 = vld [vmem:[#allocation2 + $0x660] sm:$0xff]
    %v1069 = vld [vmem:[#allocation2 + $0x668] sm:$0xff]
    %v1070 = vld [vmem:[#allocation2 + $0x670] sm:$0xff]
    %v1071 = vld [vmem:[#allocation2 + $0x678] sm:$0xff]
    %v1072 = vld [vmem:[#allocation2 + $0x680] sm:$0xff]
    %v1073 = vld [vmem:[#allocation2 + $0x688] sm:$0xff]
    %v1074 = vld [vmem:[#allocation2 + $0x690] sm:$0xff]
    %v1075 = vld [vmem:[#allocation2 + $0x698] sm:$0xff]
    %v1076 = vld [vmem:[#allocation2 + $0x6a0] sm:$0xff]
    %v1077 = vld [vmem:[#allocation2 + $0x6a8] sm:$0xff]
    %v1078 = vld [vmem:[#allocation2 + $0x6b0] sm:$0xff]
    %v1079 = vld [vmem:[#allocation2 + $0x6b8] sm:$0xff]
    %v1080 = vld [vmem:[#allocation2 + $0x6c0] sm:$0xff]
    %v1081 = vld [vmem:[#allocation2 + $0x6c8] sm:$0xff]
    %v1082 = vld [vmem:[#allocation2 + $0x6d0] sm:$0xff]
    %v1083 = vld [vmem:[#allocation2 + $0x6d8] sm:$0xff]
    %v1084 = vld [vmem:[#allocation2 + $0x6e0] sm:$0xff]
    %v1085 = vld [vmem:[#allocation2 + $0x6e8] sm:$0xff]
    %v1086 = vld [vmem:[#allocation2 + $0x6f0] sm:$0xff]
    %v1087 = vld [vmem:[#allocation2 + $0x6f8] sm:$0xff]
    %v1088 = vld [vmem:[#allocation2 + $0x700] sm:$0xff]
    %v1089 = vld [vmem:[#allocation2 + $0x708] sm:$0xff]
    %v1090 = vld [vmem:[#allocation2 + $0x710] sm:$0xff]
    %v1091 = vld [vmem:[#allocation2 + $0x718] sm:$0xff]
    %v1092 = vld [vmem:[#allocation2 + $0x720] sm:$0xff]
    %v1093 = vld [vmem:[#allocation2 + $0x728] sm:$0xff]
    %v1094 = vld [vmem:[#allocation2 + $0x730] sm:$0xff]
    %v1095 = vld [vmem:[#allocation2 + $0x738] sm:$0xff]
    %v1096 = vld [vmem:[#allocation2 + $0x740] sm:$0xff]
    %v1097 = vld [vmem:[#allocation2 + $0x748] sm:$0xff]
    %v1098 = vld [vmem:[#allocation2 + $0x750] sm:$0xff]
    %v1099 = vld [vmem:[#allocation2 + $0x758] sm:$0xff]
    %v1100 = vld [vmem:[#allocation2 + $0x760] sm:$0xff]
    %v1101 = vld [vmem:[#allocation2 + $0x768] sm:$0xff]
    %v1102 = vld [vmem:[#allocation2 + $0x770] sm:$0xff]
    %v1103 = vld [vmem:[#allocation2 + $0x778] sm:$0xff]
    %v1104 = vld [vmem:[#allocation2 + $0x780] sm:$0xff]
    %v1105 = vld [vmem:[#allocation2 + $0x788] sm:$0xff]
    %v1106 = vld [vmem:[#allocation2 + $0x790] sm:$0xff]
    %v1107 = vld [vmem:[#allocation2 + $0x798] sm:$0xff]
    %v1108 = vld [vmem:[#allocation2 + $0x7a0] sm:$0xff]
    %v1109 = vld [vmem:[#allocation2 + $0x7a8] sm:$0xff]
    %v1110 = vld [vmem:[#allocation2 + $0x7b0] sm:$0xff]
    %v1111 = vld [vmem:[#allocation2 + $0x7b8] sm:$0xff]
    %v1112 = vld [vmem:[#allocation2 + $0x7c0] sm:$0xff]
    %v1113 = vld [vmem:[#allocation2 + $0x7c8] sm:$0xff]
    %v1114 = vld [vmem:[#allocation2 + $0x7d0] sm:$0xff]
    %v1115 = vld [vmem:[#allocation2 + $0x7d8] sm:$0xff]
    %v1116 = vld [vmem:[#allocation2 + $0x7e0] sm:$0xff]
    %v1117 = vld [vmem:[#allocation2 + $0x7e8] sm:$0xff]
    %v1118 = vld [vmem:[#allocation2 + $0x7f0] sm:$0xff]
    %v1119 = vld [vmem:[#allocation2 + $0x7f8] sm:$0xff]
    %v1120 = vld [vmem:[#allocation2 + $0x800] sm:$0xff]
    %v1121 = vld [vmem:[#allocation2 + $0x808] sm:$0xff]
    %v1122 = vld [vmem:[#allocation2 + $0x810] sm:$0xff]
    %v1123 = vld [vmem:[#allocation2 + $0x818] sm:$0xff]
    %v1124 = vld [vmem:[#allocation2 + $0x820] sm:$0xff]
    %v1125 = vld [vmem:[#allocation2 + $0x828] sm:$0xff]
    %v1126 = vld [vmem:[#allocation2 + $0x830] sm:$0xff]
    %v1127 = vld [vmem:[#allocation2 + $0x838] sm:$0xff]
    %v1128 = vld [vmem:[#allocation2 + $0x840] sm:$0xff]
    %v1129 = vld [vmem:[#allocation2 + $0x848] sm:$0xff]
    %v1130 = vld [vmem:[#allocation2 + $0x850] sm:$0xff]
    %v1131 = vld [vmem:[#allocation2 + $0x858] sm:$0xff]
    %v1132 = vld [vmem:[#allocation2 + $0x860] sm:$0xff]
    %v1133 = vld [vmem:[#allocation2 + $0x868] sm:$0xff]
    %v1134 = vld [vmem:[#allocation2 + $0x870] sm:$0xff]
    %v1135 = vld [vmem:[#allocation2 + $0x878] sm:$0xff]
    %v1136 = vld [vmem:[#allocation2 + $0x880] sm:$0xff]
    %v1137 = vld [vmem:[#allocation2 + $0x888] sm:$0xff]
    %v1138 = vld [vmem:[#allocation2 + $0x890] sm:$0xff]
    %v1139 = vld [vmem:[#allocation2 + $0x898] sm:$0xff]
    %v1140 = vld [vmem:[#allocation2 + $0x8a0] sm:$0xff]
    %v1141 = vld [vmem:[#allocation2 + $0x8a8] sm:$0xff]
    %v1142 = vld [vmem:[#allocation2 + $0x8b0] sm:$0xff]
    %v1143 = vld [vmem:[#allocation2 + $0x8b8] sm:$0xff]
    %v1144 = vld [vmem:[#allocation2 + $0x8c0] sm:$0xff]
    %v1145 = vld [vmem:[#allocation2 + $0x8c8] sm:$0xff]
    %v1146 = vld [vmem:[#allocation2 + $0x8d0] sm:$0xff]
    %v1147 = vld [vmem:[#allocation2 + $0x8d8] sm:$0xff]
    %v1148 = vld [vmem:[#allocation2 + $0x8e0] sm:$0xff]
    %v1149 = vld [vmem:[#allocation2 + $0x8e8] sm:$0xff]
    %v1150 = vld [vmem:[#allocation2 + $0x8f0] sm:$0xff]
    %v1151 = vld [vmem:[#allocation2 + $0x8f8] sm:$0xff]
    %v1152 = vld [vmem:[#allocation2 + $0x900] sm:$0xff]
    %v1153 = vld [vmem:[#allocation2 + $0x908] sm:$0xff]
    %v1154 = vld [vmem:[#allocation2 + $0x910] sm:$0xff]
    %v1155 = vld [vmem:[#allocation2 + $0x918] sm:$0xff]
    %v1156 = vld [vmem:[#allocation2 + $0x920] sm:$0xff]
    %v1157 = vld [vmem:[#allocation2 + $0x928] sm:$0xff]
    %v1158 = vld [vmem:[#allocation2 + $0x930] sm:$0xff]
    %v1159 = vld [vmem:[#allocation2 + $0x938] sm:$0xff]
    %v1160 = vld [vmem:[#allocation2 + $0x940] sm:$0xff]
    %v1161 = vld [vmem:[#allocation2 + $0x948] sm:$0xff]
    %v1162 = vld [vmem:[#allocation2 + $0x950] sm:$0xff]
    %v1163 = vld [vmem:[#allocation2 + $0x958] sm:$0xff]
    %v1164 = vld [vmem:[#allocation2 + $0x960] sm:$0xff]
    %v1165 = vld [vmem:[#allocation2 + $0x968] sm:$0xff]
    %v1166 = vld [vmem:[#allocation2 + $0x970] sm:$0xff]
    %v1167 = vld [vmem:[#allocation2 + $0x978] sm:$0xff]
    %v1168 = vld [vmem:[#allocation2 + $0x980] sm:$0xff]
    %v1169 = vld [vmem:[#allocation2 + $0x988] sm:$0xff]
    %v1170 = vld [vmem:[#allocation2 + $0x990] sm:$0xff]
    %v1171 = vld [vmem:[#allocation2 + $0x998] sm:$0xff]
    %v1172 = vld [vmem:[#allocation2 + $0x9a0] sm:$0xff]
    %v1173 = vld [vmem:[#allocation2 + $0x9a8] sm:$0xff]
    %v1174 = vld [vmem:[#allocation2 + $0x9b0] sm:$0xff]
    %v1175 = vld [vmem:[#allocation2 + $0x9b8] sm:$0xff]
    %v1176 = vld [vmem:[#allocation2 + $0x9c0] sm:$0xff]
    %v1177 = vld [vmem:[#allocation2 + $0x9c8] sm:$0xff]
    %v1178 = vld [vmem:[#allocation2 + $0x9d0] sm:$0xff]
    %v1179 = vld [vmem:[#allocation2 + $0x9d8] sm:$0xff]
    %v1180 = vld [vmem:[#allocation2 + $0x9e0] sm:$0xff]
    %v1181 = vld [vmem:[#allocation2 + $0x9e8] sm:$0xff]
    %v1182 = vld [vmem:[#allocation2 + $0x9f0] sm:$0xff]
    %v1183 = vld [vmem:[#allocation2 + $0x9f8] sm:$0xff]
    %v1184 = vld [vmem:[#allocation2 + $0xa00] sm:$0xff]
    %v1185 = vld [vmem:[#allocation2 + $0xa08] sm:$0xff]
    %v1186 = vld [vmem:[#allocation2 + $0xa10] sm:$0xff]
    %v1187 = vld [vmem:[#allocation2 + $0xa18] sm:$0xff]
    %v1188 = vld [vmem:[#allocation2 + $0xa20] sm:$0xff]
    %v1189 = vld [vmem:[#allocation2 + $0xa28] sm:$0xff]
    %v1190 = vld [vmem:[#allocation2 + $0xa30] sm:$0xff]
    %v1191 = vld [vmem:[#allocation2 + $0xa38] sm:$0xff]
    %v1192 = vld [vmem:[#allocation2 + $0xa40] sm:$0xff]
    %v1193 = vld [vmem:[#allocation2 + $0xa48] sm:$0xff]
    %v1194 = vld [vmem:[#allocation2 + $0xa50] sm:$0xff]
    %v1195 = vld [vmem:[#allocation2 + $0xa58] sm:$0xff]
    %v1196 = vld [vmem:[#allocation2 + $0xa60] sm:$0xff]
    %v1197 = vld [vmem:[#allocation2 + $0xa68] sm:$0xff]
    %v1198 = vld [vmem:[#allocation2 + $0xa70] sm:$0xff]
    %v1199 = vld [vmem:[#allocation2 + $0xa78] sm:$0xff]
    %v1200 = vld [vmem:[#allocation2 + $0xa80] sm:$0xff]
    %v1201 = vld [vmem:[#allocation2 + $0xa88] sm:$0xff]
    %v1202 = vld [vmem:[#allocation2 + $0xa90] sm:$0xff]
    %v1203 = vld [vmem:[#allocation2 + $0xa98] sm:$0xff]
    %v1204 = vld [vmem:[#allocation2 + $0xaa0] sm:$0xff]
    %v1205 = vld [vmem:[#allocation2 + $0xaa8] sm:$0xff]
    %v1206 = vld [vmem:[#allocation2 + $0xab0] sm:$0xff]
    %v1207 = vld [vmem:[#allocation2 + $0xab8] sm:$0xff]
    %v1208 = vld [vmem:[#allocation2 + $0xac0] sm:$0xff]
    %v1209 = vld [vmem:[#allocation2 + $0xac8] sm:$0xff]
    %v1210 = vld [vmem:[#allocation2 + $0xad0] sm:$0xff]
    %v1211 = vld [vmem:[#allocation2 + $0xad8] sm:$0xff]
    %v1212 = vld [vmem:[#allocation2 + $0xae0] sm:$0xff]
    %v1213 = vld [vmem:[#allocation2 + $0xae8] sm:$0xff]
    %v1214 = vld [vmem:[#allocation2 + $0xaf0] sm:$0xff]
    %v1215 = vld [vmem:[#allocation2 + $0xaf8] sm:$0xff]
    %v1216 = vld [vmem:[#allocation2 + $0xb00] sm:$0xff]
    %v1217 = vld [vmem:[#allocation2 + $0xb08] sm:$0xff]
    %v1218 = vld [vmem:[#allocation2 + $0xb10] sm:$0xff]
    %v1219 = vld [vmem:[#allocation2 + $0xb18] sm:$0xff]
    %v1220 = vld [vmem:[#allocation2 + $0xb20] sm:$0xff]
    %v1221 = vld [vmem:[#allocation2 + $0xb28] sm:$0xff]
    %v1222 = vld [vmem:[#allocation2 + $0xb30] sm:$0xff]
    %v1223 = vld [vmem:[#allocation2 + $0xb38] sm:$0xff]
    %v1224 = vld [vmem:[#allocation2 + $0xb40] sm:$0xff]
    %v1225 = vld [vmem:[#allocation2 + $0xb48] sm:$0xff]
    %v1226 = vld [vmem:[#allocation2 + $0xb50] sm:$0xff]
    %v1227 = vld [vmem:[#allocation2 + $0xb58] sm:$0xff]
    %v1228 = vld [vmem:[#allocation2 + $0xb60] sm:$0xff]
    %v1229 = vld [vmem:[#allocation2 + $0xb68] sm:$0xff]
    %v1230 = vld [vmem:[#allocation2 + $0xb70] sm:$0xff]
    %v1231 = vld [vmem:[#allocation2 + $0xb78] sm:$0xff]
    %v1232 = vld [vmem:[#allocation2 + $0xb80] sm:$0xff]
    %v1233 = vld [vmem:[#allocation2 + $0xb88] sm:$0xff]
    %v1234 = vld [vmem:[#allocation2 + $0xb90] sm:$0xff]
    %v1235 = vld [vmem:[#allocation2 + $0xb98] sm:$0xff]
    %v1236 = vld [vmem:[#allocation2 + $0xba0] sm:$0xff]
    %v1237 = vld [vmem:[#allocation2 + $0xba8] sm:$0xff]
    %v1238 = vld [vmem:[#allocation2 + $0xbb0] sm:$0xff]
    %v1239 = vld [vmem:[#allocation2 + $0xbb8] sm:$0xff]
    %v1240 = vld [vmem:[#allocation2 + $0xbc0] sm:$0xff]
    %v1241 = vld [vmem:[#allocation2 + $0xbc8] sm:$0xff]
    %v1242 = vld [vmem:[#allocation2 + $0xbd0] sm:$0xff]
    %v1243 = vld [vmem:[#allocation2 + $0xbd8] sm:$0xff]
    %v1244 = vld [vmem:[#allocation2 + $0xbe0] sm:$0xff]
    %v1245 = vld [vmem:[#allocation2 + $0xbe8] sm:$0xff]
    %v1246 = vld [vmem:[#allocation2 + $0xbf0] sm:$0xff]
    %v1247 = vld [vmem:[#allocation2 + $0xbf8] sm:$0xff]
    %v1248 = vld [vmem:[#allocation2 + $0xc00] sm:$0xff]
    %v1249 = vld [vmem:[#allocation2 + $0xc08] sm:$0xff]
    %v1250 = vld [vmem:[#allocation2 + $0xc10] sm:$0xff]
    %v1251 = vld [vmem:[#allocation2 + $0xc18] sm:$0xff]
    %v1252 = vld [vmem:[#allocation2 + $0xc20] sm:$0xff]
    %v1253 = vld [vmem:[#allocation2 + $0xc28] sm:$0xff]
    %v1254 = vld [vmem:[#allocation2 + $0xc30] sm:$0xff]
    %v1255 = vld [vmem:[#allocation2 + $0xc38] sm:$0xff]
    %v1256 = vld [vmem:[#allocation2 + $0xc40] sm:$0xff]
    %v1257 = vld [vmem:[#allocation2 + $0xc48] sm:$0xff]
    %v1258 = vld [vmem:[#allocation2 + $0xc50] sm:$0xff]
    %v1259 = vld [vmem:[#allocation2 + $0xc58] sm:$0xff]
    %v1260 = vld [vmem:[#allocation2 + $0xc60] sm:$0xff]
    %v1261 = vld [vmem:[#allocation2 + $0xc68] sm:$0xff]
    %v1262 = vld [vmem:[#allocation2 + $0xc70] sm:$0xff]
    %v1263 = vld [vmem:[#allocation2 + $0xc78] sm:$0xff]
    %v1264 = vld [vmem:[#allocation2 + $0xc80] sm:$0xff]
    %v1265 = vld [vmem:[#allocation2 + $0xc88] sm:$0xff]
    %v1266 = vld [vmem:[#allocation2 + $0xc90] sm:$0xff]
    %v1267 = vld [vmem:[#allocation2 + $0xc98] sm:$0xff]
    %v1268 = vld [vmem:[#allocation2 + $0xca0] sm:$0xff]
    %v1269 = vld [vmem:[#allocation2 + $0xca8] sm:$0xff]
    %v1270 = vld [vmem:[#allocation2 + $0xcb0] sm:$0xff]
    %v1271 = vld [vmem:[#allocation2 + $0xcb8] sm:$0xff]
    %v1272 = vld [vmem:[#allocation2 + $0xcc0] sm:$0xff]
    %v1273 = vld [vmem:[#allocation2 + $0xcc8] sm:$0xff]
    %v1274 = vld [vmem:[#allocation2 + $0xcd0] sm:$0xff]
    %v1275 = vld [vmem:[#allocation2 + $0xcd8] sm:$0xff]
    %v1276 = vld [vmem:[#allocation2 + $0xce0] sm:$0xff]
    %v1277 = vld [vmem:[#allocation2 + $0xce8] sm:$0xff]
    %v1278 = vld [vmem:[#allocation2 + $0xcf0] sm:$0xff]
    %v1279 = vld [vmem:[#allocation2 + $0xcf8] sm:$0xff]
    %v1280 = vld [vmem:[#allocation2 + $0xd00] sm:$0xff]
    %v1281 = vld [vmem:[#allocation2 + $0xd08] sm:$0xff]
    %v1282 = vld [vmem:[#allocation2 + $0xd10] sm:$0xff]
    %v1283 = vld [vmem:[#allocation2 + $0xd18] sm:$0xff]
    %v1284 = vld [vmem:[#allocation2 + $0xd20] sm:$0xff]
    %v1285 = vld [vmem:[#allocation2 + $0xd28] sm:$0xff]
    %v1286 = vld [vmem:[#allocation2 + $0xd30] sm:$0xff]
    %v1287 = vld [vmem:[#allocation2 + $0xd38] sm:$0xff]
    %v1288 = vld [vmem:[#allocation2 + $0xd40] sm:$0xff]
    %v1289 = vld [vmem:[#allocation2 + $0xd48] sm:$0xff]
    %v1290 = vld [vmem:[#allocation2 + $0xd50] sm:$0xff]
    %v1291 = vld [vmem:[#allocation2 + $0xd58] sm:$0xff]
    %v1292 = vld [vmem:[#allocation2 + $0xd60] sm:$0xff]
    %v1293 = vld [vmem:[#allocation2 + $0xd68] sm:$0xff]
    %v1294 = vld [vmem:[#allocation2 + $0xd70] sm:$0xff]
    %v1295 = vld [vmem:[#allocation2 + $0xd78] sm:$0xff]
    %v1296 = vld [vmem:[#allocation2 + $0xd80] sm:$0xff]
    %v1297 = vld [vmem:[#allocation2 + $0xd88] sm:$0xff]
    %v1298 = vld [vmem:[#allocation2 + $0xd90] sm:$0xff]
    %v1299 = vld [vmem:[#allocation2 + $0xd98] sm:$0xff]
    %v1300 = vld [vmem:[#allocation2 + $0xda0] sm:$0xff]
    %v1301 = vld [vmem:[#allocation2 + $0xda8] sm:$0xff]
    %v1302 = vld [vmem:[#allocation2 + $0xdb0] sm:$0xff]
    %v1303 = vld [vmem:[#allocation2 + $0xdb8] sm:$0xff]
    %v1304 = vld [vmem:[#allocation2 + $0xdc0] sm:$0xff]
    %v1305 = vld [vmem:[#allocation2 + $0xdc8] sm:$0xff]
    %v1306 = vld [vmem:[#allocation2 + $0xdd0] sm:$0xff]
    %v1307 = vld [vmem:[#allocation2 + $0xdd8] sm:$0xff]
    %v1308 = vld [vmem:[#allocation2 + $0xde0] sm:$0xff]
    %v1309 = vld [vmem:[#allocation2 + $0xde8] sm:$0xff]
    %v1310 = vld [vmem:[#allocation2 + $0xdf0] sm:$0xff]
    %v1311 = vld [vmem:[#allocation2 + $0xdf8] sm:$0xff]
    %v1312 = vld [vmem:[#allocation2 + $0xe00] sm:$0xff]
    %v1313 = vld [vmem:[#allocation2 + $0xe08] sm:$0xff]
    %v1314 = vld [vmem:[#allocation2 + $0xe10] sm:$0xff]
    %v1315 = vld [vmem:[#allocation2 + $0xe18] sm:$0xff]
    %v1316 = vld [vmem:[#allocation2 + $0xe20] sm:$0xff]
    %v1317 = vld [vmem:[#allocation2 + $0xe28] sm:$0xff]
    %v1318 = vld [vmem:[#allocation2 + $0xe30] sm:$0xff]
    %v1319 = vld [vmem:[#allocation2 + $0xe38] sm:$0xff]
    %v1320 = vld [vmem:[#allocation2 + $0xe40] sm:$0xff]
    %v1321 = vld [vmem:[#allocation2 + $0xe48] sm:$0xff]
    %v1322 = vld [vmem:[#allocation2 + $0xe50] sm:$0xff]
    %v1323 = vld [vmem:[#allocation2 + $0xe58] sm:$0xff]
    %v1324 = vld [vmem:[#allocation2 + $0xe60] sm:$0xff]
    %v1325 = vld [vmem:[#allocation2 + $0xe68] sm:$0xff]
    %v1326 = vld [vmem:[#allocation2 + $0xe70] sm:$0xff]
    %v1327 = vld [vmem:[#allocation2 + $0xe78] sm:$0xff]
    %v1328 = vld [vmem:[#allocation2 + $0xe80] sm:$0xff]
    %v1329 = vld [vmem:[#allocation2 + $0xe88] sm:$0xff]
    %v1330 = vld [vmem:[#allocation2 + $0xe90] sm:$0xff]
    %v1331 = vld [vmem:[#allocation2 + $0xe98] sm:$0xff]
    %v1332 = vld [vmem:[#allocation2 + $0xea0] sm:$0xff]
    %v1333 = vld [vmem:[#allocation2 + $0xea8] sm:$0xff]
    %v1334 = vld [vmem:[#allocation2 + $0xeb0] sm:$0xff]
    %v1335 = vld [vmem:[#allocation2 + $0xeb8] sm:$0xff]
    %v1336 = vld [vmem:[#allocation2 + $0xec0] sm:$0xff]
    %v1337 = vld [vmem:[#allocation2 + $0xec8] sm:$0xff]
    %v1338 = vld [vmem:[#allocation2 + $0xed0] sm:$0xff]
    %v1339 = vld [vmem:[#allocation2 + $0xed8] sm:$0xff]
    %v1340 = vld [vmem:[#allocation2 + $0xee0] sm:$0xff]
    %v1341 = vld [vmem:[#allocation2 + $0xee8] sm:$0xff]
    %v1342 = vld [vmem:[#allocation2 + $0xef0] sm:$0xff]
    %v1343 = vld [vmem:[#allocation2 + $0xef8] sm:$0xff]
    %v1344 = vld [vmem:[#allocation2 + $0xf00] sm:$0xff]
    %v1345 = vld [vmem:[#allocation2 + $0xf08] sm:$0xff]
    %v1346 = vld [vmem:[#allocation2 + $0xf10] sm:$0xff]
    %v1347 = vld [vmem:[#allocation2 + $0xf18] sm:$0xff]
    %v1348 = vld [vmem:[#allocation2 + $0xf20] sm:$0xff]
    %v1349 = vld [vmem:[#allocation2 + $0xf28] sm:$0xff]
    %v1350 = vld [vmem:[#allocation2 + $0xf30] sm:$0xff]
    %v1351 = vld [vmem:[#allocation2 + $0xf38] sm:$0xff]
    %v1352 = vld [vmem:[#allocation2 + $0xf40] sm:$0xff]
    %v1353 = vld [vmem:[#allocation2 + $0xf48] sm:$0xff]
    %v1354 = vld [vmem:[#allocation2 + $0xf50] sm:$0xff]
    %v1355 = vld [vmem:[#allocation2 + $0xf58] sm:$0xff]
    %v1356 = vld [vmem:[#allocation2 + $0xf60] sm:$0xff]
    %v1357 = vld [vmem:[#allocation2 + $0xf68] sm:$0xff]
    %v1358 = vld [vmem:[#allocation2 + $0xf70] sm:$0xff]
    %v1359 = vld [vmem:[#allocation2 + $0xf78] sm:$0xff]
    %v1360 = vld [vmem:[#allocation2 + $0xf80] sm:$0xff]
    %v1361 = vld [vmem:[#allocation2 + $0xf88] sm:$0xff]
    %v1362 = vld [vmem:[#allocation2 + $0xf90] sm:$0xff]
    %v1363 = vld [vmem:[#allocation2 + $0xf98] sm:$0xff]
    %v1364 = vld [vmem:[#allocation2 + $0xfa0] sm:$0xff]
    %v1365 = vld [vmem:[#allocation2 + $0xfa8] sm:$0xff]
    %v1366 = vld [vmem:[#allocation2 + $0xfb0] sm:$0xff]
    %v1367 = vld [vmem:[#allocation2 + $0xfb8] sm:$0xff]
    %v1368 = vld [vmem:[#allocation2 + $0xfc0] sm:$0xff]
    %v1369 = vld [vmem:[#allocation2 + $0xfc8] sm:$0xff]
    %v1370 = vld [vmem:[#allocation2 + $0xfd0] sm:$0xff]
    %v1371 = vld [vmem:[#allocation2 + $0xfd8] sm:$0xff]
    %v1372 = vld [vmem:[#allocation2 + $0xfe0] sm:$0xff]
    %v1373 = vld [vmem:[#allocation2 + $0xfe8] sm:$0xff]
    %v1374 = vld [vmem:[#allocation2 + $0xff0] sm:$0xff]
    %v1375 = vld [vmem:[#allocation2 + $0xff8] sm:$0xff]
    %v1376 = vld [vmem:[#allocation2 + $0x1000] sm:$0xff]
    %v1377 = vld [vmem:[#allocation2 + $0x1008] sm:$0xff]
    %v1378 = vld [vmem:[#allocation2 + $0x1010] sm:$0xff]
    %v1379 = vld [vmem:[#allocation2 + $0x1018] sm:$0xff]
    %v1380 = vld [vmem:[#allocation2 + $0x1020] sm:$0xff]
    %v1381 = vld [vmem:[#allocation2 + $0x1028] sm:$0xff]
    %v1382 = vld [vmem:[#allocation2 + $0x1030] sm:$0xff]
    %v1383 = vld [vmem:[#allocation2 + $0x1038] sm:$0xff]
    %v1384 = vld [vmem:[#allocation2 + $0x1040] sm:$0xff]
    %v1385 = vld [vmem:[#allocation2 + $0x1048] sm:$0xff]
    %v1386 = vld [vmem:[#allocation2 + $0x1050] sm:$0xff]
    %v1387 = vld [vmem:[#allocation2 + $0x1058] sm:$0xff]
    %v1388 = vld [vmem:[#allocation2 + $0x1060] sm:$0xff]
    %v1389 = vld [vmem:[#allocation2 + $0x1068] sm:$0xff]
    %v1390 = vld [vmem:[#allocation2 + $0x1070] sm:$0xff]
    %v1391 = vld [vmem:[#allocation2 + $0x1078] sm:$0xff]
    %v1392 = vld [vmem:[#allocation2 + $0x1080] sm:$0xff]
    %v1393 = vld [vmem:[#allocation2 + $0x1088] sm:$0xff]
    %v1394 = vld [vmem:[#allocation2 + $0x1090] sm:$0xff]
    %v1395 = vld [vmem:[#allocation2 + $0x1098] sm:$0xff]
    %v1396 = vld [vmem:[#allocation2 + $0x10a0] sm:$0xff]
    %v1397 = vld [vmem:[#allocation2 + $0x10a8] sm:$0xff]
    %v1398 = vld [vmem:[#allocation2 + $0x10b0] sm:$0xff]
    %v1399 = vld [vmem:[#allocation2 + $0x10b8] sm:$0xff]
    %v1400 = vld [vmem:[#allocation2 + $0x10c0] sm:$0xff]
    %v1401 = vld [vmem:[#allocation2 + $0x10c8] sm:$0xff]
    %v1402 = vld [vmem:[#allocation2 + $0x10d0] sm:$0xff]
    %v1403 = vld [vmem:[#allocation2 + $0x10d8] sm:$0xff]
    %v1404 = vld [vmem:[#allocation2 + $0x10e0] sm:$0xff]
    %v1405 = vld [vmem:[#allocation2 + $0x10e8] sm:$0xff]
    %v1406 = vld [vmem:[#allocation2 + $0x10f0] sm:$0xff]
    %v1407 = vld [vmem:[#allocation2 + $0x10f8] sm:$0xff]
    %v1408 = vld [vmem:[#allocation2 + $0x1100] sm:$0xff]
    %v1409 = vld [vmem:[#allocation2 + $0x1108] sm:$0xff]
    %v1410 = vld [vmem:[#allocation2 + $0x1110] sm:$0xff]
    %v1411 = vld [vmem:[#allocation2 + $0x1118] sm:$0xff]
    %v1412 = vld [vmem:[#allocation2 + $0x1120] sm:$0xff]
    %v1413 = vld [vmem:[#allocation2 + $0x1128] sm:$0xff]
    %v1414 = vld [vmem:[#allocation2 + $0x1130] sm:$0xff]
    %v1415 = vld [vmem:[#allocation2 + $0x1138] sm:$0xff]
    %v1416 = vld [vmem:[#allocation2 + $0x1140] sm:$0xff]
    %v1417 = vld [vmem:[#allocation2 + $0x1148] sm:$0xff]
    %v1418 = vld [vmem:[#allocation2 + $0x1150] sm:$0xff]
    %v1419 = vld [vmem:[#allocation2 + $0x1158] sm:$0xff]
    %v1420 = vld [vmem:[#allocation2 + $0x1160] sm:$0xff]
    %v1421 = vld [vmem:[#allocation2 + $0x1168] sm:$0xff]
    %v1422 = vld [vmem:[#allocation2 + $0x1170] sm:$0xff]
    %v1423 = vld [vmem:[#allocation2 + $0x1178] sm:$0xff]
    %v1424 = vld [vmem:[#allocation2 + $0x1180] sm:$0xff]
    %v1425 = vld [vmem:[#allocation2 + $0x1188] sm:$0xff]
    %v1426 = vld [vmem:[#allocation2 + $0x1190] sm:$0xff]
    %v1427 = vld [vmem:[#allocation2 + $0x1198] sm:$0xff]
    %v1428 = vld [vmem:[#allocation2 + $0x11a0] sm:$0xff]
    %v1429 = vld [vmem:[#allocation2 + $0x11a8] sm:$0xff]
    %v1430 = vld [vmem:[#allocation2 + $0x11b0] sm:$0xff]
    %v1431 = vld [vmem:[#allocation2 + $0x11b8] sm:$0xff]
    %v1432 = vld [vmem:[#allocation2 + $0x11c0] sm:$0xff]
    %v1433 = vld [vmem:[#allocation2 + $0x11c8] sm:$0xff]
    %v1434 = vld [vmem:[#allocation2 + $0x11d0] sm:$0xff]
    %v1435 = vld [vmem:[#allocation2 + $0x11d8] sm:$0xff]
    %v1436 = vld [vmem:[#allocation2 + $0x11e0] sm:$0xff]
    %v1437 = vld [vmem:[#allocation2 + $0x11e8] sm:$0xff]
    %v1438 = vld [vmem:[#allocation2 + $0x11f0] sm:$0xff]
    %v1439 = vld [vmem:[#allocation2 + $0x11f8] sm:$0xff]
    %v1440 = vld [vmem:[#allocation2 + $0x1200] sm:$0xff]
    %v1441 = vld [vmem:[#allocation2 + $0x1208] sm:$0xff]
    %v1442 = vld [vmem:[#allocation2 + $0x1210] sm:$0xff]
    %v1443 = vld [vmem:[#allocation2 + $0x1218] sm:$0xff]
    %v1444 = vld [vmem:[#allocation2 + $0x1220] sm:$0xff]
    %v1445 = vld [vmem:[#allocation2 + $0x1228] sm:$0xff]
    %v1446 = vld [vmem:[#allocation2 + $0x1230] sm:$0xff]
    %v1447 = vld [vmem:[#allocation2 + $0x1238] sm:$0xff]
    %v1448 = vld [vmem:[#allocation2 + $0x1240] sm:$0xff]
    %v1449 = vld [vmem:[#allocation2 + $0x1248] sm:$0xff]
    %v1450 = vld [vmem:[#allocation2 + $0x1250] sm:$0xff]
    %v1451 = vld [vmem:[#allocation2 + $0x1258] sm:$0xff]
    %v1452 = vld [vmem:[#allocation2 + $0x1260] sm:$0xff]
    %v1453 = vld [vmem:[#allocation2 + $0x1268] sm:$0xff]
    %v1454 = vld [vmem:[#allocation2 + $0x1270] sm:$0xff]
    %v1455 = vld [vmem:[#allocation2 + $0x1278] sm:$0xff]
    %v1456 = vld [vmem:[#allocation2 + $0x1280] sm:$0xff]
    %v1457 = vld [vmem:[#allocation2 + $0x1288] sm:$0xff]
    %v1458 = vld [vmem:[#allocation2 + $0x1290] sm:$0xff]
    %v1459 = vld [vmem:[#allocation2 + $0x1298] sm:$0xff]
    %v1460 = vld [vmem:[#allocation2 + $0x12a0] sm:$0xff]
    %v1461 = vld [vmem:[#allocation2 + $0x12a8] sm:$0xff]
    %v1462 = vld [vmem:[#allocation2 + $0x12b0] sm:$0xff]
    %v1463 = vld [vmem:[#allocation2 + $0x12b8] sm:$0xff]
    %v1464 = vld [vmem:[#allocation2 + $0x12c0] sm:$0xff]
    %v1465 = vld [vmem:[#allocation2 + $0x12c8] sm:$0xff]
    %v1466 = vld [vmem:[#allocation2 + $0x12d0] sm:$0xff]
    %v1467 = vld [vmem:[#allocation2 + $0x12d8] sm:$0xff]
    %v1468 = vld [vmem:[#allocation2 + $0x12e0] sm:$0xff]
    %v1469 = vld [vmem:[#allocation2 + $0x12e8] sm:$0xff]
    %v1470 = vld [vmem:[#allocation2 + $0x12f0] sm:$0xff]
    %v1471 = vld [vmem:[#allocation2 + $0x12f8] sm:$0xff]
    %v1472 = vld [vmem:[#allocation2 + $0x1300] sm:$0xff]
    %v1473 = vld [vmem:[#allocation2 + $0x1308] sm:$0xff]
    %v1474 = vld [vmem:[#allocation2 + $0x1310] sm:$0xff]
    %v1475 = vld [vmem:[#allocation2 + $0x1318] sm:$0xff]
    %v1476 = vld [vmem:[#allocation2 + $0x1320] sm:$0xff]
    %v1477 = vld [vmem:[#allocation2 + $0x1328] sm:$0xff]
    %v1478 = vld [vmem:[#allocation2 + $0x1330] sm:$0xff]
    %v1479 = vld [vmem:[#allocation2 + $0x1338] sm:$0xff]
    %v1480 = vld [vmem:[#allocation2 + $0x1340] sm:$0xff]
    %v1481 = vld [vmem:[#allocation2 + $0x1348] sm:$0xff]
    %v1482 = vld [vmem:[#allocation2 + $0x1350] sm:$0xff]
    %v1483 = vld [vmem:[#allocation2 + $0x1358] sm:$0xff]
    %v1484 = vld [vmem:[#allocation2 + $0x1360] sm:$0xff]
    %v1485 = vld [vmem:[#allocation2 + $0x1368] sm:$0xff]
    %v1486 = vld [vmem:[#allocation2 + $0x1370] sm:$0xff]
    %v1487 = vld [vmem:[#allocation2 + $0x1378] sm:$0xff]
    %v1488 = vld [vmem:[#allocation2 + $0x1380] sm:$0xff]
    %v1489 = vld [vmem:[#allocation2 + $0x1388] sm:$0xff]
    %v1490 = vld [vmem:[#allocation2 + $0x1390] sm:$0xff]
    %v1491 = vld [vmem:[#allocation2 + $0x1398] sm:$0xff]
    %v1492 = vld [vmem:[#allocation2 + $0x13a0] sm:$0xff]
    %v1493 = vld [vmem:[#allocation2 + $0x13a8] sm:$0xff]
    %v1494 = vld [vmem:[#allocation2 + $0x13b0] sm:$0xff]
    %v1495 = vld [vmem:[#allocation2 + $0x13b8] sm:$0xff]
    %v1496 = vld [vmem:[#allocation2 + $0x13c0] sm:$0xff]
    %v1497 = vld [vmem:[#allocation2 + $0x13c8] sm:$0xff]
    %v1498 = vld [vmem:[#allocation2 + $0x13d0] sm:$0xff]
    %v1499 = vld [vmem:[#allocation2 + $0x13d8] sm:$0xff]
    %v1500 = vld [vmem:[#allocation2 + $0x13e0] sm:$0xff]
    %v1501 = vld [vmem:[#allocation2 + $0x13e8] sm:$0xff]
    %v1502 = vld [vmem:[#allocation2 + $0x13f0] sm:$0xff]
    %v1503 = vld [vmem:[#allocation2 + $0x13f8] sm:$0xff]
    %v1504 = vld [vmem:[#allocation2 + $0x1400] sm:$0xff]
    %v1505 = vld [vmem:[#allocation2 + $0x1408] sm:$0xff]
    %v1506 = vld [vmem:[#allocation2 + $0x1410] sm:$0xff]
    %v1507 = vld [vmem:[#allocation2 + $0x1418] sm:$0xff]
    %v1508 = vld [vmem:[#allocation2 + $0x1420] sm:$0xff]
    %v1509 = vld [vmem:[#allocation2 + $0x1428] sm:$0xff]
    %v1510 = vld [vmem:[#allocation2 + $0x1430] sm:$0xff]
    %v1511 = vld [vmem:[#allocation2 + $0x1438] sm:$0xff]
    %v1512 = vld [vmem:[#allocation2 + $0x1440] sm:$0xff]
    %v1513 = vld [vmem:[#allocation2 + $0x1448] sm:$0xff]
    %v1514 = vld [vmem:[#allocation2 + $0x1450] sm:$0xff]
    %v1515 = vld [vmem:[#allocation2 + $0x1458] sm:$0xff]
    %v1516 = vld [vmem:[#allocation2 + $0x1460] sm:$0xff]
    %v1517 = vld [vmem:[#allocation2 + $0x1468] sm:$0xff]
    %v1518 = vld [vmem:[#allocation2 + $0x1470] sm:$0xff]
    %v1519 = vld [vmem:[#allocation2 + $0x1478] sm:$0xff]
    %v1520 = vld [vmem:[#allocation2 + $0x1480] sm:$0xff]
    %v1521 = vld [vmem:[#allocation2 + $0x1488] sm:$0xff]
    %v1522 = vld [vmem:[#allocation2 + $0x1490] sm:$0xff]
    %v1523 = vld [vmem:[#allocation2 + $0x1498] sm:$0xff]
    %v1524 = vld [vmem:[#allocation2 + $0x14a0] sm:$0xff]
    %v1525 = vld [vmem:[#allocation2 + $0x14a8] sm:$0xff]
    %v1526 = vld [vmem:[#allocation2 + $0x14b0] sm:$0xff]
    %v1527 = vld [vmem:[#allocation2 + $0x14b8] sm:$0xff]
    %v1528 = vld [vmem:[#allocation2 + $0x14c0] sm:$0xff]
    %v1529 = vld [vmem:[#allocation2 + $0x14c8] sm:$0xff]
    %v1530 = vld [vmem:[#allocation2 + $0x14d0] sm:$0xff]
    %v1531 = vld [vmem:[#allocation2 + $0x14d8] sm:$0xff]
    %v1532 = vld [vmem:[#allocation2 + $0x14e0] sm:$0xff]
    %v1533 = vld [vmem:[#allocation2 + $0x14e8] sm:$0xff]
    %v1534 = vld [vmem:[#allocation2 + $0x14f0] sm:$0xff]
    %v1535 = vld [vmem:[#allocation2 + $0x14f8] sm:$0xff]
    %v1536 = vld [vmem:[#allocation2 + $0x1500] sm:$0xff]
    %v1537 = vld [vmem:[#allocation2 + $0x1508] sm:$0xff]
    %v1538 = vld [vmem:[#allocation2 + $0x1510] sm:$0xff]
    %v1539 = vld [vmem:[#allocation2 + $0x1518] sm:$0xff]
    %v1540 = vld [vmem:[#allocation2 + $0x1520] sm:$0xff]
    %v1541 = vld [vmem:[#allocation2 + $0x1528] sm:$0xff]
    %v1542 = vld [vmem:[#allocation2 + $0x1530] sm:$0xff]
    %v1543 = vld [vmem:[#allocation2 + $0x1538] sm:$0xff]
    %v1544 = vld [vmem:[#allocation2 + $0x1540] sm:$0xff]
    %v1545 = vld [vmem:[#allocation2 + $0x1548] sm:$0xff]
    %v1546 = vld [vmem:[#allocation2 + $0x1550] sm:$0xff]
    %v1547 = vld [vmem:[#allocation2 + $0x1558] sm:$0xff]
    %v1548 = vld [vmem:[#allocation2 + $0x1560] sm:$0xff]
    %v1549 = vld [vmem:[#allocation2 + $0x1568] sm:$0xff]
    %v1550 = vld [vmem:[#allocation2 + $0x1570] sm:$0xff]
    %v1551 = vld [vmem:[#allocation2 + $0x1578] sm:$0xff]
    %v1552 = vld [vmem:[#allocation2 + $0x1580] sm:$0xff]
    %v1553 = vld [vmem:[#allocation2 + $0x1588] sm:$0xff]
    %v1554 = vld [vmem:[#allocation2 + $0x1590] sm:$0xff]
    %v1555 = vld [vmem:[#allocation2 + $0x1598] sm:$0xff]
    %v1556 = vld [vmem:[#allocation2 + $0x15a0] sm:$0xff]
    %v1557 = vld [vmem:[#allocation2 + $0x15a8] sm:$0xff]
    %v1558 = vld [vmem:[#allocation2 + $0x15b0] sm:$0xff]
    %v1559 = vld [vmem:[#allocation2 + $0x15b8] sm:$0xff]
    %v1560 = vld [vmem:[#allocation2 + $0x15c0] sm:$0xff]
    %v1561 = vld [vmem:[#allocation2 + $0x15c8] sm:$0xff]
    %v1562 = vld [vmem:[#allocation2 + $0x15d0] sm:$0xff]
    %v1563 = vld [vmem:[#allocation2 + $0x15d8] sm:$0xff]
    %v1564 = vld [vmem:[#allocation2 + $0x15e0] sm:$0xff]
    %v1565 = vld [vmem:[#allocation2 + $0x15e8] sm:$0xff]
    %v1566 = vld [vmem:[#allocation2 + $0x15f0] sm:$0xff]
    %v1567 = vld [vmem:[#allocation2 + $0x15f8] sm:$0xff]
    %v1568 = vld [vmem:[#allocation2 + $0x1600] sm:$0xff]
    %v1569 = vld [vmem:[#allocation2 + $0x1608] sm:$0xff]
    %v1570 = vld [vmem:[#allocation2 + $0x1610] sm:$0xff]
    %v1571 = vld [vmem:[#allocation2 + $0x1618] sm:$0xff]
    %v1572 = vld [vmem:[#allocation2 + $0x1620] sm:$0xff]
    %v1573 = vld [vmem:[#allocation2 + $0x1628] sm:$0xff]
    %v1574 = vld [vmem:[#allocation2 + $0x1630] sm:$0xff]
    %v1575 = vld [vmem:[#allocation2 + $0x1638] sm:$0xff]
    %v1576 = vld [vmem:[#allocation2 + $0x1640] sm:$0xff]
    %v1577 = vld [vmem:[#allocation2 + $0x1648] sm:$0xff]
    %v1578 = vld [vmem:[#allocation2 + $0x1650] sm:$0xff]
    %v1579 = vld [vmem:[#allocation2 + $0x1658] sm:$0xff]
    %v1580 = vld [vmem:[#allocation2 + $0x1660] sm:$0xff]
    %v1581 = vld [vmem:[#allocation2 + $0x1668] sm:$0xff]
    %v1582 = vld [vmem:[#allocation2 + $0x1670] sm:$0xff]
    %v1583 = vld [vmem:[#allocation2 + $0x1678] sm:$0xff]
    %v1584 = vld [vmem:[#allocation2 + $0x1680] sm:$0xff]
    %v1585 = vld [vmem:[#allocation2 + $0x1688] sm:$0xff]
    %v1586 = vld [vmem:[#allocation2 + $0x1690] sm:$0xff]
    %v1587 = vld [vmem:[#allocation2 + $0x1698] sm:$0xff]
    %v1588 = vld [vmem:[#allocation2 + $0x16a0] sm:$0xff]
    %v1589 = vld [vmem:[#allocation2 + $0x16a8] sm:$0xff]
    %v1590 = vld [vmem:[#allocation2 + $0x16b0] sm:$0xff]
    %v1591 = vld [vmem:[#allocation2 + $0x16b8] sm:$0xff]
    %v1592 = vld [vmem:[#allocation2 + $0x16c0] sm:$0xff]
    %v1593 = vld [vmem:[#allocation2 + $0x16c8] sm:$0xff]
    %v1594 = vld [vmem:[#allocation2 + $0x16d0] sm:$0xff]
    %v1595 = vld [vmem:[#allocation2 + $0x16d8] sm:$0xff]
    %v1596 = vld [vmem:[#allocation2 + $0x16e0] sm:$0xff]
    %v1597 = vld [vmem:[#allocation2 + $0x16e8] sm:$0xff]
    %v1598 = vld [vmem:[#allocation2 + $0x16f0] sm:$0xff]
    %v1599 = vld [vmem:[#allocation2 + $0x16f8] sm:$0xff]
    %v1600 = vld [vmem:[#allocation2 + $0x1700] sm:$0xff]
    %v1601 = vld [vmem:[#allocation2 + $0x1708] sm:$0xff]
    %v1602 = vld [vmem:[#allocation2 + $0x1710] sm:$0xff]
    %v1603 = vld [vmem:[#allocation2 + $0x1718] sm:$0xff]
    %v1604 = vld [vmem:[#allocation2 + $0x1720] sm:$0xff]
    %v1605 = vld [vmem:[#allocation2 + $0x1728] sm:$0xff]
    %v1606 = vld [vmem:[#allocation2 + $0x1730] sm:$0xff]
    %v1607 = vld [vmem:[#allocation2 + $0x1738] sm:$0xff]
    %v1608 = vld [vmem:[#allocation2 + $0x1740] sm:$0xff]
    %v1609 = vld [vmem:[#allocation2 + $0x1748] sm:$0xff]
    %v1610 = vld [vmem:[#allocation2 + $0x1750] sm:$0xff]
    %v1611 = vld [vmem:[#allocation2 + $0x1758] sm:$0xff]
    %v1612 = vld [vmem:[#allocation2 + $0x1760] sm:$0xff]
    %v1613 = vld [vmem:[#allocation2 + $0x1768] sm:$0xff]
    %v1614 = vld [vmem:[#allocation2 + $0x1770] sm:$0xff]
    %v1615 = vld [vmem:[#allocation2 + $0x1778] sm:$0xff]
    %v1616 = vld [vmem:[#allocation2 + $0x1780] sm:$0xff]
    %v1617 = vld [vmem:[#allocation2 + $0x1788] sm:$0xff]
    %v1618 = vld [vmem:[#allocation2 + $0x1790] sm:$0xff]
    %v1619 = vld [vmem:[#allocation2 + $0x1798] sm:$0xff]
    %v1620 = vld [vmem:[#allocation2 + $0x17a0] sm:$0xff]
    %v1621 = vld [vmem:[#allocation2 + $0x17a8] sm:$0xff]
    %v1622 = vld [vmem:[#allocation2 + $0x17b0] sm:$0xff]
    %v1623 = vld [vmem:[#allocation2 + $0x17b8] sm:$0xff]
    %v1624 = vld [vmem:[#allocation2 + $0x17c0] sm:$0xff]
    %v1625 = vld [vmem:[#allocation2 + $0x17c8] sm:$0xff]
    %v1626 = vld [vmem:[#allocation2 + $0x17d0] sm:$0xff]
    %v1627 = vld [vmem:[#allocation2 + $0x17d8] sm:$0xff]
    %v1628 = vld [vmem:[#allocation2 + $0x17e0] sm:$0xff]
    %v1629 = vld [vmem:[#allocation2 + $0x17e8] sm:$0xff]
    %v1630 = vld [vmem:[#allocation2 + $0x17f0] sm:$0xff]
    %v1631 = vld [vmem:[#allocation2 + $0x17f8] sm:$0xff]
    %v1632 = vld [vmem:[#allocation2 + $0x1800] sm:$0xff]
    %v1633 = vld [vmem:[#allocation2 + $0x1808] sm:$0xff]
    %v1634 = vld [vmem:[#allocation2 + $0x1810] sm:$0xff]
    %v1635 = vld [vmem:[#allocation2 + $0x1818] sm:$0xff]
    %v1636 = vld [vmem:[#allocation2 + $0x1820] sm:$0xff]
    %v1637 = vld [vmem:[#allocation2 + $0x1828] sm:$0xff]
    %v1638 = vld [vmem:[#allocation2 + $0x1830] sm:$0xff]
    %v1639 = vld [vmem:[#allocation2 + $0x1838] sm:$0xff]
    %v1640 = vld [vmem:[#allocation2 + $0x1840] sm:$0xff]
    %v1641 = vld [vmem:[#allocation2 + $0x1848] sm:$0xff]
    %v1642 = vld [vmem:[#allocation2 + $0x1850] sm:$0xff]
    %v1643 = vld [vmem:[#allocation2 + $0x1858] sm:$0xff]
    %v1644 = vld [vmem:[#allocation2 + $0x1860] sm:$0xff]
    %v1645 = vld [vmem:[#allocation2 + $0x1868] sm:$0xff]
    %v1646 = vld [vmem:[#allocation2 + $0x1870] sm:$0xff]
    %v1647 = vld [vmem:[#allocation2 + $0x1878] sm:$0xff]
    %v1648 = vld [vmem:[#allocation2 + $0x1880] sm:$0xff]
    %v1649 = vld [vmem:[#allocation2 + $0x1888] sm:$0xff]
    %v1650 = vld [vmem:[#allocation2 + $0x1890] sm:$0xff]
    %v1651 = vld [vmem:[#allocation2 + $0x1898] sm:$0xff]
    %v1652 = vld [vmem:[#allocation2 + $0x18a0] sm:$0xff]
    %v1653 = vld [vmem:[#allocation2 + $0x18a8] sm:$0xff]
    %v1654 = vld [vmem:[#allocation2 + $0x18b0] sm:$0xff]
    %v1655 = vld [vmem:[#allocation2 + $0x18b8] sm:$0xff]
    %v1656 = vld [vmem:[#allocation2 + $0x18c0] sm:$0xff]
    %v1657 = vld [vmem:[#allocation2 + $0x18c8] sm:$0xff]
    %v1658 = vld [vmem:[#allocation2 + $0x18d0] sm:$0xff]
    %v1659 = vld [vmem:[#allocation2 + $0x18d8] sm:$0xff]
    %v1660 = vld [vmem:[#allocation2 + $0x18e0] sm:$0xff]
    %v1661 = vld [vmem:[#allocation2 + $0x18e8] sm:$0xff]
    %v1662 = vld [vmem:[#allocation2 + $0x18f0] sm:$0xff]
    %v1663 = vld [vmem:[#allocation2 + $0x18f8] sm:$0xff]
    %v1664 = vld [vmem:[#allocation2 + $0x1900] sm:$0xff]
    %v1665 = vld [vmem:[#allocation2 + $0x1908] sm:$0xff]
    %v1666 = vld [vmem:[#allocation2 + $0x1910] sm:$0xff]
    %v1667 = vld [vmem:[#allocation2 + $0x1918] sm:$0xff]
    %v1668 = vld [vmem:[#allocation2 + $0x1920] sm:$0xff]
    %v1669 = vld [vmem:[#allocation2 + $0x1928] sm:$0xff]
    %v1670 = vld [vmem:[#allocation2 + $0x1930] sm:$0xff]
    %v1671 = vld [vmem:[#allocation2 + $0x1938] sm:$0xff]
    %v1672 = vld [vmem:[#allocation2 + $0x1940] sm:$0xff]
    %v1673 = vld [vmem:[#allocation2 + $0x1948] sm:$0xff]
    %v1674 = vld [vmem:[#allocation2 + $0x1950] sm:$0xff]
    %v1675 = vld [vmem:[#allocation2 + $0x1958] sm:$0xff]
    %v1676 = vld [vmem:[#allocation2 + $0x1960] sm:$0xff]
    %v1677 = vld [vmem:[#allocation2 + $0x1968] sm:$0xff]
    %v1678 = vld [vmem:[#allocation2 + $0x1970] sm:$0xff]
    %v1679 = vld [vmem:[#allocation2 + $0x1978] sm:$0xff]
    %v1680 = vld [vmem:[#allocation2 + $0x1980] sm:$0xff]
    %v1681 = vld [vmem:[#allocation2 + $0x1988] sm:$0xff]
    %v1682 = vld [vmem:[#allocation2 + $0x1990] sm:$0xff]
    %v1683 = vld [vmem:[#allocation2 + $0x1998] sm:$0xff]
    %v1684 = vld [vmem:[#allocation2 + $0x19a0] sm:$0xff]
    %v1685 = vld [vmem:[#allocation2 + $0x19a8] sm:$0xff]
    %v1686 = vld [vmem:[#allocation2 + $0x19b0] sm:$0xff]
    %v1687 = vld [vmem:[#allocation2 + $0x19b8] sm:$0xff]
    %v1688 = vld [vmem:[#allocation2 + $0x19c0] sm:$0xff]
    %v1689 = vld [vmem:[#allocation2 + $0x19c8] sm:$0xff]
    %v1690 = vld [vmem:[#allocation2 + $0x19d0] sm:$0xff]
    %v1691 = vld [vmem:[#allocation2 + $0x19d8] sm:$0xff]
    %v1692 = vld [vmem:[#allocation2 + $0x19e0] sm:$0xff]
    %v1693 = vld [vmem:[#allocation2 + $0x19e8] sm:$0xff]
    %v1694 = vld [vmem:[#allocation2 + $0x19f0] sm:$0xff]
    %v1695 = vld [vmem:[#allocation2 + $0x19f8] sm:$0xff]
    %v1696 = vld [vmem:[#allocation2 + $0x1a00] sm:$0xff]
    %v1697 = vld [vmem:[#allocation2 + $0x1a08] sm:$0xff]
    %v1698 = vld [vmem:[#allocation2 + $0x1a10] sm:$0xff]
    %v1699 = vld [vmem:[#allocation2 + $0x1a18] sm:$0xff]
    %v1700 = vld [vmem:[#allocation2 + $0x1a20] sm:$0xff]
    %v1701 = vld [vmem:[#allocation2 + $0x1a28] sm:$0xff]
    %v1702 = vld [vmem:[#allocation2 + $0x1a30] sm:$0xff]
    %v1703 = vld [vmem:[#allocation2 + $0x1a38] sm:$0xff]
    %v1704 = vld [vmem:[#allocation2 + $0x1a40] sm:$0xff]
    %v1705 = vld [vmem:[#allocation2 + $0x1a48] sm:$0xff]
    %v1706 = vld [vmem:[#allocation2 + $0x1a50] sm:$0xff]
    %v1707 = vld [vmem:[#allocation2 + $0x1a58] sm:$0xff]
    %v1708 = vld [vmem:[#allocation2 + $0x1a60] sm:$0xff]
    %v1709 = vld [vmem:[#allocation2 + $0x1a68] sm:$0xff]
    %v1710 = vld [vmem:[#allocation2 + $0x1a70] sm:$0xff]
    %v1711 = vld [vmem:[#allocation2 + $0x1a78] sm:$0xff]
    %v1712 = vld [vmem:[#allocation2 + $0x1a80] sm:$0xff]
    %v1713 = vld [vmem:[#allocation2 + $0x1a88] sm:$0xff]
    %v1714 = vld [vmem:[#allocation2 + $0x1a90] sm:$0xff]
    %v1715 = vld [vmem:[#allocation2 + $0x1a98] sm:$0xff]
    %v1716 = vld [vmem:[#allocation2 + $0x1aa0] sm:$0xff]
    %v1717 = vld [vmem:[#allocation2 + $0x1aa8] sm:$0xff]
    %v1718 = vld [vmem:[#allocation2 + $0x1ab0] sm:$0xff]
    %v1719 = vld [vmem:[#allocation2 + $0x1ab8] sm:$0xff]
    %v1720 = vld [vmem:[#allocation2 + $0x1ac0] sm:$0xff]
    %v1721 = vld [vmem:[#allocation2 + $0x1ac8] sm:$0xff]
    %v1722 = vld [vmem:[#allocation2 + $0x1ad0] sm:$0xff]
    %v1723 = vld [vmem:[#allocation2 + $0x1ad8] sm:$0xff]
    %v1724 = vld [vmem:[#allocation2 + $0x1ae0] sm:$0xff]
    %v1725 = vld [vmem:[#allocation2 + $0x1ae8] sm:$0xff]
    %v1726 = vld [vmem:[#allocation2 + $0x1af0] sm:$0xff]
    %v1727 = vld [vmem:[#allocation2 + $0x1af8] sm:$0xff]
    %v1728 = vld [vmem:[#allocation2 + $0x1b00] sm:$0xff]
    %v1729 = vld [vmem:[#allocation2 + $0x1b08] sm:$0xff]
    %v1730 = vld [vmem:[#allocation2 + $0x1b10] sm:$0xff]
    %v1731 = vld [vmem:[#allocation2 + $0x1b18] sm:$0xff]
    %v1732 = vld [vmem:[#allocation2 + $0x1b20] sm:$0xff]
    %v1733 = vld [vmem:[#allocation2 + $0x1b28] sm:$0xff]
    %v1734 = vld [vmem:[#allocation2 + $0x1b30] sm:$0xff]
    %v1735 = vld [vmem:[#allocation2 + $0x1b38] sm:$0xff]
    %v1736 = vld [vmem:[#allocation2 + $0x1b40] sm:$0xff]
    %v1737 = vld [vmem:[#allocation2 + $0x1b48] sm:$0xff]
    %v1738 = vld [vmem:[#allocation2 + $0x1b50] sm:$0xff]
    %v1739 = vld [vmem:[#allocation2 + $0x1b58] sm:$0xff]
    %v1740 = vld [vmem:[#allocation2 + $0x1b60] sm:$0xff]
    %v1741 = vld [vmem:[#allocation2 + $0x1b68] sm:$0xff]
    %v1742 = vld [vmem:[#allocation2 + $0x1b70] sm:$0xff]
    %v1743 = vld [vmem:[#allocation2 + $0x1b78] sm:$0xff]
    %v1744 = vld [vmem:[#allocation2 + $0x1b80] sm:$0xff]
    %v1745 = vld [vmem:[#allocation2 + $0x1b88] sm:$0xff]
    %v1746 = vld [vmem:[#allocation2 + $0x1b90] sm:$0xff]
    %v1747 = vld [vmem:[#allocation2 + $0x1b98] sm:$0xff]
    %v1748 = vld [vmem:[#allocation2 + $0x1ba0] sm:$0xff]
    %v1749 = vld [vmem:[#allocation2 + $0x1ba8] sm:$0xff]
    %v1750 = vld [vmem:[#allocation2 + $0x1bb0] sm:$0xff]
    %v1751 = vld [vmem:[#allocation2 + $0x1bb8] sm:$0xff]
    %v1752 = vld [vmem:[#allocation2 + $0x1bc0] sm:$0xff]
    %v1753 = vld [vmem:[#allocation2 + $0x1bc8] sm:$0xff]
    %v1754 = vld [vmem:[#allocation2 + $0x1bd0] sm:$0xff]
    %v1755 = vld [vmem:[#allocation2 + $0x1bd8] sm:$0xff]
    %v1756 = vld [vmem:[#allocation2 + $0x1be0] sm:$0xff]
    %v1757 = vld [vmem:[#allocation2 + $0x1be8] sm:$0xff]
    %v1758 = vld [vmem:[#allocation2 + $0x1bf0] sm:$0xff]
    %v1759 = vld [vmem:[#allocation2 + $0x1bf8] sm:$0xff]
    %v1760 = vld [vmem:[#allocation2 + $0x1c00] sm:$0xff]
    %v1761 = vld [vmem:[#allocation2 + $0x1c08] sm:$0xff]
    %v1762 = vld [vmem:[#allocation2 + $0x1c10] sm:$0xff]
    %v1763 = vld [vmem:[#allocation2 + $0x1c18] sm:$0xff]
    %v1764 = vld [vmem:[#allocation2 + $0x1c20] sm:$0xff]
    %v1765 = vld [vmem:[#allocation2 + $0x1c28] sm:$0xff]
    %v1766 = vld [vmem:[#allocation2 + $0x1c30] sm:$0xff]
    %v1767 = vld [vmem:[#allocation2 + $0x1c38] sm:$0xff]
    %v1768 = vld [vmem:[#allocation2 + $0x1c40] sm:$0xff]
    %v1769 = vld [vmem:[#allocation2 + $0x1c48] sm:$0xff]
    %v1770 = vld [vmem:[#allocation2 + $0x1c50] sm:$0xff]
    %v1771 = vld [vmem:[#allocation2 + $0x1c58] sm:$0xff]
    %v1772 = vld [vmem:[#allocation2 + $0x1c60] sm:$0xff]
    %v1773 = vld [vmem:[#allocation2 + $0x1c68] sm:$0xff]
    %v1774 = vld [vmem:[#allocation2 + $0x1c70] sm:$0xff]
    %v1775 = vld [vmem:[#allocation2 + $0x1c78] sm:$0xff]
    %v1776 = vld [vmem:[#allocation2 + $0x1c80] sm:$0xff]
    %v1777 = vld [vmem:[#allocation2 + $0x1c88] sm:$0xff]
    %v1778 = vld [vmem:[#allocation2 + $0x1c90] sm:$0xff]
    %v1779 = vld [vmem:[#allocation2 + $0x1c98] sm:$0xff]
    %v1780 = vld [vmem:[#allocation2 + $0x1ca0] sm:$0xff]
    %v1781 = vld [vmem:[#allocation2 + $0x1ca8] sm:$0xff]
    %v1782 = vld [vmem:[#allocation2 + $0x1cb0] sm:$0xff]
    %v1783 = vld [vmem:[#allocation2 + $0x1cb8] sm:$0xff]
    %v1784 = vld [vmem:[#allocation2 + $0x1cc0] sm:$0xff]
    %v1785 = vld [vmem:[#allocation2 + $0x1cc8] sm:$0xff]
    %v1786 = vld [vmem:[#allocation2 + $0x1cd0] sm:$0xff]
    %v1787 = vld [vmem:[#allocation2 + $0x1cd8] sm:$0xff]
    %v1788 = vld [vmem:[#allocation2 + $0x1ce0] sm:$0xff]
    %v1789 = vld [vmem:[#allocation2 + $0x1ce8] sm:$0xff]
    %v1790 = vld [vmem:[#allocation2 + $0x1cf0] sm:$0xff]
    %v1791 = vld [vmem:[#allocation2 + $0x1cf8] sm:$0xff]
    %v1792 = vld [vmem:[#allocation2 + $0x1d00] sm:$0xff]
    %v1793 = vld [vmem:[#allocation2 + $0x1d08] sm:$0xff]
    %v1794 = vld [vmem:[#allocation2 + $0x1d10] sm:$0xff]
    %v1795 = vld [vmem:[#allocation2 + $0x1d18] sm:$0xff]
    %v1796 = vld [vmem:[#allocation2 + $0x1d20] sm:$0xff]
    %v1797 = vld [vmem:[#allocation2 + $0x1d28] sm:$0xff]
    %v1798 = vld [vmem:[#allocation2 + $0x1d30] sm:$0xff]
    %v1799 = vld [vmem:[#allocation2 + $0x1d38] sm:$0xff]
    %v1800 = vld [vmem:[#allocation2 + $0x1d40] sm:$0xff]
    %v1801 = vld [vmem:[#allocation2 + $0x1d48] sm:$0xff]
    %v1802 = vld [vmem:[#allocation2 + $0x1d50] sm:$0xff]
    %v1803 = vld [vmem:[#allocation2 + $0x1d58] sm:$0xff]
    %v1804 = vld [vmem:[#allocation2 + $0x1d60] sm:$0xff]
    %v1805 = vld [vmem:[#allocation2 + $0x1d68] sm:$0xff]
    %v1806 = vld [vmem:[#allocation2 + $0x1d70] sm:$0xff]
    %v1807 = vld [vmem:[#allocation2 + $0x1d78] sm:$0xff]
    %v1808 = vld [vmem:[#allocation2 + $0x1d80] sm:$0xff]
    %v1809 = vld [vmem:[#allocation2 + $0x1d88] sm:$0xff]
    %v1810 = vld [vmem:[#allocation2 + $0x1d90] sm:$0xff]
    %v1811 = vld [vmem:[#allocation2 + $0x1d98] sm:$0xff]
    %v1812 = vld [vmem:[#allocation2 + $0x1da0] sm:$0xff]
    %v1813 = vld [vmem:[#allocation2 + $0x1da8] sm:$0xff]
    %v1814 = vld [vmem:[#allocation2 + $0x1db0] sm:$0xff]
    %v1815 = vld [vmem:[#allocation2 + $0x1db8] sm:$0xff]
    %v1816 = vld [vmem:[#allocation2 + $0x1dc0] sm:$0xff]
    %v1817 = vld [vmem:[#allocation2 + $0x1dc8] sm:$0xff]
    %v1818 = vld [vmem:[#allocation2 + $0x1dd0] sm:$0xff]
    %v1819 = vld [vmem:[#allocation2 + $0x1dd8] sm:$0xff]
    %v1820 = vld [vmem:[#allocation2 + $0x1de0] sm:$0xff]
    %v1821 = vld [vmem:[#allocation2 + $0x1de8] sm:$0xff]
    %v1822 = vld [vmem:[#allocation2 + $0x1df0] sm:$0xff]
    %v1823 = vld [vmem:[#allocation2 + $0x1df8] sm:$0xff]
    %v1824 = vld [vmem:[#allocation2 + $0x1e00] sm:$0xff]
    %v1825 = vld [vmem:[#allocation2 + $0x1e08] sm:$0xff]
    %v1826 = vld [vmem:[#allocation2 + $0x1e10] sm:$0xff]
    %v1827 = vld [vmem:[#allocation2 + $0x1e18] sm:$0xff]
    %v1828 = vld [vmem:[#allocation2 + $0x1e20] sm:$0xff]
    %v1829 = vld [vmem:[#allocation2 + $0x1e28] sm:$0xff]
    %v1830 = vld [vmem:[#allocation2 + $0x1e30] sm:$0xff]
    %v1831 = vld [vmem:[#allocation2 + $0x1e38] sm:$0xff]
    %v1832 = vld [vmem:[#allocation2 + $0x1e40] sm:$0xff]
    %v1833 = vld [vmem:[#allocation2 + $0x1e48] sm:$0xff]
    %v1834 = vld [vmem:[#allocation2 + $0x1e50] sm:$0xff]
    %v1835 = vld [vmem:[#allocation2 + $0x1e58] sm:$0xff]
    %v1836 = vld [vmem:[#allocation2 + $0x1e60] sm:$0xff]
    %v1837 = vld [vmem:[#allocation2 + $0x1e68] sm:$0xff]
    %v1838 = vld [vmem:[#allocation2 + $0x1e70] sm:$0xff]
    %v1839 = vld [vmem:[#allocation2 + $0x1e78] sm:$0xff]
    %v1840 = vld [vmem:[#allocation2 + $0x1e80] sm:$0xff]
    %v1841 = vld [vmem:[#allocation2 + $0x1e88] sm:$0xff]
    %v1842 = vld [vmem:[#allocation2 + $0x1e90] sm:$0xff]
    %v1843 = vld [vmem:[#allocation2 + $0x1e98] sm:$0xff]
    %v1844 = vld [vmem:[#allocation2 + $0x1ea0] sm:$0xff]
    %v1845 = vld [vmem:[#allocation2 + $0x1ea8] sm:$0xff]
    %v1846 = vld [vmem:[#allocation2 + $0x1eb0] sm:$0xff]
    %v1847 = vld [vmem:[#allocation2 + $0x1eb8] sm:$0xff]
    %v1848 = vld [vmem:[#allocation2 + $0x1ec0] sm:$0xff]
    %v1849 = vld [vmem:[#allocation2 + $0x1ec8] sm:$0xff]
    %v1850 = vld [vmem:[#allocation2 + $0x1ed0] sm:$0xff]
    %v1851 = vld [vmem:[#allocation2 + $0x1ed8] sm:$0xff]
    %v1852 = vld [vmem:[#allocation2 + $0x1ee0] sm:$0xff]
    %v1853 = vld [vmem:[#allocation2 + $0x1ee8] sm:$0xff]
    %v1854 = vld [vmem:[#allocation2 + $0x1ef0] sm:$0xff]
    %v1855 = vld [vmem:[#allocation2 + $0x1ef8] sm:$0xff]
    %v1856 = vld [vmem:[#allocation2 + $0x1f00] sm:$0xff]
    %v1857 = vld [vmem:[#allocation2 + $0x1f08] sm:$0xff]
    %v1858 = vld [vmem:[#allocation2 + $0x1f10] sm:$0xff]
    %v1859 = vld [vmem:[#allocation2 + $0x1f18] sm:$0xff]
    %v1860 = vld [vmem:[#allocation2 + $0x1f20] sm:$0xff]
    %v1861 = vld [vmem:[#allocation2 + $0x1f28] sm:$0xff]
    %v1862 = vld [vmem:[#allocation2 + $0x1f30] sm:$0xff]
    %v1863 = vld [vmem:[#allocation2 + $0x1f38] sm:$0xff]
    %v1864 = vld [vmem:[#allocation2 + $0x1f40] sm:$0xff]
    %v1865 = vld [vmem:[#allocation2 + $0x1f48] sm:$0xff]
    %v1866 = vld [vmem:[#allocation2 + $0x1f50] sm:$0xff]
    %v1867 = vld [vmem:[#allocation2 + $0x1f58] sm:$0xff]
    %v1868 = vld [vmem:[#allocation2 + $0x1f60] sm:$0xff]
    %v1869 = vld [vmem:[#allocation2 + $0x1f68] sm:$0xff]
    %v1870 = vld [vmem:[#allocation2 + $0x1f70] sm:$0xff]
    %v1871 = vld [vmem:[#allocation2 + $0x1f78] sm:$0xff]
    %v1872 = vld [vmem:[#allocation2 + $0x1f80] sm:$0xff]
    %v1873 = vld [vmem:[#allocation2 + $0x1f88] sm:$0xff]
    %v1874 = vld [vmem:[#allocation2 + $0x1f90] sm:$0xff]
    %v1875 = vld [vmem:[#allocation2 + $0x1f98] sm:$0xff]
    %v1876 = vld [vmem:[#allocation2 + $0x1fa0] sm:$0xff]
    %v1877 = vld [vmem:[#allocation2 + $0x1fa8] sm:$0xff]
    %v1878 = vld [vmem:[#allocation2 + $0x1fb0] sm:$0xff]
    %v1879 = vld [vmem:[#allocation2 + $0x1fb8] sm:$0xff]
    %v1880 = vld [vmem:[#allocation2 + $0x1fc0] sm:$0xff]
    %v1881 = vld [vmem:[#allocation2 + $0x1fc8] sm:$0xff]
    %v1882 = vld [vmem:[#allocation2 + $0x1fd0] sm:$0xff]
    %v1883 = vld [vmem:[#allocation2 + $0x1fd8] sm:$0xff]
    %v1884 = vld [vmem:[#allocation2 + $0x1fe0] sm:$0xff]
    %v1885 = vld [vmem:[#allocation2 + $0x1fe8] sm:$0xff]
    %v1886 = vld [vmem:[#allocation2 + $0x1ff0] sm:$0xff]
    %v1887 = vld [vmem:[#allocation2 + $0x1ff8] sm:$0xff]
    %v1888 = vld [vmem:[#allocation9] sm:$0xff]
    %v1890 = vlaneseq
    %v1891 = vshrl.u32 %v1890, 7
    %v1892 = vsub.s32 0, %v1891
    %v1893 = vrot.slane %v1888, %v1892
    %v1894 = vlaneseq
    %v1895 = vshrl.u32 %v1894, 7
    %v1896 = vsub.s32 1, %v1895
    %v1897 = vrot.slane %v1888, %v1896
    %v1898 = vlaneseq
    %v1899 = vshrl.u32 %v1898, 7
    %v1900 = vsub.s32 2, %v1899
    %v1901 = vrot.slane %v1888, %v1900
    %v1902 = vlaneseq
    %v1903 = vshrl.u32 %v1902, 7
    %v1904 = vsub.s32 3, %v1903
    %v1905 = vrot.slane %v1888, %v1904
    %v1906 = vlaneseq
    %v1907 = vshrl.u32 %v1906, 7
    %v1908 = vsub.s32 4, %v1907
    %v1909 = vrot.slane %v1888, %v1908
    %v1910 = vlaneseq
    %v1911 = vshrl.u32 %v1910, 7
    %v1912 = vsub.s32 5, %v1911
    %v1913 = vrot.slane %v1888, %v1912
    %v1914 = vlaneseq
    %v1915 = vshrl.u32 %v1914, 7
    %v1916 = vsub.s32 6, %v1915
    %v1917 = vrot.slane %v1888, %v1916
    %v1918 = vlaneseq
    %v1919 = vshrl.u32 %v1918, 7
    %v1920 = vsub.s32 7, %v1919
    %v1921 = vrot.slane %v1888, %v1920
    %1930 = vmatprep.subr.bf16.mxu0 %v865
    %1931 = vmatpush1.bf16.msra.mxu0 %v864
    %1932 = vmatprep.subr.bf16.mxu0 %v873
    %1933 = vmatpush1.bf16.msra.mxu0 %v872
    %1934 = vmatprep.subr.bf16.mxu0 %v881
    %1935 = vmatpush1.bf16.msra.mxu0 %v880
    %1936 = vmatprep.subr.bf16.mxu0 %v889
    %1937 = vmatpush1.bf16.msra.mxu0 %v888
    %1938 = vmatprep.subr.bf16.mxu0 %v897
    %1939 = vmatpush1.bf16.msra.mxu0 %v896
    %1940 = vmatprep.subr.bf16.mxu0 %v905
    %1941 = vmatpush1.bf16.msra.mxu0 %v904
    %1942 = vmatprep.subr.bf16.mxu0 %v913
    %1943 = vmatpush1.bf16.msra.mxu0 %v912
    %1944 = vmatprep.subr.bf16.mxu0 %v921
    %1945 = vmatpush1.bf16.msra.mxu0 %v920
    %1946 = vmatprep.subr.bf16.mxu0 %v929
    %1947 = vmatpush1.bf16.msra.mxu0 %v928
    %1948 = vmatprep.subr.bf16.mxu0 %v937
    %1949 = vmatpush1.bf16.msra.mxu0 %v936
    %1950 = vmatprep.subr.bf16.mxu0 %v945
    %1951 = vmatpush1.bf16.msra.mxu0 %v944
    %1952 = vmatprep.subr.bf16.mxu0 %v953
    %1953 = vmatpush1.bf16.msra.mxu0 %v952
    %1954 = vmatprep.subr.bf16.mxu0 %v961
    %1955 = vmatpush1.bf16.msra.mxu0 %v960
    %1956 = vmatprep.subr.bf16.mxu0 %v969
    %1957 = vmatpush1.bf16.msra.mxu0 %v968
    %1958 = vmatprep.subr.bf16.mxu0 %v977
    %1959 = vmatpush1.bf16.msra.mxu0 %v976
    %1960 = vmatprep.subr.bf16.mxu0 %v985
    %1961 = vmatpush1.bf16.msra.mxu0 %v984
    %1962 = vmatprep.mubr.bf16.mxu0 %v845
    %1963 = vmatmul.mubr.bf16.gmra.mrb[0].mxu0 %v844
    %v1964 = vpop.f32.mrb[0].mxu0
    %v1965 = vadd.f32 %v1893, %v1964
    %v1966 = vpop.f32.mrb[0].mxu0
    %v1967 = vadd.f32 %v1897, %v1966
    %v1968 = vpop.f32.mrb[0].mxu0
    %v1969 = vpop.f32.mrb[0].mxu0
    %1970 = vdwg.mxu0
    %1971 = vmatprep.subr.bf16.mxu0 %v993
    %1972 = vmatpush1.bf16.msra.mxu0 %v992
    %1973 = vmatprep.subr.bf16.mxu0 %v1001
    %1974 = vmatpush1.bf16.msra.mxu0 %v1000
    %1975 = vmatprep.subr.bf16.mxu0 %v1009
    %1976 = vmatpush1.bf16.msra.mxu0 %v1008
    %1977 = vmatprep.subr.bf16.mxu0 %v1017
    %1978 = vmatpush1.bf16.msra.mxu0 %v1016
    %1979 = vmatprep.subr.bf16.mxu0 %v1025
    %1980 = vmatpush1.bf16.msra.mxu0 %v1024
    %1981 = vmatprep.subr.bf16.mxu0 %v1033
    %1982 = vmatpush1.bf16.msra.mxu0 %v1032
    %1983 = vmatprep.subr.bf16.mxu0 %v1041
    %1984 = vmatpush1.bf16.msra.mxu0 %v1040
    %1985 = vmatprep.subr.bf16.mxu0 %v1049
    %1986 = vmatpush1.bf16.msra.mxu0 %v1048
    %1987 = vmatprep.subr.bf16.mxu0 %v1057
    %1988 = vmatpush1.bf16.msra.mxu0 %v1056
    %1989 = vmatprep.subr.bf16.mxu0 %v1065
    %1990 = vmatpush1.bf16.msra.mxu0 %v1064
    %1991 = vmatprep.subr.bf16.mxu0 %v1073
    %1992 = vmatpush1.bf16.msra.mxu0 %v1072
    %1993 = vmatprep.subr.bf16.mxu0 %v1081
    %1994 = vmatpush1.bf16.msra.mxu0 %v1080
    %1995 = vmatprep.subr.bf16.mxu0 %v1089
    %1996 = vmatpush1.bf16.msra.mxu0 %v1088
    %1997 = vmatprep.subr.bf16.mxu0 %v1097
    %1998 = vmatpush1.bf16.msra.mxu0 %v1096
    %1999 = vmatprep.subr.bf16.mxu0 %v1105
    %2000 = vmatpush1.bf16.msra.mxu0 %v1104
    %2001 = vmatprep.subr.bf16.mxu0 %v1113
    %2002 = vmatpush1.bf16.msra.mxu0 %v1112
    %2003 = vmatprep.mubr.bf16.mxu0 %v847
    %2004 = vmatmul.mubr.bf16.gmra.mrb[0].mxu0 %v846
    %v2005 = vpop.f32.mrb[0].mxu0
    %v2006 = vadd.f32 %v1965, %v2005
    %v2007 = vpop.f32.mrb[0].mxu0
    %v2008 = vadd.f32 %v1967, %v2007
    %v2009 = vpop.f32.mrb[0].mxu0
    %v2010 = vpop.f32.mrb[0].mxu0
    %2011 = vdwg.mxu0
    %2012 = vmatprep.subr.bf16.mxu0 %v1121
    %2013 = vmatpush1.bf16.msra.mxu0 %v1120
    %2014 = vmatprep.subr.bf16.mxu0 %v1129
    %2015 = vmatpush1.bf16.msra.mxu0 %v1128
    %2016 = vmatprep.subr.bf16.mxu0 %v1137
    %2017 = vmatpush1.bf16.msra.mxu0 %v1136
    %2018 = vmatprep.subr.bf16.mxu0 %v1145
    %2019 = vmatpush1.bf16.msra.mxu0 %v1144
    %2020 = vmatprep.subr.bf16.mxu0 %v1153
    %2021 = vmatpush1.bf16.msra.mxu0 %v1152
    %2022 = vmatprep.subr.bf16.mxu0 %v1161
    %2023 = vmatpush1.bf16.msra.mxu0 %v1160
    %2024 = vmatprep.subr.bf16.mxu0 %v1169
    %2025 = vmatpush1.bf16.msra.mxu0 %v1168
    %2026 = vmatprep.subr.bf16.mxu0 %v1177
    %2027 = vmatpush1.bf16.msra.mxu0 %v1176
    %2028 = vmatprep.subr.bf16.mxu0 %v1185
    %2029 = vmatpush1.bf16.msra.mxu0 %v1184
    %2030 = vmatprep.subr.bf16.mxu0 %v1193
    %2031 = vmatpush1.bf16.msra.mxu0 %v1192
    %2032 = vmatprep.subr.bf16.mxu0 %v1201
    %2033 = vmatpush1.bf16.msra.mxu0 %v1200
    %2034 = vmatprep.subr.bf16.mxu0 %v1209
    %2035 = vmatpush1.bf16.msra.mxu0 %v1208
    %2036 = vmatprep.subr.bf16.mxu0 %v1217
    %2037 = vmatpush1.bf16.msra.mxu0 %v1216
    %2038 = vmatprep.subr.bf16.mxu0 %v1225
    %2039 = vmatpush1.bf16.msra.mxu0 %v1224
    %2040 = vmatprep.subr.bf16.mxu0 %v1233
    %2041 = vmatpush1.bf16.msra.mxu0 %v1232
    %2042 = vmatprep.subr.bf16.mxu0 %v1241
    %2043 = vmatpush1.bf16.msra.mxu0 %v1240
    %2044 = vmatprep.mubr.bf16.mxu0 %v849
    %2045 = vmatmul.mubr.bf16.gmra.mrb[0].mxu0 %v848
    %v2046 = vpop.f32.mrb[0].mxu0
    %v2047 = vadd.f32 %v2006, %v2046
    %v2048 = vpop.f32.mrb[0].mxu0
    %v2049 = vadd.f32 %v2008, %v2048
    %v2050 = vpop.f32.mrb[0].mxu0
    %v2051 = vpop.f32.mrb[0].mxu0
    %2052 = vdwg.mxu0
    %2053 = vmatprep.subr.bf16.mxu0 %v1249
    %2054 = vmatpush1.bf16.msra.mxu0 %v1248
    %2055 = vmatprep.subr.bf16.mxu0 %v1257
    %2056 = vmatpush1.bf16.msra.mxu0 %v1256
    %2057 = vmatprep.subr.bf16.mxu0 %v1265
    %2058 = vmatpush1.bf16.msra.mxu0 %v1264
    %2059 = vmatprep.subr.bf16.mxu0 %v1273
    %2060 = vmatpush1.bf16.msra.mxu0 %v1272
    %2061 = vmatprep.subr.bf16.mxu0 %v1281
    %2062 = vmatpush1.bf16.msra.mxu0 %v1280
    %2063 = vmatprep.subr.bf16.mxu0 %v1289
    %2064 = vmatpush1.bf16.msra.mxu0 %v1288
    %2065 = vmatprep.subr.bf16.mxu0 %v1297
    %2066 = vmatpush1.bf16.msra.mxu0 %v1296
    %2067 = vmatprep.subr.bf16.mxu0 %v1305
    %2068 = vmatpush1.bf16.msra.mxu0 %v1304
    %2069 = vmatprep.subr.bf16.mxu0 %v1313
    %2070 = vmatpush1.bf16.msra.mxu0 %v1312
    %2071 = vmatprep.subr.bf16.mxu0 %v1321
    %2072 = vmatpush1.bf16.msra.mxu0 %v1320
    %2073 = vmatprep.subr.bf16.mxu0 %v1329
    %2074 = vmatpush1.bf16.msra.mxu0 %v1328
    %2075 = vmatprep.subr.bf16.mxu0 %v1337
    %2076 = vmatpush1.bf16.msra.mxu0 %v1336
    %2077 = vmatprep.subr.bf16.mxu0 %v1345
    %2078 = vmatpush1.bf16.msra.mxu0 %v1344
    %2079 = vmatprep.subr.bf16.mxu0 %v1353
    %2080 = vmatpush1.bf16.msra.mxu0 %v1352
    %2081 = vmatprep.subr.bf16.mxu0 %v1361
    %2082 = vmatpush1.bf16.msra.mxu0 %v1360
    %2083 = vmatprep.subr.bf16.mxu0 %v1369
    %2084 = vmatpush1.bf16.msra.mxu0 %v1368
    %2085 = vmatprep.mubr.bf16.mxu0 %v851
    %2086 = vmatmul.mubr.bf16.gmra.mrb[0].mxu0 %v850
    %v2087 = vpop.f32.mrb[0].mxu0
    %v2088 = vadd.f32 %v2047, %v2087
    %v2089 = vpop.f32.mrb[0].mxu0
    %v2090 = vadd.f32 %v2049, %v2089
    %v2091 = vpop.f32.mrb[0].mxu0
    %v2092 = vpop.f32.mrb[0].mxu0
    %2093 = vdwg.mxu0
    %2094 = vmatprep.subr.bf16.mxu0 %v1377
    %2095 = vmatpush1.bf16.msra.mxu0 %v1376
    %2096 = vmatprep.subr.bf16.mxu0 %v1385
    %2097 = vmatpush1.bf16.msra.mxu0 %v1384
    %2098 = vmatprep.subr.bf16.mxu0 %v1393
    %2099 = vmatpush1.bf16.msra.mxu0 %v1392
    %2100 = vmatprep.subr.bf16.mxu0 %v1401
    %2101 = vmatpush1.bf16.msra.mxu0 %v1400
    %2102 = vmatprep.subr.bf16.mxu0 %v1409
    %2103 = vmatpush1.bf16.msra.mxu0 %v1408
    %2104 = vmatprep.subr.bf16.mxu0 %v1417
    %2105 = vmatpush1.bf16.msra.mxu0 %v1416
    %2106 = vmatprep.subr.bf16.mxu0 %v1425
    %2107 = vmatpush1.bf16.msra.mxu0 %v1424
    %2108 = vmatprep.subr.bf16.mxu0 %v1433
    %2109 = vmatpush1.bf16.msra.mxu0 %v1432
    %2110 = vmatprep.subr.bf16.mxu0 %v1441
    %2111 = vmatpush1.bf16.msra.mxu0 %v1440
    %2112 = vmatprep.subr.bf16.mxu0 %v1449
    %2113 = vmatpush1.bf16.msra.mxu0 %v1448
    %2114 = vmatprep.subr.bf16.mxu0 %v1457
    %2115 = vmatpush1.bf16.msra.mxu0 %v1456
    %2116 = vmatprep.subr.bf16.mxu0 %v1465
    %2117 = vmatpush1.bf16.msra.mxu0 %v1464
    %2118 = vmatprep.subr.bf16.mxu0 %v1473
    %2119 = vmatpush1.bf16.msra.mxu0 %v1472
    %2120 = vmatprep.subr.bf16.mxu0 %v1481
    %2121 = vmatpush1.bf16.msra.mxu0 %v1480
    %2122 = vmatprep.subr.bf16.mxu0 %v1489
    %2123 = vmatpush1.bf16.msra.mxu0 %v1488
    %2124 = vmatprep.subr.bf16.mxu0 %v1497
    %2125 = vmatpush1.bf16.msra.mxu0 %v1496
    %2126 = vmatprep.mubr.bf16.mxu0 %v853
    %2127 = vmatmul.mubr.bf16.gmra.mrb[0].mxu0 %v852
    %v2128 = vpop.f32.mrb[0].mxu0
    %v2129 = vadd.f32 %v2088, %v2128
    %v2130 = vpop.f32.mrb[0].mxu0
    %v2131 = vadd.f32 %v2090, %v2130
    %v2132 = vpop.f32.mrb[0].mxu0
    %v2133 = vpop.f32.mrb[0].mxu0
    %2134 = vdwg.mxu0
    %2135 = vmatprep.subr.bf16.mxu0 %v1505
    %2136 = vmatpush1.bf16.msra.mxu0 %v1504
    %2137 = vmatprep.subr.bf16.mxu0 %v1513
    %2138 = vmatpush1.bf16.msra.mxu0 %v1512
    %2139 = vmatprep.subr.bf16.mxu0 %v1521
    %2140 = vmatpush1.bf16.msra.mxu0 %v1520
    %2141 = vmatprep.subr.bf16.mxu0 %v1529
    %2142 = vmatpush1.bf16.msra.mxu0 %v1528
    %2143 = vmatprep.subr.bf16.mxu0 %v1537
    %2144 = vmatpush1.bf16.msra.mxu0 %v1536
    %2145 = vmatprep.subr.bf16.mxu0 %v1545
    %2146 = vmatpush1.bf16.msra.mxu0 %v1544
    %2147 = vmatprep.subr.bf16.mxu0 %v1553
    %2148 = vmatpush1.bf16.msra.mxu0 %v1552
    %2149 = vmatprep.subr.bf16.mxu0 %v1561
    %2150 = vmatpush1.bf16.msra.mxu0 %v1560
    %2151 = vmatprep.subr.bf16.mxu0 %v1569
    %2152 = vmatpush1.bf16.msra.mxu0 %v1568
    %2153 = vmatprep.subr.bf16.mxu0 %v1577
    %2154 = vmatpush1.bf16.msra.mxu0 %v1576
    %2155 = vmatprep.subr.bf16.mxu0 %v1585
    %2156 = vmatpush1.bf16.msra.mxu0 %v1584
    %2157 = vmatprep.subr.bf16.mxu0 %v1593
    %2158 = vmatpush1.bf16.msra.mxu0 %v1592
    %2159 = vmatprep.subr.bf16.mxu0 %v1601
    %2160 = vmatpush1.bf16.msra.mxu0 %v1600
    %2161 = vmatprep.subr.bf16.mxu0 %v1609
    %2162 = vmatpush1.bf16.msra.mxu0 %v1608
    %2163 = vmatprep.subr.bf16.mxu0 %v1617
    %2164 = vmatpush1.bf16.msra.mxu0 %v1616
    %2165 = vmatprep.subr.bf16.mxu0 %v1625
    %2166 = vmatpush1.bf16.msra.mxu0 %v1624
    %2167 = vmatprep.mubr.bf16.mxu0 %v855
    %2168 = vmatmul.mubr.bf16.gmra.mrb[0].mxu0 %v854
    %v2169 = vpop.f32.mrb[0].mxu0
    %v2170 = vadd.f32 %v2129, %v2169
    %v2171 = vpop.f32.mrb[0].mxu0
    %v2172 = vadd.f32 %v2131, %v2171
    %v2173 = vpop.f32.mrb[0].mxu0
    %v2174 = vpop.f32.mrb[0].mxu0
    %2175 = vdwg.mxu0
    %2176 = vmatprep.subr.bf16.mxu0 %v1633
    %2177 = vmatpush1.bf16.msra.mxu0 %v1632
    %2178 = vmatprep.subr.bf16.mxu0 %v1641
    %2179 = vmatpush1.bf16.msra.mxu0 %v1640
    %2180 = vmatprep.subr.bf16.mxu0 %v1649
    %2181 = vmatpush1.bf16.msra.mxu0 %v1648
    %2182 = vmatprep.subr.bf16.mxu0 %v1657
    %2183 = vmatpush1.bf16.msra.mxu0 %v1656
    %2184 = vmatprep.subr.bf16.mxu0 %v1665
    %2185 = vmatpush1.bf16.msra.mxu0 %v1664
    %2186 = vmatprep.subr.bf16.mxu0 %v1673
    %2187 = vmatpush1.bf16.msra.mxu0 %v1672
    %2188 = vmatprep.subr.bf16.mxu0 %v1681
    %2189 = vmatpush1.bf16.msra.mxu0 %v1680
    %2190 = vmatprep.subr.bf16.mxu0 %v1689
    %2191 = vmatpush1.bf16.msra.mxu0 %v1688
    %2192 = vmatprep.subr.bf16.mxu0 %v1697
    %2193 = vmatpush1.bf16.msra.mxu0 %v1696
    %2194 = vmatprep.subr.bf16.mxu0 %v1705
    %2195 = vmatpush1.bf16.msra.mxu0 %v1704
    %2196 = vmatprep.subr.bf16.mxu0 %v1713
    %2197 = vmatpush1.bf16.msra.mxu0 %v1712
    %2198 = vmatprep.subr.bf16.mxu0 %v1721
    %2199 = vmatpush1.bf16.msra.mxu0 %v1720
    %2200 = vmatprep.subr.bf16.mxu0 %v1729
    %2201 = vmatpush1.bf16.msra.mxu0 %v1728
    %2202 = vmatprep.subr.bf16.mxu0 %v1737
    %2203 = vmatpush1.bf16.msra.mxu0 %v1736
    %2204 = vmatprep.subr.bf16.mxu0 %v1745
    %2205 = vmatpush1.bf16.msra.mxu0 %v1744
    %2206 = vmatprep.subr.bf16.mxu0 %v1753
    %2207 = vmatpush1.bf16.msra.mxu0 %v1752
    %2208 = vmatprep.mubr.bf16.mxu0 %v857
    %2209 = vmatmul.mubr.bf16.gmra.mrb[0].mxu0 %v856
    %v2210 = vpop.f32.mrb[0].mxu0
    %v2211 = vadd.f32 %v2170, %v2210
    %v2212 = vpop.f32.mrb[0].mxu0
    %v2213 = vadd.f32 %v2172, %v2212
    %v2214 = vpop.f32.mrb[0].mxu0
    %v2215 = vpop.f32.mrb[0].mxu0
    %2216 = vdwg.mxu0
    %2217 = vmatprep.subr.bf16.mxu0 %v1761
    %2218 = vmatpush1.bf16.msra.mxu0 %v1760
    %2219 = vmatprep.subr.bf16.mxu0 %v1769
    %2220 = vmatpush1.bf16.msra.mxu0 %v1768
    %2221 = vmatprep.subr.bf16.mxu0 %v1777
    %2222 = vmatpush1.bf16.msra.mxu0 %v1776
    %2223 = vmatprep.subr.bf16.mxu0 %v1785
    %2224 = vmatpush1.bf16.msra.mxu0 %v1784
    %2225 = vmatprep.subr.bf16.mxu0 %v1793
    %2226 = vmatpush1.bf16.msra.mxu0 %v1792
    %2227 = vmatprep.subr.bf16.mxu0 %v1801
    %2228 = vmatpush1.bf16.msra.mxu0 %v1800
    %2229 = vmatprep.subr.bf16.mxu0 %v1809
    %2230 = vmatpush1.bf16.msra.mxu0 %v1808
    %2231 = vmatprep.subr.bf16.mxu0 %v1817
    %2232 = vmatpush1.bf16.msra.mxu0 %v1816
    %2233 = vmatprep.subr.bf16.mxu0 %v1825
    %2234 = vmatpush1.bf16.msra.mxu0 %v1824
    %2235 = vmatprep.subr.bf16.mxu0 %v1833
    %2236 = vmatpush1.bf16.msra.mxu0 %v1832
    %2237 = vmatprep.subr.bf16.mxu0 %v1841
    %2238 = vmatpush1.bf16.msra.mxu0 %v1840
    %2239 = vmatprep.subr.bf16.mxu0 %v1849
    %2240 = vmatpush1.bf16.msra.mxu0 %v1848
    %2241 = vmatprep.subr.bf16.mxu0 %v1857
    %2242 = vmatpush1.bf16.msra.mxu0 %v1856
    %2243 = vmatprep.subr.bf16.mxu0 %v1865
    %2244 = vmatpush1.bf16.msra.mxu0 %v1864
    %2245 = vmatprep.subr.bf16.mxu0 %v1873
    %2246 = vmatpush1.bf16.msra.mxu0 %v1872
    %2247 = vmatprep.subr.bf16.mxu0 %v1881
    %2248 = vmatpush1.bf16.msra.mxu0 %v1880
    %2249 = vmatprep.mubr.bf16.mxu0 %v859
    %2250 = vmatmul.mubr.bf16.gmra.mrb[0].mxu0 %v858
    %v2251 = vpop.f32.mrb[0].mxu0
    %v2252 = vadd.f32 %v2211, %v2251
    %v2253 = vpop.f32.mrb[0].mxu0
    %v2254 = vadd.f32 %v2213, %v2253
    %v2255 = vpop.f32.mrb[0].mxu0
    %v2256 = vpop.f32.mrb[0].mxu0
    %2257 = vdwg.mxu0
    %2258 = vmatprep.subr.bf16.mxu0 %v867
    %2259 = vmatpush1.bf16.msra.mxu0 %v866
    %2260 = vmatprep.subr.bf16.mxu0 %v875
    %2261 = vmatpush1.bf16.msra.mxu0 %v874
    %2262 = vmatprep.subr.bf16.mxu0 %v883
    %2263 = vmatpush1.bf16.msra.mxu0 %v882
    %2264 = vmatprep.subr.bf16.mxu0 %v891
    %2265 = vmatpush1.bf16.msra.mxu0 %v890
    %2266 = vmatprep.subr.bf16.mxu0 %v899
    %2267 = vmatpush1.bf16.msra.mxu0 %v898
    %2268 = vmatprep.subr.bf16.mxu0 %v907
    %2269 = vmatpush1.bf16.msra.mxu0 %v906
    %2270 = vmatprep.subr.bf16.mxu0 %v915
    %2271 = vmatpush1.bf16.msra.mxu0 %v914
    %2272 = vmatprep.subr.bf16.mxu0 %v923
    %2273 = vmatpush1.bf16.msra.mxu0 %v922
    %2274 = vmatprep.subr.bf16.mxu0 %v931
    %2275 = vmatpush1.bf16.msra.mxu0 %v930
    %2276 = vmatprep.subr.bf16.mxu0 %v939
    %2277 = vmatpush1.bf16.msra.mxu0 %v938
    %2278 = vmatprep.subr.bf16.mxu0 %v947
    %2279 = vmatpush1.bf16.msra.mxu0 %v946
    %2280 = vmatprep.subr.bf16.mxu0 %v955
    %2281 = vmatpush1.bf16.msra.mxu0 %v954
    %2282 = vmatprep.subr.bf16.mxu0 %v963
    %2283 = vmatpush1.bf16.msra.mxu0 %v962
    %2284 = vmatprep.subr.bf16.mxu0 %v971
    %2285 = vmatpush1.bf16.msra.mxu0 %v970
    %2286 = vmatprep.subr.bf16.mxu0 %v979
    %2287 = vmatpush1.bf16.msra.mxu0 %v978
    %2288 = vmatprep.subr.bf16.mxu0 %v987
    %2289 = vmatpush1.bf16.msra.mxu0 %v986
    %2290 = vmatprep.mubr.bf16.mxu0 %v845
    %2291 = vmatmul.mubr.bf16.gmra.mrb[0].mxu0 %v844
    %v2292 = vpop.f32.mrb[0].mxu0
    %v2293 = vadd.f32 %v1901, %v2292
    %v2294 = vpop.f32.mrb[0].mxu0
    %v2295 = vadd.f32 %v1905, %v2294
    %v2296 = vpop.f32.mrb[0].mxu0
    %v2297 = vpop.f32.mrb[0].mxu0
    %2298 = vdwg.mxu0
    %2299 = vmatprep.subr.bf16.mxu0 %v995
    %2300 = vmatpush1.bf16.msra.mxu0 %v994
    %2301 = vmatprep.subr.bf16.mxu0 %v1003
    %2302 = vmatpush1.bf16.msra.mxu0 %v1002
    %2303 = vmatprep.subr.bf16.mxu0 %v1011
    %2304 = vmatpush1.bf16.msra.mxu0 %v1010
    %2305 = vmatprep.subr.bf16.mxu0 %v1019
    %2306 = vmatpush1.bf16.msra.mxu0 %v1018
    %2307 = vmatprep.subr.bf16.mxu0 %v1027
    %2308 = vmatpush1.bf16.msra.mxu0 %v1026
    %2309 = vmatprep.subr.bf16.mxu0 %v1035
    %2310 = vmatpush1.bf16.msra.mxu0 %v1034
    %2311 = vmatprep.subr.bf16.mxu0 %v1043
    %2312 = vmatpush1.bf16.msra.mxu0 %v1042
    %2313 = vmatprep.subr.bf16.mxu0 %v1051
    %2314 = vmatpush1.bf16.msra.mxu0 %v1050
    %2315 = vmatprep.subr.bf16.mxu0 %v1059
    %2316 = vmatpush1.bf16.msra.mxu0 %v1058
    %2317 = vmatprep.subr.bf16.mxu0 %v1067
    %2318 = vmatpush1.bf16.msra.mxu0 %v1066
    %2319 = vmatprep.subr.bf16.mxu0 %v1075
    %2320 = vmatpush1.bf16.msra.mxu0 %v1074
    %2321 = vmatprep.subr.bf16.mxu0 %v1083
    %2322 = vmatpush1.bf16.msra.mxu0 %v1082
    %2323 = vmatprep.subr.bf16.mxu0 %v1091
    %2324 = vmatpush1.bf16.msra.mxu0 %v1090
    %2325 = vmatprep.subr.bf16.mxu0 %v1099
    %2326 = vmatpush1.bf16.msra.mxu0 %v1098
    %2327 = vmatprep.subr.bf16.mxu0 %v1107
    %2328 = vmatpush1.bf16.msra.mxu0 %v1106
    %2329 = vmatprep.subr.bf16.mxu0 %v1115
    %2330 = vmatpush1.bf16.msra.mxu0 %v1114
    %2331 = vmatprep.mubr.bf16.mxu0 %v847
    %2332 = vmatmul.mubr.bf16.gmra.mrb[0].mxu0 %v846
    %v2333 = vpop.f32.mrb[0].mxu0
    %v2334 = vadd.f32 %v2293, %v2333
    %v2335 = vpop.f32.mrb[0].mxu0
    %v2336 = vadd.f32 %v2295, %v2335
    %v2337 = vpop.f32.mrb[0].mxu0
    %v2338 = vpop.f32.mrb[0].mxu0
    %2339 = vdwg.mxu0
    %2340 = vmatprep.subr.bf16.mxu0 %v1123
    %2341 = vmatpush1.bf16.msra.mxu0 %v1122
    %2342 = vmatprep.subr.bf16.mxu0 %v1131
    %2343 = vmatpush1.bf16.msra.mxu0 %v1130
    %2344 = vmatprep.subr.bf16.mxu0 %v1139
    %2345 = vmatpush1.bf16.msra.mxu0 %v1138
    %2346 = vmatprep.subr.bf16.mxu0 %v1147
    %2347 = vmatpush1.bf16.msra.mxu0 %v1146
    %2348 = vmatprep.subr.bf16.mxu0 %v1155
    %2349 = vmatpush1.bf16.msra.mxu0 %v1154
    %2350 = vmatprep.subr.bf16.mxu0 %v1163
    %2351 = vmatpush1.bf16.msra.mxu0 %v1162
    %2352 = vmatprep.subr.bf16.mxu0 %v1171
    %2353 = vmatpush1.bf16.msra.mxu0 %v1170
    %2354 = vmatprep.subr.bf16.mxu0 %v1179
    %2355 = vmatpush1.bf16.msra.mxu0 %v1178
    %2356 = vmatprep.subr.bf16.mxu0 %v1187
    %2357 = vmatpush1.bf16.msra.mxu0 %v1186
    %2358 = vmatprep.subr.bf16.mxu0 %v1195
    %2359 = vmatpush1.bf16.msra.mxu0 %v1194
    %2360 = vmatprep.subr.bf16.mxu0 %v1203
    %2361 = vmatpush1.bf16.msra.mxu0 %v1202
    %2362 = vmatprep.subr.bf16.mxu0 %v1211
    %2363 = vmatpush1.bf16.msra.mxu0 %v1210
    %2364 = vmatprep.subr.bf16.mxu0 %v1219
    %2365 = vmatpush1.bf16.msra.mxu0 %v1218
    %2366 = vmatprep.subr.bf16.mxu0 %v1227
    %2367 = vmatpush1.bf16.msra.mxu0 %v1226
    %2368 = vmatprep.subr.bf16.mxu0 %v1235
    %2369 = vmatpush1.bf16.msra.mxu0 %v1234
    %2370 = vmatprep.subr.bf16.mxu0 %v1243
    %2371 = vmatpush1.bf16.msra.mxu0 %v1242
    %2372 = vmatprep.mubr.bf16.mxu0 %v849
    %2373 = vmatmul.mubr.bf16.gmra.mrb[0].mxu0 %v848
    %v2374 = vpop.f32.mrb[0].mxu0
    %v2375 = vadd.f32 %v2334, %v2374
    %v2376 = vpop.f32.mrb[0].mxu0
    %v2377 = vadd.f32 %v2336, %v2376
    %v2378 = vpop.f32.mrb[0].mxu0
    %v2379 = vpop.f32.mrb[0].mxu0
    %2380 = vdwg.mxu0
    %2381 = vmatprep.subr.bf16.mxu0 %v1251
    %2382 = vmatpush1.bf16.msra.mxu0 %v1250
    %2383 = vmatprep.subr.bf16.mxu0 %v1259
    %2384 = vmatpush1.bf16.msra.mxu0 %v1258
    %2385 = vmatprep.subr.bf16.mxu0 %v1267
    %2386 = vmatpush1.bf16.msra.mxu0 %v1266
    %2387 = vmatprep.subr.bf16.mxu0 %v1275
    %2388 = vmatpush1.bf16.msra.mxu0 %v1274
    %2389 = vmatprep.subr.bf16.mxu0 %v1283
    %2390 = vmatpush1.bf16.msra.mxu0 %v1282
    %2391 = vmatprep.subr.bf16.mxu0 %v1291
    %2392 = vmatpush1.bf16.msra.mxu0 %v1290
    %2393 = vmatprep.subr.bf16.mxu0 %v1299
    %2394 = vmatpush1.bf16.msra.mxu0 %v1298
    %2395 = vmatprep.subr.bf16.mxu0 %v1307
    %2396 = vmatpush1.bf16.msra.mxu0 %v1306
    %2397 = vmatprep.subr.bf16.mxu0 %v1315
    %2398 = vmatpush1.bf16.msra.mxu0 %v1314
    %2399 = vmatprep.subr.bf16.mxu0 %v1323
    %2400 = vmatpush1.bf16.msra.mxu0 %v1322
    %2401 = vmatprep.subr.bf16.mxu0 %v1331
    %2402 = vmatpush1.bf16.msra.mxu0 %v1330
    %2403 = vmatprep.subr.bf16.mxu0 %v1339
    %2404 = vmatpush1.bf16.msra.mxu0 %v1338
    %2405 = vmatprep.subr.bf16.mxu0 %v1347
    %2406 = vmatpush1.bf16.msra.mxu0 %v1346
    %2407 = vmatprep.subr.bf16.mxu0 %v1355
    %2408 = vmatpush1.bf16.msra.mxu0 %v1354
    %2409 = vmatprep.subr.bf16.mxu0 %v1363
    %2410 = vmatpush1.bf16.msra.mxu0 %v1362
    %2411 = vmatprep.subr.bf16.mxu0 %v1371
    %2412 = vmatpush1.bf16.msra.mxu0 %v1370
    %2413 = vmatprep.mubr.bf16.mxu0 %v851
    %2414 = vmatmul.mubr.bf16.gmra.mrb[0].mxu0 %v850
    %v2415 = vpop.f32.mrb[0].mxu0
    %v2416 = vadd.f32 %v2375, %v2415
    %v2417 = vpop.f32.mrb[0].mxu0
    %v2418 = vadd.f32 %v2377, %v2417
    %v2419 = vpop.f32.mrb[0].mxu0
    %v2420 = vpop.f32.mrb[0].mxu0
    %2421 = vdwg.mxu0
    %2422 = vmatprep.subr.bf16.mxu0 %v1379
    %2423 = vmatpush1.bf16.msra.mxu0 %v1378
    %2424 = vmatprep.subr.bf16.mxu0 %v1387
    %2425 = vmatpush1.bf16.msra.mxu0 %v1386
    %2426 = vmatprep.subr.bf16.mxu0 %v1395
    %2427 = vmatpush1.bf16.msra.mxu0 %v1394
    %2428 = vmatprep.subr.bf16.mxu0 %v1403
    %2429 = vmatpush1.bf16.msra.mxu0 %v1402
    %2430 = vmatprep.subr.bf16.mxu0 %v1411
    %2431 = vmatpush1.bf16.msra.mxu0 %v1410
    %2432 = vmatprep.subr.bf16.mxu0 %v1419
    %2433 = vmatpush1.bf16.msra.mxu0 %v1418
    %2434 = vmatprep.subr.bf16.mxu0 %v1427
    %2435 = vmatpush1.bf16.msra.mxu0 %v1426
    %2436 = vmatprep.subr.bf16.mxu0 %v1435
    %2437 = vmatpush1.bf16.msra.mxu0 %v1434
    %2438 = vmatprep.subr.bf16.mxu0 %v1443
    %2439 = vmatpush1.bf16.msra.mxu0 %v1442
    %2440 = vmatprep.subr.bf16.mxu0 %v1451
    %2441 = vmatpush1.bf16.msra.mxu0 %v1450
    %2442 = vmatprep.subr.bf16.mxu0 %v1459
    %2443 = vmatpush1.bf16.msra.mxu0 %v1458
    %2444 = vmatprep.subr.bf16.mxu0 %v1467
    %2445 = vmatpush1.bf16.msra.mxu0 %v1466
    %2446 = vmatprep.subr.bf16.mxu0 %v1475
    %2447 = vmatpush1.bf16.msra.mxu0 %v1474
    %2448 = vmatprep.subr.bf16.mxu0 %v1483
    %2449 = vmatpush1.bf16.msra.mxu0 %v1482
    %2450 = vmatprep.subr.bf16.mxu0 %v1491
    %2451 = vmatpush1.bf16.msra.mxu0 %v1490
    %2452 = vmatprep.subr.bf16.mxu0 %v1499
    %2453 = vmatpush1.bf16.msra.mxu0 %v1498
    %2454 = vmatprep.mubr.bf16.mxu0 %v853
    %2455 = vmatmul.mubr.bf16.gmra.mrb[0].mxu0 %v852
    %v2456 = vpop.f32.mrb[0].mxu0
    %v2457 = vadd.f32 %v2416, %v2456
    %v2458 = vpop.f32.mrb[0].mxu0
    %v2459 = vadd.f32 %v2418, %v2458
    %v2460 = vpop.f32.mrb[0].mxu0
    %v2461 = vpop.f32.mrb[0].mxu0
    %2462 = vdwg.mxu0
    %2463 = vmatprep.subr.bf16.mxu0 %v1507
    %2464 = vmatpush1.bf16.msra.mxu0 %v1506
    %2465 = vmatprep.subr.bf16.mxu0 %v1515
    %2466 = vmatpush1.bf16.msra.mxu0 %v1514
    %2467 = vmatprep.subr.bf16.mxu0 %v1523
    %2468 = vmatpush1.bf16.msra.mxu0 %v1522
    %2469 = vmatprep.subr.bf16.mxu0 %v1531
    %2470 = vmatpush1.bf16.msra.mxu0 %v1530
    %2471 = vmatprep.subr.bf16.mxu0 %v1539
    %2472 = vmatpush1.bf16.msra.mxu0 %v1538
    %2473 = vmatprep.subr.bf16.mxu0 %v1547
    %2474 = vmatpush1.bf16.msra.mxu0 %v1546
    %2475 = vmatprep.subr.bf16.mxu0 %v1555
    %2476 = vmatpush1.bf16.msra.mxu0 %v1554
    %2477 = vmatprep.subr.bf16.mxu0 %v1563
    %2478 = vmatpush1.bf16.msra.mxu0 %v1562
    %2479 = vmatprep.subr.bf16.mxu0 %v1571
    %2480 = vmatpush1.bf16.msra.mxu0 %v1570
    %2481 = vmatprep.subr.bf16.mxu0 %v1579
    %2482 = vmatpush1.bf16.msra.mxu0 %v1578
    %2483 = vmatprep.subr.bf16.mxu0 %v1587
    %2484 = vmatpush1.bf16.msra.mxu0 %v1586
    %2485 = vmatprep.subr.bf16.mxu0 %v1595
    %2486 = vmatpush1.bf16.msra.mxu0 %v1594
    %2487 = vmatprep.subr.bf16.mxu0 %v1603
    %2488 = vmatpush1.bf16.msra.mxu0 %v1602
    %2489 = vmatprep.subr.bf16.mxu0 %v1611
    %2490 = vmatpush1.bf16.msra.mxu0 %v1610
    %2491 = vmatprep.subr.bf16.mxu0 %v1619
    %2492 = vmatpush1.bf16.msra.mxu0 %v1618
    %2493 = vmatprep.subr.bf16.mxu0 %v1627
    %2494 = vmatpush1.bf16.msra.mxu0 %v1626
    %2495 = vmatprep.mubr.bf16.mxu0 %v855
    %2496 = vmatmul.mubr.bf16.gmra.mrb[0].mxu0 %v854
    %v2497 = vpop.f32.mrb[0].mxu0
    %v2498 = vadd.f32 %v2457, %v2497
    %v2499 = vpop.f32.mrb[0].mxu0
    %v2500 = vadd.f32 %v2459, %v2499
    %v2501 = vpop.f32.mrb[0].mxu0
    %v2502 = vpop.f32.mrb[0].mxu0
    %2503 = vdwg.mxu0
    %2504 = vmatprep.subr.bf16.mxu0 %v1635
    %2505 = vmatpush1.bf16.msra.mxu0 %v1634
    %2506 = vmatprep.subr.bf16.mxu0 %v1643
    %2507 = vmatpush1.bf16.msra.mxu0 %v1642
    %2508 = vmatprep.subr.bf16.mxu0 %v1651
    %2509 = vmatpush1.bf16.msra.mxu0 %v1650
    %2510 = vmatprep.subr.bf16.mxu0 %v1659
    %2511 = vmatpush1.bf16.msra.mxu0 %v1658
    %2512 = vmatprep.subr.bf16.mxu0 %v1667
    %2513 = vmatpush1.bf16.msra.mxu0 %v1666
    %2514 = vmatprep.subr.bf16.mxu0 %v1675
    %2515 = vmatpush1.bf16.msra.mxu0 %v1674
    %2516 = vmatprep.subr.bf16.mxu0 %v1683
    %2517 = vmatpush1.bf16.msra.mxu0 %v1682
    %2518 = vmatprep.subr.bf16.mxu0 %v1691
    %2519 = vmatpush1.bf16.msra.mxu0 %v1690
    %2520 = vmatprep.subr.bf16.mxu0 %v1699
    %2521 = vmatpush1.bf16.msra.mxu0 %v1698
    %2522 = vmatprep.subr.bf16.mxu0 %v1707
    %2523 = vmatpush1.bf16.msra.mxu0 %v1706
    %2524 = vmatprep.subr.bf16.mxu0 %v1715
    %2525 = vmatpush1.bf16.msra.mxu0 %v1714
    %2526 = vmatprep.subr.bf16.mxu0 %v1723
    %2527 = vmatpush1.bf16.msra.mxu0 %v1722
    %2528 = vmatprep.subr.bf16.mxu0 %v1731
    %2529 = vmatpush1.bf16.msra.mxu0 %v1730
    %2530 = vmatprep.subr.bf16.mxu0 %v1739
    %2531 = vmatpush1.bf16.msra.mxu0 %v1738
    %2532 = vmatprep.subr.bf16.mxu0 %v1747
    %2533 = vmatpush1.bf16.msra.mxu0 %v1746
    %2534 = vmatprep.subr.bf16.mxu0 %v1755
    %2535 = vmatpush1.bf16.msra.mxu0 %v1754
    %2536 = vmatprep.mubr.bf16.mxu0 %v857
    %2537 = vmatmul.mubr.bf16.gmra.mrb[0].mxu0 %v856
    %v2538 = vpop.f32.mrb[0].mxu0
    %v2539 = vadd.f32 %v2498, %v2538
    %v2540 = vpop.f32.mrb[0].mxu0
    %v2541 = vadd.f32 %v2500, %v2540
    %v2542 = vpop.f32.mrb[0].mxu0
    %v2543 = vpop.f32.mrb[0].mxu0
    %2544 = vdwg.mxu0
    %2545 = vmatprep.subr.bf16.mxu0 %v1763
    %2546 = vmatpush1.bf16.msra.mxu0 %v1762
    %2547 = vmatprep.subr.bf16.mxu0 %v1771
    %2548 = vmatpush1.bf16.msra.mxu0 %v1770
    %2549 = vmatprep.subr.bf16.mxu0 %v1779
    %2550 = vmatpush1.bf16.msra.mxu0 %v1778
    %2551 = vmatprep.subr.bf16.mxu0 %v1787
    %2552 = vmatpush1.bf16.msra.mxu0 %v1786
    %2553 = vmatprep.subr.bf16.mxu0 %v1795
    %2554 = vmatpush1.bf16.msra.mxu0 %v1794
    %2555 = vmatprep.subr.bf16.mxu0 %v1803
    %2556 = vmatpush1.bf16.msra.mxu0 %v1802
    %2557 = vmatprep.subr.bf16.mxu0 %v1811
    %2558 = vmatpush1.bf16.msra.mxu0 %v1810
    %2559 = vmatprep.subr.bf16.mxu0 %v1819
    %2560 = vmatpush1.bf16.msra.mxu0 %v1818
    %2561 = vmatprep.subr.bf16.mxu0 %v1827
    %2562 = vmatpush1.bf16.msra.mxu0 %v1826
    %2563 = vmatprep.subr.bf16.mxu0 %v1835
    %2564 = vmatpush1.bf16.msra.mxu0 %v1834
    %2565 = vmatprep.subr.bf16.mxu0 %v1843
    %2566 = vmatpush1.bf16.msra.mxu0 %v1842
    %2567 = vmatprep.subr.bf16.mxu0 %v1851
    %2568 = vmatpush1.bf16.msra.mxu0 %v1850
    %2569 = vmatprep.subr.bf16.mxu0 %v1859
    %2570 = vmatpush1.bf16.msra.mxu0 %v1858
    %2571 = vmatprep.subr.bf16.mxu0 %v1867
    %2572 = vmatpush1.bf16.msra.mxu0 %v1866
    %2573 = vmatprep.subr.bf16.mxu0 %v1875
    %2574 = vmatpush1.bf16.msra.mxu0 %v1874
    %2575 = vmatprep.subr.bf16.mxu0 %v1883
    %2576 = vmatpush1.bf16.msra.mxu0 %v1882
    %2577 = vmatprep.mubr.bf16.mxu0 %v859
    %2578 = vmatmul.mubr.bf16.gmra.mrb[0].mxu0 %v858
    %v2579 = vpop.f32.mrb[0].mxu0
    %v2580 = vadd.f32 %v2539, %v2579
    %v2581 = vpop.f32.mrb[0].mxu0
    %v2582 = vadd.f32 %v2541, %v2581
    %v2583 = vpop.f32.mrb[0].mxu0
    %v2584 = vpop.f32.mrb[0].mxu0
    %2585 = vdwg.mxu0
    %2586 = vmatprep.subr.bf16.mxu0 %v869
    %2587 = vmatpush1.bf16.msra.mxu0 %v868
    %2588 = vmatprep.subr.bf16.mxu0 %v877
    %2589 = vmatpush1.bf16.msra.mxu0 %v876
    %2590 = vmatprep.subr.bf16.mxu0 %v885
    %2591 = vmatpush1.bf16.msra.mxu0 %v884
    %2592 = vmatprep.subr.bf16.mxu0 %v893
    %2593 = vmatpush1.bf16.msra.mxu0 %v892
    %2594 = vmatprep.subr.bf16.mxu0 %v901
    %2595 = vmatpush1.bf16.msra.mxu0 %v900
    %2596 = vmatprep.subr.bf16.mxu0 %v909
    %2597 = vmatpush1.bf16.msra.mxu0 %v908
    %2598 = vmatprep.subr.bf16.mxu0 %v917
    %2599 = vmatpush1.bf16.msra.mxu0 %v916
    %2600 = vmatprep.subr.bf16.mxu0 %v925
    %2601 = vmatpush1.bf16.msra.mxu0 %v924
    %2602 = vmatprep.subr.bf16.mxu0 %v933
    %2603 = vmatpush1.bf16.msra.mxu0 %v932
    %2604 = vmatprep.subr.bf16.mxu0 %v941
    %2605 = vmatpush1.bf16.msra.mxu0 %v940
    %2606 = vmatprep.subr.bf16.mxu0 %v949
    %2607 = vmatpush1.bf16.msra.mxu0 %v948
    %2608 = vmatprep.subr.bf16.mxu0 %v957
    %2609 = vmatpush1.bf16.msra.mxu0 %v956
    %2610 = vmatprep.subr.bf16.mxu0 %v965
    %2611 = vmatpush1.bf16.msra.mxu0 %v964
    %2612 = vmatprep.subr.bf16.mxu0 %v973
    %2613 = vmatpush1.bf16.msra.mxu0 %v972
    %2614 = vmatprep.subr.bf16.mxu0 %v981
    %2615 = vmatpush1.bf16.msra.mxu0 %v980
    %2616 = vmatprep.subr.bf16.mxu0 %v989
    %2617 = vmatpush1.bf16.msra.mxu0 %v988
    %2618 = vmatprep.mubr.bf16.mxu0 %v845
    %2619 = vmatmul.mubr.bf16.gmra.mrb[0].mxu0 %v844
    %v2620 = vpop.f32.mrb[0].mxu0
    %v2621 = vadd.f32 %v1909, %v2620
    %v2622 = vpop.f32.mrb[0].mxu0
    %v2623 = vadd.f32 %v1913, %v2622
    %v2624 = vpop.f32.mrb[0].mxu0
    %v2625 = vpop.f32.mrb[0].mxu0
    %2626 = vdwg.mxu0
    %2627 = vmatprep.subr.bf16.mxu0 %v997
    %2628 = vmatpush1.bf16.msra.mxu0 %v996
    %2629 = vmatprep.subr.bf16.mxu0 %v1005
    %2630 = vmatpush1.bf16.msra.mxu0 %v1004
    %2631 = vmatprep.subr.bf16.mxu0 %v1013
    %2632 = vmatpush1.bf16.msra.mxu0 %v1012
    %2633 = vmatprep.subr.bf16.mxu0 %v1021
    %2634 = vmatpush1.bf16.msra.mxu0 %v1020
    %2635 = vmatprep.subr.bf16.mxu0 %v1029
    %2636 = vmatpush1.bf16.msra.mxu0 %v1028
    %2637 = vmatprep.subr.bf16.mxu0 %v1037
    %2638 = vmatpush1.bf16.msra.mxu0 %v1036
    %2639 = vmatprep.subr.bf16.mxu0 %v1045
    %2640 = vmatpush1.bf16.msra.mxu0 %v1044
    %2641 = vmatprep.subr.bf16.mxu0 %v1053
    %2642 = vmatpush1.bf16.msra.mxu0 %v1052
    %2643 = vmatprep.subr.bf16.mxu0 %v1061
    %2644 = vmatpush1.bf16.msra.mxu0 %v1060
    %2645 = vmatprep.subr.bf16.mxu0 %v1069
    %2646 = vmatpush1.bf16.msra.mxu0 %v1068
    %2647 = vmatprep.subr.bf16.mxu0 %v1077
    %2648 = vmatpush1.bf16.msra.mxu0 %v1076
    %2649 = vmatprep.subr.bf16.mxu0 %v1085
    %2650 = vmatpush1.bf16.msra.mxu0 %v1084
    %2651 = vmatprep.subr.bf16.mxu0 %v1093
    %2652 = vmatpush1.bf16.msra.mxu0 %v1092
    %2653 = vmatprep.subr.bf16.mxu0 %v1101
    %2654 = vmatpush1.bf16.msra.mxu0 %v1100
    %2655 = vmatprep.subr.bf16.mxu0 %v1109
    %2656 = vmatpush1.bf16.msra.mxu0 %v1108
    %2657 = vmatprep.subr.bf16.mxu0 %v1117
    %2658 = vmatpush1.bf16.msra.mxu0 %v1116
    %2659 = vmatprep.mubr.bf16.mxu0 %v847
    %2660 = vmatmul.mubr.bf16.gmra.mrb[0].mxu0 %v846
    %v2661 = vpop.f32.mrb[0].mxu0
    %v2662 = vadd.f32 %v2621, %v2661
    %v2663 = vpop.f32.mrb[0].mxu0
    %v2664 = vadd.f32 %v2623, %v2663
    %v2665 = vpop.f32.mrb[0].mxu0
    %v2666 = vpop.f32.mrb[0].mxu0
    %2667 = vdwg.mxu0
    %2668 = vmatprep.subr.bf16.mxu0 %v1125
    %2669 = vmatpush1.bf16.msra.mxu0 %v1124
    %2670 = vmatprep.subr.bf16.mxu0 %v1133
    %2671 = vmatpush1.bf16.msra.mxu0 %v1132
    %2672 = vmatprep.subr.bf16.mxu0 %v1141
    %2673 = vmatpush1.bf16.msra.mxu0 %v1140
    %2674 = vmatprep.subr.bf16.mxu0 %v1149
    %2675 = vmatpush1.bf16.msra.mxu0 %v1148
    %2676 = vmatprep.subr.bf16.mxu0 %v1157
    %2677 = vmatpush1.bf16.msra.mxu0 %v1156
    %2678 = vmatprep.subr.bf16.mxu0 %v1165
    %2679 = vmatpush1.bf16.msra.mxu0 %v1164
    %2680 = vmatprep.subr.bf16.mxu0 %v1173
    %2681 = vmatpush1.bf16.msra.mxu0 %v1172
    %2682 = vmatprep.subr.bf16.mxu0 %v1181
    %2683 = vmatpush1.bf16.msra.mxu0 %v1180
    %2684 = vmatprep.subr.bf16.mxu0 %v1189
    %2685 = vmatpush1.bf16.msra.mxu0 %v1188
    %2686 = vmatprep.subr.bf16.mxu0 %v1197
    %2687 = vmatpush1.bf16.msra.mxu0 %v1196
    %2688 = vmatprep.subr.bf16.mxu0 %v1205
    %2689 = vmatpush1.bf16.msra.mxu0 %v1204
    %2690 = vmatprep.subr.bf16.mxu0 %v1213
    %2691 = vmatpush1.bf16.msra.mxu0 %v1212
    %2692 = vmatprep.subr.bf16.mxu0 %v1221
    %2693 = vmatpush1.bf16.msra.mxu0 %v1220
    %2694 = vmatprep.subr.bf16.mxu0 %v1229
    %2695 = vmatpush1.bf16.msra.mxu0 %v1228
    %2696 = vmatprep.subr.bf16.mxu0 %v1237
    %2697 = vmatpush1.bf16.msra.mxu0 %v1236
    %2698 = vmatprep.subr.bf16.mxu0 %v1245
    %2699 = vmatpush1.bf16.msra.mxu0 %v1244
    %2700 = vmatprep.mubr.bf16.mxu0 %v849
    %2701 = vmatmul.mubr.bf16.gmra.mrb[0].mxu0 %v848
    %v2702 = vpop.f32.mrb[0].mxu0
    %v2703 = vadd.f32 %v2662, %v2702
    %v2704 = vpop.f32.mrb[0].mxu0
    %v2705 = vadd.f32 %v2664, %v2704
    %v2706 = vpop.f32.mrb[0].mxu0
    %v2707 = vpop.f32.mrb[0].mxu0
    %2708 = vdwg.mxu0
    %2709 = vmatprep.subr.bf16.mxu0 %v1253
    %2710 = vmatpush1.bf16.msra.mxu0 %v1252
    %2711 = vmatprep.subr.bf16.mxu0 %v1261
    %2712 = vmatpush1.bf16.msra.mxu0 %v1260
    %2713 = vmatprep.subr.bf16.mxu0 %v1269
    %2714 = vmatpush1.bf16.msra.mxu0 %v1268
    %2715 = vmatprep.subr.bf16.mxu0 %v1277
    %2716 = vmatpush1.bf16.msra.mxu0 %v1276
    %2717 = vmatprep.subr.bf16.mxu0 %v1285
    %2718 = vmatpush1.bf16.msra.mxu0 %v1284
    %2719 = vmatprep.subr.bf16.mxu0 %v1293
    %2720 = vmatpush1.bf16.msra.mxu0 %v1292
    %2721 = vmatprep.subr.bf16.mxu0 %v1301
    %2722 = vmatpush1.bf16.msra.mxu0 %v1300
    %2723 = vmatprep.subr.bf16.mxu0 %v1309
    %2724 = vmatpush1.bf16.msra.mxu0 %v1308
    %2725 = vmatprep.subr.bf16.mxu0 %v1317
    %2726 = vmatpush1.bf16.msra.mxu0 %v1316
    %2727 = vmatprep.subr.bf16.mxu0 %v1325
    %2728 = vmatpush1.bf16.msra.mxu0 %v1324
    %2729 = vmatprep.subr.bf16.mxu0 %v1333
    %2730 = vmatpush1.bf16.msra.mxu0 %v1332
    %2731 = vmatprep.subr.bf16.mxu0 %v1341
    %2732 = vmatpush1.bf16.msra.mxu0 %v1340
    %2733 = vmatprep.subr.bf16.mxu0 %v1349
    %2734 = vmatpush1.bf16.msra.mxu0 %v1348
    %2735 = vmatprep.subr.bf16.mxu0 %v1357
    %2736 = vmatpush1.bf16.msra.mxu0 %v1356
    %2737 = vmatprep.subr.bf16.mxu0 %v1365
    %2738 = vmatpush1.bf16.msra.mxu0 %v1364
    %2739 = vmatprep.subr.bf16.mxu0 %v1373
    %2740 = vmatpush1.bf16.msra.mxu0 %v1372
    %2741 = vmatprep.mubr.bf16.mxu0 %v851
    %2742 = vmatmul.mubr.bf16.gmra.mrb[0].mxu0 %v850
    %v2743 = vpop.f32.mrb[0].mxu0
    %v2744 = vadd.f32 %v2703, %v2743
    %v2745 = vpop.f32.mrb[0].mxu0
    %v2746 = vadd.f32 %v2705, %v2745
    %v2747 = vpop.f32.mrb[0].mxu0
    %v2748 = vpop.f32.mrb[0].mxu0
    %2749 = vdwg.mxu0
    %2750 = vmatprep.subr.bf16.mxu0 %v1381
    %2751 = vmatpush1.bf16.msra.mxu0 %v1380
    %2752 = vmatprep.subr.bf16.mxu0 %v1389
    %2753 = vmatpush1.bf16.msra.mxu0 %v1388
    %2754 = vmatprep.subr.bf16.mxu0 %v1397
    %2755 = vmatpush1.bf16.msra.mxu0 %v1396
    %2756 = vmatprep.subr.bf16.mxu0 %v1405
    %2757 = vmatpush1.bf16.msra.mxu0 %v1404
    %2758 = vmatprep.subr.bf16.mxu0 %v1413
    %2759 = vmatpush1.bf16.msra.mxu0 %v1412
    %2760 = vmatprep.subr.bf16.mxu0 %v1421
    %2761 = vmatpush1.bf16.msra.mxu0 %v1420
    %2762 = vmatprep.subr.bf16.mxu0 %v1429
    %2763 = vmatpush1.bf16.msra.mxu0 %v1428
    %2764 = vmatprep.subr.bf16.mxu0 %v1437
    %2765 = vmatpush1.bf16.msra.mxu0 %v1436
    %2766 = vmatprep.subr.bf16.mxu0 %v1445
    %2767 = vmatpush1.bf16.msra.mxu0 %v1444
    %2768 = vmatprep.subr.bf16.mxu0 %v1453
    %2769 = vmatpush1.bf16.msra.mxu0 %v1452
    %2770 = vmatprep.subr.bf16.mxu0 %v1461
    %2771 = vmatpush1.bf16.msra.mxu0 %v1460
    %2772 = vmatprep.subr.bf16.mxu0 %v1469
    %2773 = vmatpush1.bf16.msra.mxu0 %v1468
    %2774 = vmatprep.subr.bf16.mxu0 %v1477
    %2775 = vmatpush1.bf16.msra.mxu0 %v1476
    %2776 = vmatprep.subr.bf16.mxu0 %v1485
    %2777 = vmatpush1.bf16.msra.mxu0 %v1484
    %2778 = vmatprep.subr.bf16.mxu0 %v1493
    %2779 = vmatpush1.bf16.msra.mxu0 %v1492
    %2780 = vmatprep.subr.bf16.mxu0 %v1501
    %2781 = vmatpush1.bf16.msra.mxu0 %v1500
    %2782 = vmatprep.mubr.bf16.mxu0 %v853
    %2783 = vmatmul.mubr.bf16.gmra.mrb[0].mxu0 %v852
    %v2784 = vpop.f32.mrb[0].mxu0
    %v2785 = vadd.f32 %v2744, %v2784
    %v2786 = vpop.f32.mrb[0].mxu0
    %v2787 = vadd.f32 %v2746, %v2786
    %v2788 = vpop.f32.mrb[0].mxu0
    %v2789 = vpop.f32.mrb[0].mxu0
    %2790 = vdwg.mxu0
    %2791 = vmatprep.subr.bf16.mxu0 %v1509
    %2792 = vmatpush1.bf16.msra.mxu0 %v1508
    %2793 = vmatprep.subr.bf16.mxu0 %v1517
    %2794 = vmatpush1.bf16.msra.mxu0 %v1516
    %2795 = vmatprep.subr.bf16.mxu0 %v1525
    %2796 = vmatpush1.bf16.msra.mxu0 %v1524
    %2797 = vmatprep.subr.bf16.mxu0 %v1533
    %2798 = vmatpush1.bf16.msra.mxu0 %v1532
    %2799 = vmatprep.subr.bf16.mxu0 %v1541
    %2800 = vmatpush1.bf16.msra.mxu0 %v1540
    %2801 = vmatprep.subr.bf16.mxu0 %v1549
    %2802 = vmatpush1.bf16.msra.mxu0 %v1548
    %2803 = vmatprep.subr.bf16.mxu0 %v1557
    %2804 = vmatpush1.bf16.msra.mxu0 %v1556
    %2805 = vmatprep.subr.bf16.mxu0 %v1565
    %2806 = vmatpush1.bf16.msra.mxu0 %v1564
    %2807 = vmatprep.subr.bf16.mxu0 %v1573
    %2808 = vmatpush1.bf16.msra.mxu0 %v1572
    %2809 = vmatprep.subr.bf16.mxu0 %v1581
    %2810 = vmatpush1.bf16.msra.mxu0 %v1580
    %2811 = vmatprep.subr.bf16.mxu0 %v1589
    %2812 = vmatpush1.bf16.msra.mxu0 %v1588
    %2813 = vmatprep.subr.bf16.mxu0 %v1597
    %2814 = vmatpush1.bf16.msra.mxu0 %v1596
    %2815 = vmatprep.subr.bf16.mxu0 %v1605
    %2816 = vmatpush1.bf16.msra.mxu0 %v1604
    %2817 = vmatprep.subr.bf16.mxu0 %v1613
    %2818 = vmatpush1.bf16.msra.mxu0 %v1612
    %2819 = vmatprep.subr.bf16.mxu0 %v1621
    %2820 = vmatpush1.bf16.msra.mxu0 %v1620
    %2821 = vmatprep.subr.bf16.mxu0 %v1629
    %2822 = vmatpush1.bf16.msra.mxu0 %v1628
    %2823 = vmatprep.mubr.bf16.mxu0 %v855
    %2824 = vmatmul.mubr.bf16.gmra.mrb[0].mxu0 %v854
    %v2825 = vpop.f32.mrb[0].mxu0
    %v2826 = vadd.f32 %v2785, %v2825
    %v2827 = vpop.f32.mrb[0].mxu0
    %v2828 = vadd.f32 %v2787, %v2827
    %v2829 = vpop.f32.mrb[0].mxu0
    %v2830 = vpop.f32.mrb[0].mxu0
    %2831 = vdwg.mxu0
    %2832 = vmatprep.subr.bf16.mxu0 %v1637
    %2833 = vmatpush1.bf16.msra.mxu0 %v1636
    %2834 = vmatprep.subr.bf16.mxu0 %v1645
    %2835 = vmatpush1.bf16.msra.mxu0 %v1644
    %2836 = vmatprep.subr.bf16.mxu0 %v1653
    %2837 = vmatpush1.bf16.msra.mxu0 %v1652
    %2838 = vmatprep.subr.bf16.mxu0 %v1661
    %2839 = vmatpush1.bf16.msra.mxu0 %v1660
    %2840 = vmatprep.subr.bf16.mxu0 %v1669
    %2841 = vmatpush1.bf16.msra.mxu0 %v1668
    %2842 = vmatprep.subr.bf16.mxu0 %v1677
    %2843 = vmatpush1.bf16.msra.mxu0 %v1676
    %2844 = vmatprep.subr.bf16.mxu0 %v1685
    %2845 = vmatpush1.bf16.msra.mxu0 %v1684
    %2846 = vmatprep.subr.bf16.mxu0 %v1693
    %2847 = vmatpush1.bf16.msra.mxu0 %v1692
    %2848 = vmatprep.subr.bf16.mxu0 %v1701
    %2849 = vmatpush1.bf16.msra.mxu0 %v1700
    %2850 = vmatprep.subr.bf16.mxu0 %v1709
    %2851 = vmatpush1.bf16.msra.mxu0 %v1708
    %2852 = vmatprep.subr.bf16.mxu0 %v1717
    %2853 = vmatpush1.bf16.msra.mxu0 %v1716
    %2854 = vmatprep.subr.bf16.mxu0 %v1725
    %2855 = vmatpush1.bf16.msra.mxu0 %v1724
    %2856 = vmatprep.subr.bf16.mxu0 %v1733
    %2857 = vmatpush1.bf16.msra.mxu0 %v1732
    %2858 = vmatprep.subr.bf16.mxu0 %v1741
    %2859 = vmatpush1.bf16.msra.mxu0 %v1740
    %2860 = vmatprep.subr.bf16.mxu0 %v1749
    %2861 = vmatpush1.bf16.msra.mxu0 %v1748
    %2862 = vmatprep.subr.bf16.mxu0 %v1757
    %2863 = vmatpush1.bf16.msra.mxu0 %v1756
    %2864 = vmatprep.mubr.bf16.mxu0 %v857
    %2865 = vmatmul.mubr.bf16.gmra.mrb[0].mxu0 %v856
    %v2866 = vpop.f32.mrb[0].mxu0
    %v2867 = vadd.f32 %v2826, %v2866
    %v2868 = vpop.f32.mrb[0].mxu0
    %v2869 = vadd.f32 %v2828, %v2868
    %v2870 = vpop.f32.mrb[0].mxu0
    %v2871 = vpop.f32.mrb[0].mxu0
    %2872 = vdwg.mxu0
    %2873 = vmatprep.subr.bf16.mxu0 %v1765
    %2874 = vmatpush1.bf16.msra.mxu0 %v1764
    %2875 = vmatprep.subr.bf16.mxu0 %v1773
    %2876 = vmatpush1.bf16.msra.mxu0 %v1772
    %2877 = vmatprep.subr.bf16.mxu0 %v1781
    %2878 = vmatpush1.bf16.msra.mxu0 %v1780
    %2879 = vmatprep.subr.bf16.mxu0 %v1789
    %2880 = vmatpush1.bf16.msra.mxu0 %v1788
    %2881 = vmatprep.subr.bf16.mxu0 %v1797
    %2882 = vmatpush1.bf16.msra.mxu0 %v1796
    %2883 = vmatprep.subr.bf16.mxu0 %v1805
    %2884 = vmatpush1.bf16.msra.mxu0 %v1804
    %2885 = vmatprep.subr.bf16.mxu0 %v1813
    %2886 = vmatpush1.bf16.msra.mxu0 %v1812
    %2887 = vmatprep.subr.bf16.mxu0 %v1821
    %2888 = vmatpush1.bf16.msra.mxu0 %v1820
    %2889 = vmatprep.subr.bf16.mxu0 %v1829
    %2890 = vmatpush1.bf16.msra.mxu0 %v1828
    %2891 = vmatprep.subr.bf16.mxu0 %v1837
    %2892 = vmatpush1.bf16.msra.mxu0 %v1836
    %2893 = vmatprep.subr.bf16.mxu0 %v1845
    %2894 = vmatpush1.bf16.msra.mxu0 %v1844
    %2895 = vmatprep.subr.bf16.mxu0 %v1853
    %2896 = vmatpush1.bf16.msra.mxu0 %v1852
    %2897 = vmatprep.subr.bf16.mxu0 %v1861
    %2898 = vmatpush1.bf16.msra.mxu0 %v1860
    %2899 = vmatprep.subr.bf16.mxu0 %v1869
    %2900 = vmatpush1.bf16.msra.mxu0 %v1868
    %2901 = vmatprep.subr.bf16.mxu0 %v1877
    %2902 = vmatpush1.bf16.msra.mxu0 %v1876
    %2903 = vmatprep.subr.bf16.mxu0 %v1885
    %2904 = vmatpush1.bf16.msra.mxu0 %v1884
    %2905 = vmatprep.mubr.bf16.mxu0 %v859
    %2906 = vmatmul.mubr.bf16.gmra.mrb[0].mxu0 %v858
    %v2907 = vpop.f32.mrb[0].mxu0
    %v2908 = vadd.f32 %v2867, %v2907
    %v2909 = vpop.f32.mrb[0].mxu0
    %v2910 = vadd.f32 %v2869, %v2909
    %v2911 = vpop.f32.mrb[0].mxu0
    %v2912 = vpop.f32.mrb[0].mxu0
    %2913 = vdwg.mxu0
    %2914 = vmatprep.subr.bf16.mxu0 %v871
    %2915 = vmatpush1.bf16.msra.mxu0 %v870
    %2916 = vmatprep.subr.bf16.mxu0 %v879
    %2917 = vmatpush1.bf16.msra.mxu0 %v878
    %2918 = vmatprep.subr.bf16.mxu0 %v887
    %2919 = vmatpush1.bf16.msra.mxu0 %v886
    %2920 = vmatprep.subr.bf16.mxu0 %v895
    %2921 = vmatpush1.bf16.msra.mxu0 %v894
    %2922 = vmatprep.subr.bf16.mxu0 %v903
    %2923 = vmatpush1.bf16.msra.mxu0 %v902
    %2924 = vmatprep.subr.bf16.mxu0 %v911
    %2925 = vmatpush1.bf16.msra.mxu0 %v910
    %2926 = vmatprep.subr.bf16.mxu0 %v919
    %2927 = vmatpush1.bf16.msra.mxu0 %v918
    %2928 = vmatprep.subr.bf16.mxu0 %v927
    %2929 = vmatpush1.bf16.msra.mxu0 %v926
    %2930 = vmatprep.subr.bf16.mxu0 %v935
    %2931 = vmatpush1.bf16.msra.mxu0 %v934
    %2932 = vmatprep.subr.bf16.mxu0 %v943
    %2933 = vmatpush1.bf16.msra.mxu0 %v942
    %2934 = vmatprep.subr.bf16.mxu0 %v951
    %2935 = vmatpush1.bf16.msra.mxu0 %v950
    %2936 = vmatprep.subr.bf16.mxu0 %v959
    %2937 = vmatpush1.bf16.msra.mxu0 %v958
    %2938 = vmatprep.subr.bf16.mxu0 %v967
    %2939 = vmatpush1.bf16.msra.mxu0 %v966
    %2940 = vmatprep.subr.bf16.mxu0 %v975
    %2941 = vmatpush1.bf16.msra.mxu0 %v974
    %2942 = vmatprep.subr.bf16.mxu0 %v983
    %2943 = vmatpush1.bf16.msra.mxu0 %v982
    %2944 = vmatprep.subr.bf16.mxu0 %v991
    %2945 = vmatpush1.bf16.msra.mxu0 %v990
    %2946 = vmatprep.mubr.bf16.mxu0 %v845
    %2947 = vmatmul.mubr.bf16.gmra.mrb[0].mxu0 %v844
    %v2948 = vpop.f32.mrb[0].mxu0
    %v2949 = vadd.f32 %v1917, %v2948
    %v2950 = vpop.f32.mrb[0].mxu0
    %v2951 = vadd.f32 %v1921, %v2950
    %v2952 = vpop.f32.mrb[0].mxu0
    %v2953 = vpop.f32.mrb[0].mxu0
    %2954 = vdwg.mxu0
    %2955 = vmatprep.subr.bf16.mxu0 %v999
    %2956 = vmatpush1.bf16.msra.mxu0 %v998
    %2957 = vmatprep.subr.bf16.mxu0 %v1007
    %2958 = vmatpush1.bf16.msra.mxu0 %v1006
    %2959 = vmatprep.subr.bf16.mxu0 %v1015
    %2960 = vmatpush1.bf16.msra.mxu0 %v1014
    %2961 = vmatprep.subr.bf16.mxu0 %v1023
    %2962 = vmatpush1.bf16.msra.mxu0 %v1022
    %2963 = vmatprep.subr.bf16.mxu0 %v1031
    %2964 = vmatpush1.bf16.msra.mxu0 %v1030
    %2965 = vmatprep.subr.bf16.mxu0 %v1039
    %2966 = vmatpush1.bf16.msra.mxu0 %v1038
    %2967 = vmatprep.subr.bf16.mxu0 %v1047
    %2968 = vmatpush1.bf16.msra.mxu0 %v1046
    %2969 = vmatprep.subr.bf16.mxu0 %v1055
    %2970 = vmatpush1.bf16.msra.mxu0 %v1054
    %2971 = vmatprep.subr.bf16.mxu0 %v1063
    %2972 = vmatpush1.bf16.msra.mxu0 %v1062
    %2973 = vmatprep.subr.bf16.mxu0 %v1071
    %2974 = vmatpush1.bf16.msra.mxu0 %v1070
    %2975 = vmatprep.subr.bf16.mxu0 %v1079
    %2976 = vmatpush1.bf16.msra.mxu0 %v1078
    %2977 = vmatprep.subr.bf16.mxu0 %v1087
    %2978 = vmatpush1.bf16.msra.mxu0 %v1086
    %2979 = vmatprep.subr.bf16.mxu0 %v1095
    %2980 = vmatpush1.bf16.msra.mxu0 %v1094
    %2981 = vmatprep.subr.bf16.mxu0 %v1103
    %2982 = vmatpush1.bf16.msra.mxu0 %v1102
    %2983 = vmatprep.subr.bf16.mxu0 %v1111
    %2984 = vmatpush1.bf16.msra.mxu0 %v1110
    %2985 = vmatprep.subr.bf16.mxu0 %v1119
    %2986 = vmatpush1.bf16.msra.mxu0 %v1118
    %2987 = vmatprep.mubr.bf16.mxu0 %v847
    %2988 = vmatmul.mubr.bf16.gmra.mrb[0].mxu0 %v846
    %v2989 = vpop.f32.mrb[0].mxu0
    %v2990 = vadd.f32 %v2949, %v2989
    %v2991 = vpop.f32.mrb[0].mxu0
    %v2992 = vadd.f32 %v2951, %v2991
    %v2993 = vpop.f32.mrb[0].mxu0
    %v2994 = vpop.f32.mrb[0].mxu0
    %2995 = vdwg.mxu0
    %2996 = vmatprep.subr.bf16.mxu0 %v1127
    %2997 = vmatpush1.bf16.msra.mxu0 %v1126
    %2998 = vmatprep.subr.bf16.mxu0 %v1135
    %2999 = vmatpush1.bf16.msra.mxu0 %v1134
    %3000 = vmatprep.subr.bf16.mxu0 %v1143
    %3001 = vmatpush1.bf16.msra.mxu0 %v1142
    %3002 = vmatprep.subr.bf16.mxu0 %v1151
    %3003 = vmatpush1.bf16.msra.mxu0 %v1150
    %3004 = vmatprep.subr.bf16.mxu0 %v1159
    %3005 = vmatpush1.bf16.msra.mxu0 %v1158
    %3006 = vmatprep.subr.bf16.mxu0 %v1167
    %3007 = vmatpush1.bf16.msra.mxu0 %v1166
    %3008 = vmatprep.subr.bf16.mxu0 %v1175
    %3009 = vmatpush1.bf16.msra.mxu0 %v1174
    %3010 = vmatprep.subr.bf16.mxu0 %v1183
    %3011 = vmatpush1.bf16.msra.mxu0 %v1182
    %3012 = vmatprep.subr.bf16.mxu0 %v1191
    %3013 = vmatpush1.bf16.msra.mxu0 %v1190
    %3014 = vmatprep.subr.bf16.mxu0 %v1199
    %3015 = vmatpush1.bf16.msra.mxu0 %v1198
    %3016 = vmatprep.subr.bf16.mxu0 %v1207
    %3017 = vmatpush1.bf16.msra.mxu0 %v1206
    %3018 = vmatprep.subr.bf16.mxu0 %v1215
    %3019 = vmatpush1.bf16.msra.mxu0 %v1214
    %3020 = vmatprep.subr.bf16.mxu0 %v1223
    %3021 = vmatpush1.bf16.msra.mxu0 %v1222
    %3022 = vmatprep.subr.bf16.mxu0 %v1231
    %3023 = vmatpush1.bf16.msra.mxu0 %v1230
    %3024 = vmatprep.subr.bf16.mxu0 %v1239
    %3025 = vmatpush1.bf16.msra.mxu0 %v1238
    %3026 = vmatprep.subr.bf16.mxu0 %v1247
    %3027 = vmatpush1.bf16.msra.mxu0 %v1246
    %3028 = vmatprep.mubr.bf16.mxu0 %v849
    %3029 = vmatmul.mubr.bf16.gmra.mrb[0].mxu0 %v848
    %v3030 = vpop.f32.mrb[0].mxu0
    %v3031 = vadd.f32 %v2990, %v3030
    %v3032 = vpop.f32.mrb[0].mxu0
    %v3033 = vadd.f32 %v2992, %v3032
    %v3034 = vpop.f32.mrb[0].mxu0
    %v3035 = vpop.f32.mrb[0].mxu0
    %3036 = vdwg.mxu0
    %3037 = vmatprep.subr.bf16.mxu0 %v1255
    %3038 = vmatpush1.bf16.msra.mxu0 %v1254
    %3039 = vmatprep.subr.bf16.mxu0 %v1263
    %3040 = vmatpush1.bf16.msra.mxu0 %v1262
    %3041 = vmatprep.subr.bf16.mxu0 %v1271
    %3042 = vmatpush1.bf16.msra.mxu0 %v1270
    %3043 = vmatprep.subr.bf16.mxu0 %v1279
    %3044 = vmatpush1.bf16.msra.mxu0 %v1278
    %3045 = vmatprep.subr.bf16.mxu0 %v1287
    %3046 = vmatpush1.bf16.msra.mxu0 %v1286
    %3047 = vmatprep.subr.bf16.mxu0 %v1295
    %3048 = vmatpush1.bf16.msra.mxu0 %v1294
    %3049 = vmatprep.subr.bf16.mxu0 %v1303
    %3050 = vmatpush1.bf16.msra.mxu0 %v1302
    %3051 = vmatprep.subr.bf16.mxu0 %v1311
    %3052 = vmatpush1.bf16.msra.mxu0 %v1310
    %3053 = vmatprep.subr.bf16.mxu0 %v1319
    %3054 = vmatpush1.bf16.msra.mxu0 %v1318
    %3055 = vmatprep.subr.bf16.mxu0 %v1327
    %3056 = vmatpush1.bf16.msra.mxu0 %v1326
    %3057 = vmatprep.subr.bf16.mxu0 %v1335
    %3058 = vmatpush1.bf16.msra.mxu0 %v1334
    %3059 = vmatprep.subr.bf16.mxu0 %v1343
    %3060 = vmatpush1.bf16.msra.mxu0 %v1342
    %3061 = vmatprep.subr.bf16.mxu0 %v1351
    %3062 = vmatpush1.bf16.msra.mxu0 %v1350
    %3063 = vmatprep.subr.bf16.mxu0 %v1359
    %3064 = vmatpush1.bf16.msra.mxu0 %v1358
    %3065 = vmatprep.subr.bf16.mxu0 %v1367
    %3066 = vmatpush1.bf16.msra.mxu0 %v1366
    %3067 = vmatprep.subr.bf16.mxu0 %v1375
    %3068 = vmatpush1.bf16.msra.mxu0 %v1374
    %3069 = vmatprep.mubr.bf16.mxu0 %v851
    %3070 = vmatmul.mubr.bf16.gmra.mrb[0].mxu0 %v850
    %v3071 = vpop.f32.mrb[0].mxu0
    %v3072 = vadd.f32 %v3031, %v3071
    %v3073 = vpop.f32.mrb[0].mxu0
    %v3074 = vadd.f32 %v3033, %v3073
    %v3075 = vpop.f32.mrb[0].mxu0
    %v3076 = vpop.f32.mrb[0].mxu0
    %3077 = vdwg.mxu0
    %3078 = vmatprep.subr.bf16.mxu0 %v1383
    %3079 = vmatpush1.bf16.msra.mxu0 %v1382
    %3080 = vmatprep.subr.bf16.mxu0 %v1391
    %3081 = vmatpush1.bf16.msra.mxu0 %v1390
    %3082 = vmatprep.subr.bf16.mxu0 %v1399
    %3083 = vmatpush1.bf16.msra.mxu0 %v1398
    %3084 = vmatprep.subr.bf16.mxu0 %v1407
    %3085 = vmatpush1.bf16.msra.mxu0 %v1406
    %3086 = vmatprep.subr.bf16.mxu0 %v1415
    %3087 = vmatpush1.bf16.msra.mxu0 %v1414
    %3088 = vmatprep.subr.bf16.mxu0 %v1423
    %3089 = vmatpush1.bf16.msra.mxu0 %v1422
    %3090 = vmatprep.subr.bf16.mxu0 %v1431
    %3091 = vmatpush1.bf16.msra.mxu0 %v1430
    %3092 = vmatprep.subr.bf16.mxu0 %v1439
    %3093 = vmatpush1.bf16.msra.mxu0 %v1438
    %3094 = vmatprep.subr.bf16.mxu0 %v1447
    %3095 = vmatpush1.bf16.msra.mxu0 %v1446
    %3096 = vmatprep.subr.bf16.mxu0 %v1455
    %3097 = vmatpush1.bf16.msra.mxu0 %v1454
    %3098 = vmatprep.subr.bf16.mxu0 %v1463
    %3099 = vmatpush1.bf16.msra.mxu0 %v1462
    %3100 = vmatprep.subr.bf16.mxu0 %v1471
    %3101 = vmatpush1.bf16.msra.mxu0 %v1470
    %3102 = vmatprep.subr.bf16.mxu0 %v1479
    %3103 = vmatpush1.bf16.msra.mxu0 %v1478
    %3104 = vmatprep.subr.bf16.mxu0 %v1487
    %3105 = vmatpush1.bf16.msra.mxu0 %v1486
    %3106 = vmatprep.subr.bf16.mxu0 %v1495
    %3107 = vmatpush1.bf16.msra.mxu0 %v1494
    %3108 = vmatprep.subr.bf16.mxu0 %v1503
    %3109 = vmatpush1.bf16.msra.mxu0 %v1502
    %3110 = vmatprep.mubr.bf16.mxu0 %v853
    %3111 = vmatmul.mubr.bf16.gmra.mrb[0].mxu0 %v852
    %v3112 = vpop.f32.mrb[0].mxu0
    %v3113 = vadd.f32 %v3072, %v3112
    %v3114 = vpop.f32.mrb[0].mxu0
    %v3115 = vadd.f32 %v3074, %v3114
    %v3116 = vpop.f32.mrb[0].mxu0
    %v3117 = vpop.f32.mrb[0].mxu0
    %3118 = vdwg.mxu0
    %3119 = vmatprep.subr.bf16.mxu0 %v1511
    %3120 = vmatpush1.bf16.msra.mxu0 %v1510
    %3121 = vmatprep.subr.bf16.mxu0 %v1519
    %3122 = vmatpush1.bf16.msra.mxu0 %v1518
    %3123 = vmatprep.subr.bf16.mxu0 %v1527
    %3124 = vmatpush1.bf16.msra.mxu0 %v1526
    %3125 = vmatprep.subr.bf16.mxu0 %v1535
    %3126 = vmatpush1.bf16.msra.mxu0 %v1534
    %3127 = vmatprep.subr.bf16.mxu0 %v1543
    %3128 = vmatpush1.bf16.msra.mxu0 %v1542
    %3129 = vmatprep.subr.bf16.mxu0 %v1551
    %3130 = vmatpush1.bf16.msra.mxu0 %v1550
    %3131 = vmatprep.subr.bf16.mxu0 %v1559
    %3132 = vmatpush1.bf16.msra.mxu0 %v1558
    %3133 = vmatprep.subr.bf16.mxu0 %v1567
    %3134 = vmatpush1.bf16.msra.mxu0 %v1566
    %3135 = vmatprep.subr.bf16.mxu0 %v1575
    %3136 = vmatpush1.bf16.msra.mxu0 %v1574
    %3137 = vmatprep.subr.bf16.mxu0 %v1583
    %3138 = vmatpush1.bf16.msra.mxu0 %v1582
    %3139 = vmatprep.subr.bf16.mxu0 %v1591
    %3140 = vmatpush1.bf16.msra.mxu0 %v1590
    %3141 = vmatprep.subr.bf16.mxu0 %v1599
    %3142 = vmatpush1.bf16.msra.mxu0 %v1598
    %3143 = vmatprep.subr.bf16.mxu0 %v1607
    %3144 = vmatpush1.bf16.msra.mxu0 %v1606
    %3145 = vmatprep.subr.bf16.mxu0 %v1615
    %3146 = vmatpush1.bf16.msra.mxu0 %v1614
    %3147 = vmatprep.subr.bf16.mxu0 %v1623
    %3148 = vmatpush1.bf16.msra.mxu0 %v1622
    %3149 = vmatprep.subr.bf16.mxu0 %v1631
    %3150 = vmatpush1.bf16.msra.mxu0 %v1630
    %3151 = vmatprep.mubr.bf16.mxu0 %v855
    %3152 = vmatmul.mubr.bf16.gmra.mrb[0].mxu0 %v854
    %v3153 = vpop.f32.mrb[0].mxu0
    %v3154 = vadd.f32 %v3113, %v3153
    %v3155 = vpop.f32.mrb[0].mxu0
    %v3156 = vadd.f32 %v3115, %v3155
    %v3157 = vpop.f32.mrb[0].mxu0
    %v3158 = vpop.f32.mrb[0].mxu0
    %3159 = vdwg.mxu0
    %3160 = vmatprep.subr.bf16.mxu0 %v1639
    %3161 = vmatpush1.bf16.msra.mxu0 %v1638
    %3162 = vmatprep.subr.bf16.mxu0 %v1647
    %3163 = vmatpush1.bf16.msra.mxu0 %v1646
    %3164 = vmatprep.subr.bf16.mxu0 %v1655
    %3165 = vmatpush1.bf16.msra.mxu0 %v1654
    %3166 = vmatprep.subr.bf16.mxu0 %v1663
    %3167 = vmatpush1.bf16.msra.mxu0 %v1662
    %3168 = vmatprep.subr.bf16.mxu0 %v1671
    %3169 = vmatpush1.bf16.msra.mxu0 %v1670
    %3170 = vmatprep.subr.bf16.mxu0 %v1679
    %3171 = vmatpush1.bf16.msra.mxu0 %v1678
    %3172 = vmatprep.subr.bf16.mxu0 %v1687
    %3173 = vmatpush1.bf16.msra.mxu0 %v1686
    %3174 = vmatprep.subr.bf16.mxu0 %v1695
    %3175 = vmatpush1.bf16.msra.mxu0 %v1694
    %3176 = vmatprep.subr.bf16.mxu0 %v1703
    %3177 = vmatpush1.bf16.msra.mxu0 %v1702
    %3178 = vmatprep.subr.bf16.mxu0 %v1711
    %3179 = vmatpush1.bf16.msra.mxu0 %v1710
    %3180 = vmatprep.subr.bf16.mxu0 %v1719
    %3181 = vmatpush1.bf16.msra.mxu0 %v1718
    %3182 = vmatprep.subr.bf16.mxu0 %v1727
    %3183 = vmatpush1.bf16.msra.mxu0 %v1726
    %3184 = vmatprep.subr.bf16.mxu0 %v1735
    %3185 = vmatpush1.bf16.msra.mxu0 %v1734
    %3186 = vmatprep.subr.bf16.mxu0 %v1743
    %3187 = vmatpush1.bf16.msra.mxu0 %v1742
    %3188 = vmatprep.subr.bf16.mxu0 %v1751
    %3189 = vmatpush1.bf16.msra.mxu0 %v1750
    %3190 = vmatprep.subr.bf16.mxu0 %v1759
    %3191 = vmatpush1.bf16.msra.mxu0 %v1758
    %3192 = vmatprep.mubr.bf16.mxu0 %v857
    %3193 = vmatmul.mubr.bf16.gmra.mrb[0].mxu0 %v856
    %v3194 = vpop.f32.mrb[0].mxu0
    %v3195 = vadd.f32 %v3154, %v3194
    %v3196 = vpop.f32.mrb[0].mxu0
    %v3197 = vadd.f32 %v3156, %v3196
    %v3198 = vpop.f32.mrb[0].mxu0
    %v3199 = vpop.f32.mrb[0].mxu0
    %3200 = vdwg.mxu0
    %3201 = vmatprep.subr.bf16.mxu0 %v1767
    %3202 = vmatpush1.bf16.msra.mxu0 %v1766
    %3203 = vmatprep.subr.bf16.mxu0 %v1775
    %3204 = vmatpush1.bf16.msra.mxu0 %v1774
    %3205 = vmatprep.subr.bf16.mxu0 %v1783
    %3206 = vmatpush1.bf16.msra.mxu0 %v1782
    %3207 = vmatprep.subr.bf16.mxu0 %v1791
    %3208 = vmatpush1.bf16.msra.mxu0 %v1790
    %3209 = vmatprep.subr.bf16.mxu0 %v1799
    %3210 = vmatpush1.bf16.msra.mxu0 %v1798
    %3211 = vmatprep.subr.bf16.mxu0 %v1807
    %3212 = vmatpush1.bf16.msra.mxu0 %v1806
    %3213 = vmatprep.subr.bf16.mxu0 %v1815
    %3214 = vmatpush1.bf16.msra.mxu0 %v1814
    %3215 = vmatprep.subr.bf16.mxu0 %v1823
    %3216 = vmatpush1.bf16.msra.mxu0 %v1822
    %3217 = vmatprep.subr.bf16.mxu0 %v1831
    %3218 = vmatpush1.bf16.msra.mxu0 %v1830
    %3219 = vmatprep.subr.bf16.mxu0 %v1839
    %3220 = vmatpush1.bf16.msra.mxu0 %v1838
    %3221 = vmatprep.subr.bf16.mxu0 %v1847
    %3222 = vmatpush1.bf16.msra.mxu0 %v1846
    %3223 = vmatprep.subr.bf16.mxu0 %v1855
    %3224 = vmatpush1.bf16.msra.mxu0 %v1854
    %3225 = vmatprep.subr.bf16.mxu0 %v1863
    %3226 = vmatpush1.bf16.msra.mxu0 %v1862
    %3227 = vmatprep.subr.bf16.mxu0 %v1871
    %3228 = vmatpush1.bf16.msra.mxu0 %v1870
    %3229 = vmatprep.subr.bf16.mxu0 %v1879
    %3230 = vmatpush1.bf16.msra.mxu0 %v1878
    %3231 = vmatprep.subr.bf16.mxu0 %v1887
    %3232 = vmatpush1.bf16.msra.mxu0 %v1886
    %3233 = vmatprep.mubr.bf16.mxu0 %v859
    %3234 = vmatmul.mubr.bf16.gmra.mrb[0].mxu0 %v858
    %v3235 = vpop.f32.mrb[0].mxu0
    %v3236 = vadd.f32 %v3195, %v3235
    %v3237 = vpop.f32.mrb[0].mxu0
    %v3238 = vadd.f32 %v3197, %v3237
    %v3239 = vpop.f32.mrb[0].mxu0
    %v3240 = vpop.f32.mrb[0].mxu0
    %3241 = vdwg.mxu0
    %v3242 = vmax.f32 %v2252, 0.0
    %v3243 = vmax.f32 %v2254, 0.0
    %v3244 = vmax.f32 %v2580, 0.0
    %v3245 = vmax.f32 %v2582, 0.0
    %v3246 = vmax.f32 %v2908, 0.0
    %v3247 = vmax.f32 %v2910, 0.0
    %v3248 = vmax.f32 %v3236, 0.0
    %v3249 = vmax.f32 %v3238, 0.0
    %v3250 = vpack.c.bf16 %v3242, %v3242
    %v3251 = vpack.c.bf16 %v3243, %v3243
    %v3252 = vpack.c.bf16 %v3244, %v3244
    %v3253 = vpack.c.bf16 %v3245, %v3245
    %v3254 = vpack.c.bf16 %v3246, %v3246
    %v3255 = vpack.c.bf16 %v3247, %v3247
    %v3256 = vpack.c.bf16 %v3248, %v3248
    %v3257 = vpack.c.bf16 %v3249, %v3249
    %v3258 = vld [vmem:[#allocation10] sm:$0xff]
    %v3259 = vld [vmem:[#allocation10 + $0x8] sm:$0xff]
    %v3260 = vld [vmem:[#allocation10 + $0x10] sm:$0xff]
    %v3261 = vld [vmem:[#allocation10 + $0x18] sm:$0xff]
    %v3262 = vld [vmem:[#allocation10 + $0x20] sm:$0x11]
    %v3263 = vld [vmem:[#allocation10 + $0x28] sm:$0x11]
    %v3264 = vld [vmem:[#allocation10 + $0x30] sm:$0x11]
    %v3265 = vld [vmem:[#allocation10 + $0x38] sm:$0x11]
    %v3266 = vld [vmem:[#allocation12] sm:$0x1]
    %v3268 = vlaneseq
    %v3269 = vshrl.u32 %v3268, 7
    %v3270 = vsub.s32 0, %v3269
    %v3271 = vrot.slane %v3266, %v3270
    %v3281 = vunpack.c.l.b16 %v3258
    %v3282 = vunpack.c.h.b16 %v3258
    %v3283 = vunpack.c.l.b16 %v3259
    %v3284 = vunpack.c.h.b16 %v3259
    %v3285 = vunpack.c.l.b16 %v3260
    %v3286 = vunpack.c.h.b16 %v3260
    %v3287 = vunpack.c.l.b16 %v3261
    %v3288 = vunpack.c.h.b16 %v3261
    %v3289 = vunpack.c.l.b16 %v3262
    %v3290 = vunpack.c.h.b16 %v3262
    %v3291 = vunpack.c.l.b16 %v3263
    %v3292 = vunpack.c.h.b16 %v3263
    %v3293 = vunpack.c.l.b16 %v3264
    %v3294 = vunpack.c.h.b16 %v3264
    %v3295 = vunpack.c.l.b16 %v3265
    %v3296 = vunpack.c.h.b16 %v3265
    %v3297 = vpack.c.b16 %v3289, %v3281
    %v3298 = vpack.c.b16 %v3290, %v3282
    %v3299 = vpack.c.b16 %v3291, %v3283
    %v3300 = vpack.c.b16 %v3292, %v3284
    %v3301 = vpack.c.b16 %v3293, %v3285
    %v3302 = vpack.c.b16 %v3294, %v3286
    %v3303 = vpack.c.b16 %v3295, %v3287
    %v3304 = vpack.c.b16 %v3296, %v3288
    %3313 = vmatprep.subr.bf16.mxu0 %v3298
    %3314 = vmatpush1.bf16.xpose.msra.mxu0 %v3297
    %3315 = vmatprep.subr.bf16.mxu0 0
    %3316 = vmatpush1.bf16.xpose.msra.mxu0 0
    %3317 = vmatprep.subr.bf16.mxu0 0
    %3318 = vmatpush1.bf16.xpose.msra.mxu0 0
    %3319 = vmatprep.subr.bf16.mxu0 0
    %3320 = vmatpush1.bf16.xpose.msra.mxu0 0
    %3321 = vmatprep.subr.bf16.mxu0 0
    %3322 = vmatpush1.bf16.xpose.msra.mxu0 0
    %3323 = vmatprep.subr.bf16.mxu0 0
    %3324 = vmatpush1.bf16.xpose.msra.mxu0 0
    %3325 = vmatprep.subr.bf16.mxu0 0
    %3326 = vmatpush1.bf16.xpose.msra.mxu0 0
    %3327 = vmatprep.subr.bf16.mxu0 0
    %3328 = vmatpush1.bf16.xpose.msra.mxu0 0
    %3329 = vmatprep.subr.bf16.mxu0 0
    %3330 = vmatpush1.bf16.xpose.msra.mxu0 0
    %3331 = vmatprep.subr.bf16.mxu0 0
    %3332 = vmatpush1.bf16.xpose.msra.mxu0 0
    %3333 = vmatprep.subr.bf16.mxu0 0
    %3334 = vmatpush1.bf16.xpose.msra.mxu0 0
    %3335 = vmatprep.subr.bf16.mxu0 0
    %3336 = vmatpush1.bf16.xpose.msra.mxu0 0
    %3337 = vmatprep.subr.bf16.mxu0 0
    %3338 = vmatpush1.bf16.xpose.msra.mxu0 0
    %3339 = vmatprep.subr.bf16.mxu0 0
    %3340 = vmatpush1.bf16.xpose.msra.mxu0 0
    %3341 = vmatprep.subr.bf16.mxu0 0
    %3342 = vmatpush1.bf16.xpose.msra.mxu0 0
    %3343 = vmatprep.subr.bf16.mxu0 0
    %3344 = vmatpush1.bf16.xpose.msra.mxu0 0
    %3345 = vmatprep.mubr.bf16.mxu0 %v3251
    %3346 = vmatmul.mubr.bf16.gmra.mrb[0].mxu0 %v3250
    %v3347 = vpop.f32.mrb[0].mxu0
    %v3348 = vadd.f32 %v3271, %v3347
    %v3349 = vpop.f32.mrb[0].mxu0
    %v3350 = vpop.f32.mrb[0].mxu0
    %v3351 = vpop.f32.mrb[0].mxu0
    %3352 = vdwg.mxu0
    %3353 = vmatprep.subr.bf16.mxu0 %v3300
    %3354 = vmatpush1.bf16.xpose.msra.mxu0 %v3299
    %3355 = vmatprep.subr.bf16.mxu0 0
    %3356 = vmatpush1.bf16.xpose.msra.mxu0 0
    %3357 = vmatprep.subr.bf16.mxu0 0
    %3358 = vmatpush1.bf16.xpose.msra.mxu0 0
    %3359 = vmatprep.subr.bf16.mxu0 0
    %3360 = vmatpush1.bf16.xpose.msra.mxu0 0
    %3361 = vmatprep.subr.bf16.mxu0 0
    %3362 = vmatpush1.bf16.xpose.msra.mxu0 0
    %3363 = vmatprep.subr.bf16.mxu0 0
    %3364 = vmatpush1.bf16.xpose.msra.mxu0 0
    %3365 = vmatprep.subr.bf16.mxu0 0
    %3366 = vmatpush1.bf16.xpose.msra.mxu0 0
    %3367 = vmatprep.subr.bf16.mxu0 0
    %3368 = vmatpush1.bf16.xpose.msra.mxu0 0
    %3369 = vmatprep.subr.bf16.mxu0 0
    %3370 = vmatpush1.bf16.xpose.msra.mxu0 0
    %3371 = vmatprep.subr.bf16.mxu0 0
    %3372 = vmatpush1.bf16.xpose.msra.mxu0 0
    %3373 = vmatprep.subr.bf16.mxu0 0
    %3374 = vmatpush1.bf16.xpose.msra.mxu0 0
    %3375 = vmatprep.subr.bf16.mxu0 0
    %3376 = vmatpush1.bf16.xpose.msra.mxu0 0
    %3377 = vmatprep.subr.bf16.mxu0 0
    %3378 = vmatpush1.bf16.xpose.msra.mxu0 0
    %3379 = vmatprep.subr.bf16.mxu0 0
    %3380 = vmatpush1.bf16.xpose.msra.mxu0 0
    %3381 = vmatprep.subr.bf16.mxu0 0
    %3382 = vmatpush1.bf16.xpose.msra.mxu0 0
    %3383 = vmatprep.subr.bf16.mxu0 0
    %3384 = vmatpush1.bf16.xpose.msra.mxu0 0
    %3385 = vmatprep.mubr.bf16.mxu0 %v3253
    %3386 = vmatmul.mubr.bf16.gmra.mrb[0].mxu0 %v3252
    %v3387 = vpop.f32.mrb[0].mxu0
    %v3388 = vadd.f32 %v3348, %v3387
    %v3389 = vpop.f32.mrb[0].mxu0
    %v3390 = vpop.f32.mrb[0].mxu0
    %v3391 = vpop.f32.mrb[0].mxu0
    %3392 = vdwg.mxu0
    %3393 = vmatprep.subr.bf16.mxu0 %v3302
    %3394 = vmatpush1.bf16.xpose.msra.mxu0 %v3301
    %3395 = vmatprep.subr.bf16.mxu0 0
    %3396 = vmatpush1.bf16.xpose.msra.mxu0 0
    %3397 = vmatprep.subr.bf16.mxu0 0
    %3398 = vmatpush1.bf16.xpose.msra.mxu0 0
    %3399 = vmatprep.subr.bf16.mxu0 0
    %3400 = vmatpush1.bf16.xpose.msra.mxu0 0
    %3401 = vmatprep.subr.bf16.mxu0 0
    %3402 = vmatpush1.bf16.xpose.msra.mxu0 0
    %3403 = vmatprep.subr.bf16.mxu0 0
    %3404 = vmatpush1.bf16.xpose.msra.mxu0 0
    %3405 = vmatprep.subr.bf16.mxu0 0
    %3406 = vmatpush1.bf16.xpose.msra.mxu0 0
    %3407 = vmatprep.subr.bf16.mxu0 0
    %3408 = vmatpush1.bf16.xpose.msra.mxu0 0
    %3409 = vmatprep.subr.bf16.mxu0 0
    %3410 = vmatpush1.bf16.xpose.msra.mxu0 0
    %3411 = vmatprep.subr.bf16.mxu0 0
    %3412 = vmatpush1.bf16.xpose.msra.mxu0 0
    %3413 = vmatprep.subr.bf16.mxu0 0
    %3414 = vmatpush1.bf16.xpose.msra.mxu0 0
    %3415 = vmatprep.subr.bf16.mxu0 0
    %3416 = vmatpush1.bf16.xpose.msra.mxu0 0
    %3417 = vmatprep.subr.bf16.mxu0 0
    %3418 = vmatpush1.bf16.xpose.msra.mxu0 0
    %3419 = vmatprep.subr.bf16.mxu0 0
    %3420 = vmatpush1.bf16.xpose.msra.mxu0 0
    %3421 = vmatprep.subr.bf16.mxu0 0
    %3422 = vmatpush1.bf16.xpose.msra.mxu0 0
    %3423 = vmatprep.subr.bf16.mxu0 0
    %3424 = vmatpush1.bf16.xpose.msra.mxu0 0
    %3425 = vmatprep.mubr.bf16.mxu0 %v3255
    %3426 = vmatmul.mubr.bf16.gmra.mrb[0].mxu0 %v3254
    %v3427 = vpop.f32.mrb[0].mxu0
    %v3428 = vadd.f32 %v3388, %v3427
    %v3429 = vpop.f32.mrb[0].mxu0
    %v3430 = vpop.f32.mrb[0].mxu0
    %v3431 = vpop.f32.mrb[0].mxu0
    %3432 = vdwg.mxu0
    %3433 = vmatprep.subr.bf16.mxu0 %v3304
    %3434 = vmatpush1.bf16.xpose.msra.mxu0 %v3303
    %3435 = vmatprep.subr.bf16.mxu0 0
    %3436 = vmatpush1.bf16.xpose.msra.mxu0 0
    %3437 = vmatprep.subr.bf16.mxu0 0
    %3438 = vmatpush1.bf16.xpose.msra.mxu0 0
    %3439 = vmatprep.subr.bf16.mxu0 0
    %3440 = vmatpush1.bf16.xpose.msra.mxu0 0
    %3441 = vmatprep.subr.bf16.mxu0 0
    %3442 = vmatpush1.bf16.xpose.msra.mxu0 0
    %3443 = vmatprep.subr.bf16.mxu0 0
    %3444 = vmatpush1.bf16.xpose.msra.mxu0 0
    %3445 = vmatprep.subr.bf16.mxu0 0
    %3446 = vmatpush1.bf16.xpose.msra.mxu0 0
    %3447 = vmatprep.subr.bf16.mxu0 0
    %3448 = vmatpush1.bf16.xpose.msra.mxu0 0
    %3449 = vmatprep.subr.bf16.mxu0 0
    %3450 = vmatpush1.bf16.xpose.msra.mxu0 0
    %3451 = vmatprep.subr.bf16.mxu0 0
    %3452 = vmatpush1.bf16.xpose.msra.mxu0 0
    %3453 = vmatprep.subr.bf16.mxu0 0
    %3454 = vmatpush1.bf16.xpose.msra.mxu0 0
    %3455 = vmatprep.subr.bf16.mxu0 0
    %3456 = vmatpush1.bf16.xpose.msra.mxu0 0
    %3457 = vmatprep.subr.bf16.mxu0 0
    %3458 = vmatpush1.bf16.xpose.msra.mxu0 0
    %3459 = vmatprep.subr.bf16.mxu0 0
    %3460 = vmatpush1.bf16.xpose.msra.mxu0 0
    %3461 = vmatprep.subr.bf16.mxu0 0
    %3462 = vmatpush1.bf16.xpose.msra.mxu0 0
    %3463 = vmatprep.subr.bf16.mxu0 0
    %3464 = vmatpush1.bf16.xpose.msra.mxu0 0
    %3465 = vmatprep.mubr.bf16.mxu0 %v3257
    %3466 = vmatmul.mubr.bf16.gmra.mrb[0].mxu0 %v3256
    %v3467 = vpop.f32.mrb[0].mxu0
    %v3468 = vadd.f32 %v3428, %v3467
    %v3469 = vpop.f32.mrb[0].mxu0
    %v3470 = vpop.f32.mrb[0].mxu0
    %v3471 = vpop.f32.mrb[0].mxu0
    %3472 = vdwg.mxu0
    %vm3473 = vcmask 74752
    %3474 = vst.msk [vmem:[#allocation13] sm:$0x3] %vm3473, %v3468
    // Predicated region
    $region46: #{inception_aux.1} parent=1 // pred_check
      _
    $region47: #{inception_aux.1} parent=1 // pred_check_branch
      %3476 = sbr.rel (0) target = $region49
    $region48: #{inception_aux.1} parent=1 // pred_region
      %s3478 = ssub.s32 32, 32
      %3479 = vsyncadd [#allocation6], %s3478
      %s3481 = sshll.u32 [#allocation13], 4
      %s3482 = int_to_ptr.vmem [resolvable:$true] %s3481
      %3484 = dma.vmem_to_hbm [thread:$0]  %s3482, 32, %s7, [#allocation6]
    $region49: #{inception_aux.1} parent=1 // pred_fallthru
      _
    // Predicated region
    $region50: #{inception_aux.1} parent=1 // pred_check
      _
    $region51: #{inception_aux.1} parent=1 // pred_check_branch
      %3486 = sbr.rel (0) target = $region53
    $region52: #{inception_aux.1} parent=1 // pred_region
      %3487 = dma.done [#allocation6], 32
    $region53: #{inception_aux.1} parent=1 // pred_fallthru
      _
    %3488 = vsyncpa [#allocation5], 1
    %3489 = vsyncpa [#allocation8], 1
    %3490 = vsyncpa [#allocation11], 1
    %3491 = vsyncpa [#allocation6], 1
  %3492 = vsyncmov [#allocation3]
  %s3493 = vpop.sfrf %3492
  %p3494 = scmp.eq.s32.totalorder %s3493, 0
  %p3495 = pneg %p3494
  %3497 = shalt.err (%p3495)

</llo_original>
